<compile_context>
chip_gen: v6e
topology: v6e:2x2x1
jax: 0.10.0
libtpu: 0.0.40
codegen_flags: <defaults>
</compile_context>

<pallas_src>
import functools

import jax
import jax.numpy as jnp
from jax.experimental import pallas as pl
from jax.experimental.pallas import tpu as pltpu


def lstm_kernel(x_ref, wih0_ref, wih12_ref, whh_ref, b_ref, wlin_ref, blin_ref,
                out_ref):
    """Whole-sequence 3-layer LSTM + final Linear in a single invocation."""
    T, B, F = x_ref.shape
    H = whh_ref.shape[1]

    # Load constant weights once into registers.
    wih0 = wih0_ref[...]        # (F, 4H)
    wih1 = wih12_ref[0]         # (H, 4H)
    wih2 = wih12_ref[1]         # (H, 4H)
    whh0 = whh_ref[0]           # (H, 4H)
    whh1 = whh_ref[1]           # (H, 4H)
    whh2 = whh_ref[2]           # (H, 4H)
    b0 = b_ref[0]               # (1, 4H)  (b_ih + b_hh pre-folded in the wrapper)
    b1 = b_ref[1]
    b2 = b_ref[2]

    # Layer-0 input projections are independent of the recurrent state:
    # issue all T tiny matmuls back-to-back so the MXU pipelines them and they
    # come fully off the serial per-step critical path (bias folded in here too).
    xproj = [jnp.dot(x_ref[t], wih0, preferred_element_type=jnp.float32) + b0
             for t in range(T)]

    def activate(gates):
        # Two full-width EUP passes over the whole (B, 4H) tile, then static lane
        # slices — instead of four partial-width (32-lane) activation pushes.
        sig = jax.nn.sigmoid(gates)
        th = jnp.tanh(gates)
        i = sig[:, 0 * H:1 * H]
        f = sig[:, 1 * H:2 * H]
        g = th[:, 2 * H:3 * H]
        o = sig[:, 3 * H:4 * H]
        return i, f, g, o

    zeros = jnp.zeros((B, H), jnp.float32)
    h0, h1, h2 = zeros, zeros, zeros
    c0, c1, c2 = zeros, zeros, zeros

    for t in range(T):  # static unroll; T is tiny and known at trace time
        # Recurrent matmuls for all 3 layers depend only on (t-1) state —
        # issue them together at the top of the step so the MXU pipelines them.
        # Biases for layers 1/2 are folded here, off the gates-sum wait path.
        r0 = jnp.dot(h0, whh0, preferred_element_type=jnp.float32)
        r1 = jnp.dot(h1, whh1, preferred_element_type=jnp.float32) + b1
        r2 = jnp.dot(h2, whh2, preferred_element_type=jnp.float32) + b2

        # Layer 0 (input projection precomputed, bias already folded in).
        i, f, g, o = activate(xproj[t] + r0)
        c0 = f * c0 + i * g
        h0 = o * jnp.tanh(c0)

        # Layer 1.
        i, f, g, o = activate(
            jnp.dot(h0, wih1, preferred_element_type=jnp.float32) + r1)
        c1 = f * c1 + i * g
        h1 = o * jnp.tanh(c1)

        # Layer 2.
        i, f, g, o = activate(
            jnp.dot(h1, wih2, preferred_element_type=jnp.float32) + r2)
        c2 = f * c2 + i * g
        h2 = o * jnp.tanh(c2)

    # Final Linear as VPU multiply + XLU lane reduction (wlin stored as (1, H)),
    # avoiding an N=1 MXU matmul against a 1-lane-wide weight column.
    out_ref[...] = (jnp.sum(h2 * wlin_ref[...], axis=-1, keepdims=True)
                    + blin_ref[...])


@functools.partial(jax.jit, static_argnames=())
def my_model_forward(x, params):
    """x: (B, T, 8) float32 -> (B,) float32  (matches MyModel.forward)."""
    wih0, wih12, whh, b, wlin, blin = params
    B, T, F = x.shape
    x_tm = jnp.transpose(x, (1, 0, 2))  # (T, B, F) time-major

    vmem_spec = pl.BlockSpec(memory_space=pltpu.MemorySpace.VMEM)
    out = pl.pallas_call(
        lstm_kernel,
        out_shape=jax.ShapeDtypeStruct((B, 1), jnp.float32),
        in_specs=[vmem_spec] * 7,      # x + all weights (~85 KB) fit in VMEM easily
        out_specs=vmem_spec,
    )(x_tm, wih0, wih12, whh, b, wlin, blin)
    return out[:, 0]


def init_params(key, line, input_size=8):
    """Deterministic init matching PyTorch LSTM/Linear parameter shapes."""
    H = line
    ks = jax.random.split(key, 10)
    scale = 1.0 / jnp.sqrt(H)
    # PyTorch gate order in weight_ih/hh_l{k}: [i, f, g, o] stacked along rows
    # (4H, in).  We pre-transpose so the kernel computes inp @ W.
    wih0 = jax.random.uniform(ks[0], (input_size, 4 * H), jnp.float32, -scale, scale)
    wih12 = jax.random.uniform(ks[1], (2, H, 4 * H), jnp.float32, -scale, scale)
    whh = jax.random.uniform(ks[2], (3, H, 4 * H), jnp.float32, -scale, scale)
    b_ih = jax.random.uniform(ks[3], (3, 4 * H), jnp.float32, -scale, scale)
    b_hh = jax.random.uniform(ks[4], (3, 4 * H), jnp.float32, -scale, scale)
    b = (b_ih + b_hh)[:, None, :]  # (3, 1, 4H) — biases pre-folded
    wlin = jax.random.uniform(ks[5], (1, H), jnp.float32, -scale, scale)   # row layout
    blin = jax.random.uniform(ks[6], (1, 1), jnp.float32, -scale, scale)
    return (wih0, wih12, whh, b, wlin, blin)


def reference_forward(x, params):
    """Pure-JAX reference of the same 3-layer LSTM + Linear (for checking)."""
    wih0, wih12, whh, b, wlin, blin = params
    B, T, F = x.shape
    H = whh.shape[1]

    def cell(inp, h, c, w_ih, w_hh, bias):
        gates = inp @ w_ih + h @ w_hh + bias
        i = jax.nn.sigmoid(gates[:, 0 * H:1 * H])
        f = jax.nn.sigmoid(gates[:, 1 * H:2 * H])
        g = jnp.tanh(gates[:, 2 * H:3 * H])
        o = jax.nn.sigmoid(gates[:, 3 * H:4 * H])
        c_new = f * c + i * g
        h_new = o * jnp.tanh(c_new)
        return h_new, c_new

    h = jnp.zeros((3, B, H), jnp.float32)
    c = jnp.zeros((3, B, H), jnp.float32)
    for t in range(T):
        x_t = x[:, t, :]
        h0, c0 = cell(x_t, h[0], c[0], wih0, whh[0], b[0])
        h1, c1 = cell(h0, h[1], c[1], wih12[0], whh[1], b[1])
        h2, c2 = cell(h1, h[2], c[2], wih12[1], whh[2], b[2])
        h = jnp.stack([h0, h1, h2])
        c = jnp.stack([c0, c1, c2])
    out = h[2] @ wlin.T + blin
    return out[:, 0]


if __name__ == "__main__":
    B, T, F = 2, 8, 8     # batch, seq, input features (LSTM input_size=8)
    LINE = 32             # hidden size ("line")

    key = jax.random.PRNGKey(0)
    kx, kp = jax.random.split(key)
    x = jax.random.normal(kx, (B, T, F), jnp.float32)
    params = init_params(kp, LINE, input_size=F)

    y = my_model_forward(x, params)
    jax.block_until_ready(y)

    y_ref = reference_forward(x, params)
    assert y.shape == (B,)
    assert jnp.allclose(y, y_ref, atol=1e-5, rtol=1e-5), (y, y_ref)

    print("KERNEL_OK")
</pallas_src>

<mosaic_0001>
module attributes {stable_mosaic.version = 11 : i64} {
  func.func @lstm_kernel(%arg0: memref<8x2x8xf32, #tpu.memory_space<vmem>>, %arg1: memref<8x128xf32, #tpu.memory_space<vmem>>, %arg2: memref<2x32x128xf32, #tpu.memory_space<vmem>>, %arg3: memref<3x32x128xf32, #tpu.memory_space<vmem>>, %arg4: memref<3x1x128xf32, #tpu.memory_space<vmem>>, %arg5: memref<1x32xf32, #tpu.memory_space<vmem>>, %arg6: memref<1x1xf32, #tpu.memory_space<vmem>>, %arg7: memref<2x1xf32, #tpu.memory_space<vmem>>) attributes {dimension_semantics = [], scalar_prefetch = 0 : i64, scratch_operands = 0 : i64, tpu.core_type = #tpu.core_type<tc>} {
    %c0 = arith.constant 0 : index
    %c0_0 = arith.constant 0 : index
    %0 = vector.load %arg1[%c0, %c0_0] : memref<8x128xf32, #tpu.memory_space<vmem>>, vector<8x128xf32>
    %c0_1 = arith.constant 0 : index
    %c0_2 = arith.constant 0 : index
    %c0_3 = arith.constant 0 : index
    %1 = vector.load %arg2[%c0_1, %c0_2, %c0_3] : memref<2x32x128xf32, #tpu.memory_space<vmem>>, vector<1x32x128xf32>
    %2 = vector.shape_cast %1 : vector<1x32x128xf32> to vector<32x128xf32>
    %c1 = arith.constant 1 : index
    %c0_4 = arith.constant 0 : index
    %c0_5 = arith.constant 0 : index
    %3 = vector.load %arg2[%c1, %c0_4, %c0_5] : memref<2x32x128xf32, #tpu.memory_space<vmem>>, vector<1x32x128xf32>
    %4 = vector.shape_cast %3 : vector<1x32x128xf32> to vector<32x128xf32>
    %c0_6 = arith.constant 0 : index
    %c0_7 = arith.constant 0 : index
    %c0_8 = arith.constant 0 : index
    %5 = vector.load %arg3[%c0_6, %c0_7, %c0_8] : memref<3x32x128xf32, #tpu.memory_space<vmem>>, vector<1x32x128xf32>
    %6 = vector.shape_cast %5 : vector<1x32x128xf32> to vector<32x128xf32>
    %c1_9 = arith.constant 1 : index
    %c0_10 = arith.constant 0 : index
    %c0_11 = arith.constant 0 : index
    %7 = vector.load %arg3[%c1_9, %c0_10, %c0_11] : memref<3x32x128xf32, #tpu.memory_space<vmem>>, vector<1x32x128xf32>
    %8 = vector.shape_cast %7 : vector<1x32x128xf32> to vector<32x128xf32>
    %c2 = arith.constant 2 : index
    %c0_12 = arith.constant 0 : index
    %c0_13 = arith.constant 0 : index
    %9 = vector.load %arg3[%c2, %c0_12, %c0_13] : memref<3x32x128xf32, #tpu.memory_space<vmem>>, vector<1x32x128xf32>
    %10 = vector.shape_cast %9 : vector<1x32x128xf32> to vector<32x128xf32>
    %c0_14 = arith.constant 0 : index
    %c0_15 = arith.constant 0 : index
    %c0_16 = arith.constant 0 : index
    %11 = vector.load %arg4[%c0_14, %c0_15, %c0_16] : memref<3x1x128xf32, #tpu.memory_space<vmem>>, vector<1x1x128xf32>
    %12 = vector.shape_cast %11 : vector<1x1x128xf32> to vector<1x128xf32>
    %c1_17 = arith.constant 1 : index
    %c0_18 = arith.constant 0 : index
    %c0_19 = arith.constant 0 : index
    %13 = vector.load %arg4[%c1_17, %c0_18, %c0_19] : memref<3x1x128xf32, #tpu.memory_space<vmem>>, vector<1x1x128xf32>
    %14 = vector.shape_cast %13 : vector<1x1x128xf32> to vector<1x128xf32>
    %c2_20 = arith.constant 2 : index
    %c0_21 = arith.constant 0 : index
    %c0_22 = arith.constant 0 : index
    %15 = vector.load %arg4[%c2_20, %c0_21, %c0_22] : memref<3x1x128xf32, #tpu.memory_space<vmem>>, vector<1x1x128xf32>
    %16 = vector.shape_cast %15 : vector<1x1x128xf32> to vector<1x128xf32>
    %c0_23 = arith.constant 0 : index
    %c0_24 = arith.constant 0 : index
    %c0_25 = arith.constant 0 : index
    %17 = vector.load %arg0[%c0_23, %c0_24, %c0_25] : memref<8x2x8xf32, #tpu.memory_space<vmem>>, vector<1x2x8xf32>
    %18 = vector.shape_cast %17 : vector<1x2x8xf32> to vector<2x8xf32>
    %cst = arith.constant dense<0.000000e+00> : vector<2x128xf32>
    %19 = tpu.matmul %18, %0, %cst {dimension_numbers = #tpu.dot_dimension_numbers<[1], [0], [0], [1], [0, 0, 1, 1], [], []>} : vector<2x8xf32>, vector<8x128xf32>, vector<2x128xf32> -> vector<2x128xf32>
    %20 = vector.broadcast %12 : vector<1x128xf32> to vector<2x128xf32>
    %21 = arith.addf %19, %20 : vector<2x128xf32>
    %c1_26 = arith.constant 1 : index
    %c0_27 = arith.constant 0 : index
    %c0_28 = arith.constant 0 : index
    %22 = vector.load %arg0[%c1_26, %c0_27, %c0_28] : memref<8x2x8xf32, #tpu.memory_space<vmem>>, vector<1x2x8xf32>
    %23 = vector.shape_cast %22 : vector<1x2x8xf32> to vector<2x8xf32>
    %cst_29 = arith.constant dense<0.000000e+00> : vector<2x128xf32>
    %24 = tpu.matmul %23, %0, %cst_29 {dimension_numbers = #tpu.dot_dimension_numbers<[1], [0], [0], [1], [0, 0, 1, 1], [], []>} : vector<2x8xf32>, vector<8x128xf32>, vector<2x128xf32> -> vector<2x128xf32>
    %25 = vector.broadcast %12 : vector<1x128xf32> to vector<2x128xf32>
    %26 = arith.addf %24, %25 : vector<2x128xf32>
    %c2_30 = arith.constant 2 : index
    %c0_31 = arith.constant 0 : index
    %c0_32 = arith.constant 0 : index
    %27 = vector.load %arg0[%c2_30, %c0_31, %c0_32] : memref<8x2x8xf32, #tpu.memory_space<vmem>>, vector<1x2x8xf32>
    %28 = vector.shape_cast %27 : vector<1x2x8xf32> to vector<2x8xf32>
    %cst_33 = arith.constant dense<0.000000e+00> : vector<2x128xf32>
    %29 = tpu.matmul %28, %0, %cst_33 {dimension_numbers = #tpu.dot_dimension_numbers<[1], [0], [0], [1], [0, 0, 1, 1], [], []>} : vector<2x8xf32>, vector<8x128xf32>, vector<2x128xf32> -> vector<2x128xf32>
    %30 = vector.broadcast %12 : vector<1x128xf32> to vector<2x128xf32>
    %31 = arith.addf %29, %30 : vector<2x128xf32>
    %c3 = arith.constant 3 : index
    %c0_34 = arith.constant 0 : index
    %c0_35 = arith.constant 0 : index
    %32 = vector.load %arg0[%c3, %c0_34, %c0_35] : memref<8x2x8xf32, #tpu.memory_space<vmem>>, vector<1x2x8xf32>
    %33 = vector.shape_cast %32 : vector<1x2x8xf32> to vector<2x8xf32>
    %cst_36 = arith.constant dense<0.000000e+00> : vector<2x128xf32>
    %34 = tpu.matmul %33, %0, %cst_36 {dimension_numbers = #tpu.dot_dimension_numbers<[1], [0], [0], [1], [0, 0, 1, 1], [], []>} : vector<2x8xf32>, vector<8x128xf32>, vector<2x128xf32> -> vector<2x128xf32>
    %35 = vector.broadcast %12 : vector<1x128xf32> to vector<2x128xf32>
    %36 = arith.addf %34, %35 : vector<2x128xf32>
    %c4 = arith.constant 4 : index
    %c0_37 = arith.constant 0 : index
    %c0_38 = arith.constant 0 : index
    %37 = vector.load %arg0[%c4, %c0_37, %c0_38] : memref<8x2x8xf32, #tpu.memory_space<vmem>>, vector<1x2x8xf32>
    %38 = vector.shape_cast %37 : vector<1x2x8xf32> to vector<2x8xf32>
    %cst_39 = arith.constant dense<0.000000e+00> : vector<2x128xf32>
    %39 = tpu.matmul %38, %0, %cst_39 {dimension_numbers = #tpu.dot_dimension_numbers<[1], [0], [0], [1], [0, 0, 1, 1], [], []>} : vector<2x8xf32>, vector<8x128xf32>, vector<2x128xf32> -> vector<2x128xf32>
    %40 = vector.broadcast %12 : vector<1x128xf32> to vector<2x128xf32>
    %41 = arith.addf %39, %40 : vector<2x128xf32>
    %c5 = arith.constant 5 : index
    %c0_40 = arith.constant 0 : index
    %c0_41 = arith.constant 0 : index
    %42 = vector.load %arg0[%c5, %c0_40, %c0_41] : memref<8x2x8xf32, #tpu.memory_space<vmem>>, vector<1x2x8xf32>
    %43 = vector.shape_cast %42 : vector<1x2x8xf32> to vector<2x8xf32>
    %cst_42 = arith.constant dense<0.000000e+00> : vector<2x128xf32>
    %44 = tpu.matmul %43, %0, %cst_42 {dimension_numbers = #tpu.dot_dimension_numbers<[1], [0], [0], [1], [0, 0, 1, 1], [], []>} : vector<2x8xf32>, vector<8x128xf32>, vector<2x128xf32> -> vector<2x128xf32>
    %45 = vector.broadcast %12 : vector<1x128xf32> to vector<2x128xf32>
    %46 = arith.addf %44, %45 : vector<2x128xf32>
    %c6 = arith.constant 6 : index
    %c0_43 = arith.constant 0 : index
    %c0_44 = arith.constant 0 : index
    %47 = vector.load %arg0[%c6, %c0_43, %c0_44] : memref<8x2x8xf32, #tpu.memory_space<vmem>>, vector<1x2x8xf32>
    %48 = vector.shape_cast %47 : vector<1x2x8xf32> to vector<2x8xf32>
    %cst_45 = arith.constant dense<0.000000e+00> : vector<2x128xf32>
    %49 = tpu.matmul %48, %0, %cst_45 {dimension_numbers = #tpu.dot_dimension_numbers<[1], [0], [0], [1], [0, 0, 1, 1], [], []>} : vector<2x8xf32>, vector<8x128xf32>, vector<2x128xf32> -> vector<2x128xf32>
    %50 = vector.broadcast %12 : vector<1x128xf32> to vector<2x128xf32>
    %51 = arith.addf %49, %50 : vector<2x128xf32>
    %c7 = arith.constant 7 : index
    %c0_46 = arith.constant 0 : index
    %c0_47 = arith.constant 0 : index
    %52 = vector.load %arg0[%c7, %c0_46, %c0_47] : memref<8x2x8xf32, #tpu.memory_space<vmem>>, vector<1x2x8xf32>
    %53 = vector.shape_cast %52 : vector<1x2x8xf32> to vector<2x8xf32>
    %cst_48 = arith.constant dense<0.000000e+00> : vector<2x128xf32>
    %54 = tpu.matmul %53, %0, %cst_48 {dimension_numbers = #tpu.dot_dimension_numbers<[1], [0], [0], [1], [0, 0, 1, 1], [], []>} : vector<2x8xf32>, vector<8x128xf32>, vector<2x128xf32> -> vector<2x128xf32>
    %55 = vector.broadcast %12 : vector<1x128xf32> to vector<2x128xf32>
    %56 = arith.addf %54, %55 : vector<2x128xf32>
    %cst_49 = arith.constant 0.000000e+00 : f32
    %57 = vector.broadcast %cst_49 : f32 to vector<2x32xf32>
    %cst_50 = arith.constant dense<0.000000e+00> : vector<2x128xf32>
    %58 = tpu.matmul %57, %6, %cst_50 {dimension_numbers = #tpu.dot_dimension_numbers<[1], [0], [0], [1], [0, 0, 1, 1], [], []>} : vector<2x32xf32>, vector<32x128xf32>, vector<2x128xf32> -> vector<2x128xf32>
    %cst_51 = arith.constant dense<0.000000e+00> : vector<2x128xf32>
    %59 = tpu.matmul %57, %8, %cst_51 {dimension_numbers = #tpu.dot_dimension_numbers<[1], [0], [0], [1], [0, 0, 1, 1], [], []>} : vector<2x32xf32>, vector<32x128xf32>, vector<2x128xf32> -> vector<2x128xf32>
    %60 = vector.broadcast %14 : vector<1x128xf32> to vector<2x128xf32>
    %61 = arith.addf %59, %60 : vector<2x128xf32>
    %cst_52 = arith.constant dense<0.000000e+00> : vector<2x128xf32>
    %62 = tpu.matmul %57, %10, %cst_52 {dimension_numbers = #tpu.dot_dimension_numbers<[1], [0], [0], [1], [0, 0, 1, 1], [], []>} : vector<2x32xf32>, vector<32x128xf32>, vector<2x128xf32> -> vector<2x128xf32>
    %63 = vector.broadcast %16 : vector<1x128xf32> to vector<2x128xf32>
    %64 = arith.addf %62, %63 : vector<2x128xf32>
    %65 = arith.addf %21, %58 : vector<2x128xf32>
    %66 = arith.negf %65 : vector<2x128xf32>
    %67 = math.exp %66 : vector<2x128xf32>
    %cst_53 = arith.constant 1.000000e+00 : f32
    %68 = vector.broadcast %cst_53 : f32 to vector<2x128xf32>
    %69 = arith.addf %68, %67 : vector<2x128xf32>
    %70 = arith.divf %68, %69 : vector<2x128xf32>
    %71 = math.tanh %65 : vector<2x128xf32>
    %72 = vector.extract_strided_slice %70 {offsets = [0, 0], sizes = [2, 32], strides = [1, 1]} : vector<2x128xf32> to vector<2x32xf32>
    %73 = vector.extract_strided_slice %70 {offsets = [0, 32], sizes = [2, 32], strides = [1, 1]} : vector<2x128xf32> to vector<2x32xf32>
    %74 = vector.extract_strided_slice %71 {offsets = [0, 64], sizes = [2, 32], strides = [1, 1]} : vector<2x128xf32> to vector<2x32xf32>
    %75 = vector.extract_strided_slice %70 {offsets = [0, 96], sizes = [2, 32], strides = [1, 1]} : vector<2x128xf32> to vector<2x32xf32>
    %76 = arith.mulf %73, %57 : vector<2x32xf32>
    %77 = arith.mulf %72, %74 : vector<2x32xf32>
    %78 = arith.addf %76, %77 : vector<2x32xf32>
    %79 = math.tanh %78 : vector<2x32xf32>
    %80 = arith.mulf %75, %79 : vector<2x32xf32>
    %cst_54 = arith.constant dense<0.000000e+00> : vector<2x128xf32>
    %81 = tpu.matmul %80, %2, %cst_54 {dimension_numbers = #tpu.dot_dimension_numbers<[1], [0], [0], [1], [0, 0, 1, 1], [], []>} : vector<2x32xf32>, vector<32x128xf32>, vector<2x128xf32> -> vector<2x128xf32>
    %82 = arith.addf %81, %61 : vector<2x128xf32>
    %83 = arith.negf %82 : vector<2x128xf32>
    %84 = math.exp %83 : vector<2x128xf32>
    %cst_55 = arith.constant 1.000000e+00 : f32
    %85 = vector.broadcast %cst_55 : f32 to vector<2x128xf32>
    %86 = arith.addf %85, %84 : vector<2x128xf32>
    %87 = arith.divf %85, %86 : vector<2x128xf32>
    %88 = math.tanh %82 : vector<2x128xf32>
    %89 = vector.extract_strided_slice %87 {offsets = [0, 0], sizes = [2, 32], strides = [1, 1]} : vector<2x128xf32> to vector<2x32xf32>
    %90 = vector.extract_strided_slice %87 {offsets = [0, 32], sizes = [2, 32], strides = [1, 1]} : vector<2x128xf32> to vector<2x32xf32>
    %91 = vector.extract_strided_slice %88 {offsets = [0, 64], sizes = [2, 32], strides = [1, 1]} : vector<2x128xf32> to vector<2x32xf32>
    %92 = vector.extract_strided_slice %87 {offsets = [0, 96], sizes = [2, 32], strides = [1, 1]} : vector<2x128xf32> to vector<2x32xf32>
    %93 = arith.mulf %90, %57 : vector<2x32xf32>
    %94 = arith.mulf %89, %91 : vector<2x32xf32>
    %95 = arith.addf %93, %94 : vector<2x32xf32>
    %96 = math.tanh %95 : vector<2x32xf32>
    %97 = arith.mulf %92, %96 : vector<2x32xf32>
    %cst_56 = arith.constant dense<0.000000e+00> : vector<2x128xf32>
    %98 = tpu.matmul %97, %4, %cst_56 {dimension_numbers = #tpu.dot_dimension_numbers<[1], [0], [0], [1], [0, 0, 1, 1], [], []>} : vector<2x32xf32>, vector<32x128xf32>, vector<2x128xf32> -> vector<2x128xf32>
    %99 = arith.addf %98, %64 : vector<2x128xf32>
    %100 = arith.negf %99 : vector<2x128xf32>
    %101 = math.exp %100 : vector<2x128xf32>
    %cst_57 = arith.constant 1.000000e+00 : f32
    %102 = vector.broadcast %cst_57 : f32 to vector<2x128xf32>
    %103 = arith.addf %102, %101 : vector<2x128xf32>
    %104 = arith.divf %102, %103 : vector<2x128xf32>
    %105 = math.tanh %99 : vector<2x128xf32>
    %106 = vector.extract_strided_slice %104 {offsets = [0, 0], sizes = [2, 32], strides = [1, 1]} : vector<2x128xf32> to vector<2x32xf32>
    %107 = vector.extract_strided_slice %104 {offsets = [0, 32], sizes = [2, 32], strides = [1, 1]} : vector<2x128xf32> to vector<2x32xf32>
    %108 = vector.extract_strided_slice %105 {offsets = [0, 64], sizes = [2, 32], strides = [1, 1]} : vector<2x128xf32> to vector<2x32xf32>
    %109 = vector.extract_strided_slice %104 {offsets = [0, 96], sizes = [2, 32], strides = [1, 1]} : vector<2x128xf32> to vector<2x32xf32>
    %110 = arith.mulf %107, %57 : vector<2x32xf32>
    %111 = arith.mulf %106, %108 : vector<2x32xf32>
    %112 = arith.addf %110, %111 : vector<2x32xf32>
    %113 = math.tanh %112 : vector<2x32xf32>
    %114 = arith.mulf %109, %113 : vector<2x32xf32>
    %cst_58 = arith.constant dense<0.000000e+00> : vector<2x128xf32>
    %115 = tpu.matmul %80, %6, %cst_58 {dimension_numbers = #tpu.dot_dimension_numbers<[1], [0], [0], [1], [0, 0, 1, 1], [], []>} : vector<2x32xf32>, vector<32x128xf32>, vector<2x128xf32> -> vector<2x128xf32>
    %cst_59 = arith.constant dense<0.000000e+00> : vector<2x128xf32>
    %116 = tpu.matmul %97, %8, %cst_59 {dimension_numbers = #tpu.dot_dimension_numbers<[1], [0], [0], [1], [0, 0, 1, 1], [], []>} : vector<2x32xf32>, vector<32x128xf32>, vector<2x128xf32> -> vector<2x128xf32>
    %117 = vector.broadcast %14 : vector<1x128xf32> to vector<2x128xf32>
    %118 = arith.addf %116, %117 : vector<2x128xf32>
    %cst_60 = arith.constant dense<0.000000e+00> : vector<2x128xf32>
    %119 = tpu.matmul %114, %10, %cst_60 {dimension_numbers = #tpu.dot_dimension_numbers<[1], [0], [0], [1], [0, 0, 1, 1], [], []>} : vector<2x32xf32>, vector<32x128xf32>, vector<2x128xf32> -> vector<2x128xf32>
    %120 = vector.broadcast %16 : vector<1x128xf32> to vector<2x128xf32>
    %121 = arith.addf %119, %120 : vector<2x128xf32>
    %122 = arith.addf %26, %115 : vector<2x128xf32>
    %123 = arith.negf %122 : vector<2x128xf32>
    %124 = math.exp %123 : vector<2x128xf32>
    %cst_61 = arith.constant 1.000000e+00 : f32
    %125 = vector.broadcast %cst_61 : f32 to vector<2x128xf32>
    %126 = arith.addf %125, %124 : vector<2x128xf32>
    %127 = arith.divf %125, %126 : vector<2x128xf32>
    %128 = math.tanh %122 : vector<2x128xf32>
    %129 = vector.extract_strided_slice %127 {offsets = [0, 0], sizes = [2, 32], strides = [1, 1]} : vector<2x128xf32> to vector<2x32xf32>
    %130 = vector.extract_strided_slice %127 {offsets = [0, 32], sizes = [2, 32], strides = [1, 1]} : vector<2x128xf32> to vector<2x32xf32>
    %131 = vector.extract_strided_slice %128 {offsets = [0, 64], sizes = [2, 32], strides = [1, 1]} : vector<2x128xf32> to vector<2x32xf32>
    %132 = vector.extract_strided_slice %127 {offsets = [0, 96], sizes = [2, 32], strides = [1, 1]} : vector<2x128xf32> to vector<2x32xf32>
    %133 = arith.mulf %130, %78 : vector<2x32xf32>
    %134 = arith.mulf %129, %131 : vector<2x32xf32>
    %135 = arith.addf %133, %134 : vector<2x32xf32>
    %136 = math.tanh %135 : vector<2x32xf32>
    %137 = arith.mulf %132, %136 : vector<2x32xf32>
    %cst_62 = arith.constant dense<0.000000e+00> : vector<2x128xf32>
    %138 = tpu.matmul %137, %2, %cst_62 {dimension_numbers = #tpu.dot_dimension_numbers<[1], [0], [0], [1], [0, 0, 1, 1], [], []>} : vector<2x32xf32>, vector<32x128xf32>, vector<2x128xf32> -> vector<2x128xf32>
    %139 = arith.addf %138, %118 : vector<2x128xf32>
    %140 = arith.negf %139 : vector<2x128xf32>
    %141 = math.exp %140 : vector<2x128xf32>
    %cst_63 = arith.constant 1.000000e+00 : f32
    %142 = vector.broadcast %cst_63 : f32 to vector<2x128xf32>
    %143 = arith.addf %142, %141 : vector<2x128xf32>
    %144 = arith.divf %142, %143 : vector<2x128xf32>
    %145 = math.tanh %139 : vector<2x128xf32>
    %146 = vector.extract_strided_slice %144 {offsets = [0, 0], sizes = [2, 32], strides = [1, 1]} : vector<2x128xf32> to vector<2x32xf32>
    %147 = vector.extract_strided_slice %144 {offsets = [0, 32], sizes = [2, 32], strides = [1, 1]} : vector<2x128xf32> to vector<2x32xf32>
    %148 = vector.extract_strided_slice %145 {offsets = [0, 64], sizes = [2, 32], strides = [1, 1]} : vector<2x128xf32> to vector<2x32xf32>
    %149 = vector.extract_strided_slice %144 {offsets = [0, 96], sizes = [2, 32], strides = [1, 1]} : vector<2x128xf32> to vector<2x32xf32>
    %150 = arith.mulf %147, %95 : vector<2x32xf32>
    %151 = arith.mulf %146, %148 : vector<2x32xf32>
    %152 = arith.addf %150, %151 : vector<2x32xf32>
    %153 = math.tanh %152 : vector<2x32xf32>
    %154 = arith.mulf %149, %153 : vector<2x32xf32>
    %cst_64 = arith.constant dense<0.000000e+00> : vector<2x128xf32>
    %155 = tpu.matmul %154, %4, %cst_64 {dimension_numbers = #tpu.dot_dimension_numbers<[1], [0], [0], [1], [0, 0, 1, 1], [], []>} : vector<2x32xf32>, vector<32x128xf32>, vector<2x128xf32> -> vector<2x128xf32>
    %156 = arith.addf %155, %121 : vector<2x128xf32>
    %157 = arith.negf %156 : vector<2x128xf32>
    %158 = math.exp %157 : vector<2x128xf32>
    %cst_65 = arith.constant 1.000000e+00 : f32
    %159 = vector.broadcast %cst_65 : f32 to vector<2x128xf32>
    %160 = arith.addf %159, %158 : vector<2x128xf32>
    %161 = arith.divf %159, %160 : vector<2x128xf32>
    %162 = math.tanh %156 : vector<2x128xf32>
    %163 = vector.extract_strided_slice %161 {offsets = [0, 0], sizes = [2, 32], strides = [1, 1]} : vector<2x128xf32> to vector<2x32xf32>
    %164 = vector.extract_strided_slice %161 {offsets = [0, 32], sizes = [2, 32], strides = [1, 1]} : vector<2x128xf32> to vector<2x32xf32>
    %165 = vector.extract_strided_slice %162 {offsets = [0, 64], sizes = [2, 32], strides = [1, 1]} : vector<2x128xf32> to vector<2x32xf32>
    %166 = vector.extract_strided_slice %161 {offsets = [0, 96], sizes = [2, 32], strides = [1, 1]} : vector<2x128xf32> to vector<2x32xf32>
    %167 = arith.mulf %164, %112 : vector<2x32xf32>
    %168 = arith.mulf %163, %165 : vector<2x32xf32>
    %169 = arith.addf %167, %168 : vector<2x32xf32>
    %170 = math.tanh %169 : vector<2x32xf32>
    %171 = arith.mulf %166, %170 : vector<2x32xf32>
    %cst_66 = arith.constant dense<0.000000e+00> : vector<2x128xf32>
    %172 = tpu.matmul %137, %6, %cst_66 {dimension_numbers = #tpu.dot_dimension_numbers<[1], [0], [0], [1], [0, 0, 1, 1], [], []>} : vector<2x32xf32>, vector<32x128xf32>, vector<2x128xf32> -> vector<2x128xf32>
    %cst_67 = arith.constant dense<0.000000e+00> : vector<2x128xf32>
    %173 = tpu.matmul %154, %8, %cst_67 {dimension_numbers = #tpu.dot_dimension_numbers<[1], [0], [0], [1], [0, 0, 1, 1], [], []>} : vector<2x32xf32>, vector<32x128xf32>, vector<2x128xf32> -> vector<2x128xf32>
    %174 = vector.broadcast %14 : vector<1x128xf32> to vector<2x128xf32>
    %175 = arith.addf %173, %174 : vector<2x128xf32>
    %cst_68 = arith.constant dense<0.000000e+00> : vector<2x128xf32>
    %176 = tpu.matmul %171, %10, %cst_68 {dimension_numbers = #tpu.dot_dimension_numbers<[1], [0], [0], [1], [0, 0, 1, 1], [], []>} : vector<2x32xf32>, vector<32x128xf32>, vector<2x128xf32> -> vector<2x128xf32>
    %177 = vector.broadcast %16 : vector<1x128xf32> to vector<2x128xf32>
    %178 = arith.addf %176, %177 : vector<2x128xf32>
    %179 = arith.addf %31, %172 : vector<2x128xf32>
    %180 = arith.negf %179 : vector<2x128xf32>
    %181 = math.exp %180 : vector<2x128xf32>
    %cst_69 = arith.constant 1.000000e+00 : f32
    %182 = vector.broadcast %cst_69 : f32 to vector<2x128xf32>
    %183 = arith.addf %182, %181 : vector<2x128xf32>
    %184 = arith.divf %182, %183 : vector<2x128xf32>
    %185 = math.tanh %179 : vector<2x128xf32>
    %186 = vector.extract_strided_slice %184 {offsets = [0, 0], sizes = [2, 32], strides = [1, 1]} : vector<2x128xf32> to vector<2x32xf32>
    %187 = vector.extract_strided_slice %184 {offsets = [0, 32], sizes = [2, 32], strides = [1, 1]} : vector<2x128xf32> to vector<2x32xf32>
    %188 = vector.extract_strided_slice %185 {offsets = [0, 64], sizes = [2, 32], strides = [1, 1]} : vector<2x128xf32> to vector<2x32xf32>
    %189 = vector.extract_strided_slice %184 {offsets = [0, 96], sizes = [2, 32], strides = [1, 1]} : vector<2x128xf32> to vector<2x32xf32>
    %190 = arith.mulf %187, %135 : vector<2x32xf32>
    %191 = arith.mulf %186, %188 : vector<2x32xf32>
    %192 = arith.addf %190, %191 : vector<2x32xf32>
    %193 = math.tanh %192 : vector<2x32xf32>
    %194 = arith.mulf %189, %193 : vector<2x32xf32>
    %cst_70 = arith.constant dense<0.000000e+00> : vector<2x128xf32>
    %195 = tpu.matmul %194, %2, %cst_70 {dimension_numbers = #tpu.dot_dimension_numbers<[1], [0], [0], [1], [0, 0, 1, 1], [], []>} : vector<2x32xf32>, vector<32x128xf32>, vector<2x128xf32> -> vector<2x128xf32>
    %196 = arith.addf %195, %175 : vector<2x128xf32>
    %197 = arith.negf %196 : vector<2x128xf32>
    %198 = math.exp %197 : vector<2x128xf32>
    %cst_71 = arith.constant 1.000000e+00 : f32
    %199 = vector.broadcast %cst_71 : f32 to vector<2x128xf32>
    %200 = arith.addf %199, %198 : vector<2x128xf32>
    %201 = arith.divf %199, %200 : vector<2x128xf32>
    %202 = math.tanh %196 : vector<2x128xf32>
    %203 = vector.extract_strided_slice %201 {offsets = [0, 0], sizes = [2, 32], strides = [1, 1]} : vector<2x128xf32> to vector<2x32xf32>
    %204 = vector.extract_strided_slice %201 {offsets = [0, 32], sizes = [2, 32], strides = [1, 1]} : vector<2x128xf32> to vector<2x32xf32>
    %205 = vector.extract_strided_slice %202 {offsets = [0, 64], sizes = [2, 32], strides = [1, 1]} : vector<2x128xf32> to vector<2x32xf32>
    %206 = vector.extract_strided_slice %201 {offsets = [0, 96], sizes = [2, 32], strides = [1, 1]} : vector<2x128xf32> to vector<2x32xf32>
    %207 = arith.mulf %204, %152 : vector<2x32xf32>
    %208 = arith.mulf %203, %205 : vector<2x32xf32>
    %209 = arith.addf %207, %208 : vector<2x32xf32>
    %210 = math.tanh %209 : vector<2x32xf32>
    %211 = arith.mulf %206, %210 : vector<2x32xf32>
    %cst_72 = arith.constant dense<0.000000e+00> : vector<2x128xf32>
    %212 = tpu.matmul %211, %4, %cst_72 {dimension_numbers = #tpu.dot_dimension_numbers<[1], [0], [0], [1], [0, 0, 1, 1], [], []>} : vector<2x32xf32>, vector<32x128xf32>, vector<2x128xf32> -> vector<2x128xf32>
    %213 = arith.addf %212, %178 : vector<2x128xf32>
    %214 = arith.negf %213 : vector<2x128xf32>
    %215 = math.exp %214 : vector<2x128xf32>
    %cst_73 = arith.constant 1.000000e+00 : f32
    %216 = vector.broadcast %cst_73 : f32 to vector<2x128xf32>
    %217 = arith.addf %216, %215 : vector<2x128xf32>
    %218 = arith.divf %216, %217 : vector<2x128xf32>
    %219 = math.tanh %213 : vector<2x128xf32>
    %220 = vector.extract_strided_slice %218 {offsets = [0, 0], sizes = [2, 32], strides = [1, 1]} : vector<2x128xf32> to vector<2x32xf32>
    %221 = vector.extract_strided_slice %218 {offsets = [0, 32], sizes = [2, 32], strides = [1, 1]} : vector<2x128xf32> to vector<2x32xf32>
    %222 = vector.extract_strided_slice %219 {offsets = [0, 64], sizes = [2, 32], strides = [1, 1]} : vector<2x128xf32> to vector<2x32xf32>
    %223 = vector.extract_strided_slice %218 {offsets = [0, 96], sizes = [2, 32], strides = [1, 1]} : vector<2x128xf32> to vector<2x32xf32>
    %224 = arith.mulf %221, %169 : vector<2x32xf32>
    %225 = arith.mulf %220, %222 : vector<2x32xf32>
    %226 = arith.addf %224, %225 : vector<2x32xf32>
    %227 = math.tanh %226 : vector<2x32xf32>
    %228 = arith.mulf %223, %227 : vector<2x32xf32>
    %cst_74 = arith.constant dense<0.000000e+00> : vector<2x128xf32>
    %229 = tpu.matmul %194, %6, %cst_74 {dimension_numbers = #tpu.dot_dimension_numbers<[1], [0], [0], [1], [0, 0, 1, 1], [], []>} : vector<2x32xf32>, vector<32x128xf32>, vector<2x128xf32> -> vector<2x128xf32>
    %cst_75 = arith.constant dense<0.000000e+00> : vector<2x128xf32>
    %230 = tpu.matmul %211, %8, %cst_75 {dimension_numbers = #tpu.dot_dimension_numbers<[1], [0], [0], [1], [0, 0, 1, 1], [], []>} : vector<2x32xf32>, vector<32x128xf32>, vector<2x128xf32> -> vector<2x128xf32>
    %231 = vector.broadcast %14 : vector<1x128xf32> to vector<2x128xf32>
    %232 = arith.addf %230, %231 : vector<2x128xf32>
    %cst_76 = arith.constant dense<0.000000e+00> : vector<2x128xf32>
    %233 = tpu.matmul %228, %10, %cst_76 {dimension_numbers = #tpu.dot_dimension_numbers<[1], [0], [0], [1], [0, 0, 1, 1], [], []>} : vector<2x32xf32>, vector<32x128xf32>, vector<2x128xf32> -> vector<2x128xf32>
    %234 = vector.broadcast %16 : vector<1x128xf32> to vector<2x128xf32>
    %235 = arith.addf %233, %234 : vector<2x128xf32>
    %236 = arith.addf %36, %229 : vector<2x128xf32>
    %237 = arith.negf %236 : vector<2x128xf32>
    %238 = math.exp %237 : vector<2x128xf32>
    %cst_77 = arith.constant 1.000000e+00 : f32
    %239 = vector.broadcast %cst_77 : f32 to vector<2x128xf32>
    %240 = arith.addf %239, %238 : vector<2x128xf32>
    %241 = arith.divf %239, %240 : vector<2x128xf32>
    %242 = math.tanh %236 : vector<2x128xf32>
    %243 = vector.extract_strided_slice %241 {offsets = [0, 0], sizes = [2, 32], strides = [1, 1]} : vector<2x128xf32> to vector<2x32xf32>
    %244 = vector.extract_strided_slice %241 {offsets = [0, 32], sizes = [2, 32], strides = [1, 1]} : vector<2x128xf32> to vector<2x32xf32>
    %245 = vector.extract_strided_slice %242 {offsets = [0, 64], sizes = [2, 32], strides = [1, 1]} : vector<2x128xf32> to vector<2x32xf32>
    %246 = vector.extract_strided_slice %241 {offsets = [0, 96], sizes = [2, 32], strides = [1, 1]} : vector<2x128xf32> to vector<2x32xf32>
    %247 = arith.mulf %244, %192 : vector<2x32xf32>
    %248 = arith.mulf %243, %245 : vector<2x32xf32>
    %249 = arith.addf %247, %248 : vector<2x32xf32>
    %250 = math.tanh %249 : vector<2x32xf32>
    %251 = arith.mulf %246, %250 : vector<2x32xf32>
    %cst_78 = arith.constant dense<0.000000e+00> : vector<2x128xf32>
    %252 = tpu.matmul %251, %2, %cst_78 {dimension_numbers = #tpu.dot_dimension_numbers<[1], [0], [0], [1], [0, 0, 1, 1], [], []>} : vector<2x32xf32>, vector<32x128xf32>, vector<2x128xf32> -> vector<2x128xf32>
    %253 = arith.addf %252, %232 : vector<2x128xf32>
    %254 = arith.negf %253 : vector<2x128xf32>
    %255 = math.exp %254 : vector<2x128xf32>
    %cst_79 = arith.constant 1.000000e+00 : f32
    %256 = vector.broadcast %cst_79 : f32 to vector<2x128xf32>
    %257 = arith.addf %256, %255 : vector<2x128xf32>
    %258 = arith.divf %256, %257 : vector<2x128xf32>
    %259 = math.tanh %253 : vector<2x128xf32>
    %260 = vector.extract_strided_slice %258 {offsets = [0, 0], sizes = [2, 32], strides = [1, 1]} : vector<2x128xf32> to vector<2x32xf32>
    %261 = vector.extract_strided_slice %258 {offsets = [0, 32], sizes = [2, 32], strides = [1, 1]} : vector<2x128xf32> to vector<2x32xf32>
    %262 = vector.extract_strided_slice %259 {offsets = [0, 64], sizes = [2, 32], strides = [1, 1]} : vector<2x128xf32> to vector<2x32xf32>
    %263 = vector.extract_strided_slice %258 {offsets = [0, 96], sizes = [2, 32], strides = [1, 1]} : vector<2x128xf32> to vector<2x32xf32>
    %264 = arith.mulf %261, %209 : vector<2x32xf32>
    %265 = arith.mulf %260, %262 : vector<2x32xf32>
    %266 = arith.addf %264, %265 : vector<2x32xf32>
    %267 = math.tanh %266 : vector<2x32xf32>
    %268 = arith.mulf %263, %267 : vector<2x32xf32>
    %cst_80 = arith.constant dense<0.000000e+00> : vector<2x128xf32>
    %269 = tpu.matmul %268, %4, %cst_80 {dimension_numbers = #tpu.dot_dimension_numbers<[1], [0], [0], [1], [0, 0, 1, 1], [], []>} : vector<2x32xf32>, vector<32x128xf32>, vector<2x128xf32> -> vector<2x128xf32>
    %270 = arith.addf %269, %235 : vector<2x128xf32>
    %271 = arith.negf %270 : vector<2x128xf32>
    %272 = math.exp %271 : vector<2x128xf32>
    %cst_81 = arith.constant 1.000000e+00 : f32
    %273 = vector.broadcast %cst_81 : f32 to vector<2x128xf32>
    %274 = arith.addf %273, %272 : vector<2x128xf32>
    %275 = arith.divf %273, %274 : vector<2x128xf32>
    %276 = math.tanh %270 : vector<2x128xf32>
    %277 = vector.extract_strided_slice %275 {offsets = [0, 0], sizes = [2, 32], strides = [1, 1]} : vector<2x128xf32> to vector<2x32xf32>
    %278 = vector.extract_strided_slice %275 {offsets = [0, 32], sizes = [2, 32], strides = [1, 1]} : vector<2x128xf32> to vector<2x32xf32>
    %279 = vector.extract_strided_slice %276 {offsets = [0, 64], sizes = [2, 32], strides = [1, 1]} : vector<2x128xf32> to vector<2x32xf32>
    %280 = vector.extract_strided_slice %275 {offsets = [0, 96], sizes = [2, 32], strides = [1, 1]} : vector<2x128xf32> to vector<2x32xf32>
    %281 = arith.mulf %278, %226 : vector<2x32xf32>
    %282 = arith.mulf %277, %279 : vector<2x32xf32>
    %283 = arith.addf %281, %282 : vector<2x32xf32>
    %284 = math.tanh %283 : vector<2x32xf32>
    %285 = arith.mulf %280, %284 : vector<2x32xf32>
    %cst_82 = arith.constant dense<0.000000e+00> : vector<2x128xf32>
    %286 = tpu.matmul %251, %6, %cst_82 {dimension_numbers = #tpu.dot_dimension_numbers<[1], [0], [0], [1], [0, 0, 1, 1], [], []>} : vector<2x32xf32>, vector<32x128xf32>, vector<2x128xf32> -> vector<2x128xf32>
    %cst_83 = arith.constant dense<0.000000e+00> : vector<2x128xf32>
    %287 = tpu.matmul %268, %8, %cst_83 {dimension_numbers = #tpu.dot_dimension_numbers<[1], [0], [0], [1], [0, 0, 1, 1], [], []>} : vector<2x32xf32>, vector<32x128xf32>, vector<2x128xf32> -> vector<2x128xf32>
    %288 = vector.broadcast %14 : vector<1x128xf32> to vector<2x128xf32>
    %289 = arith.addf %287, %288 : vector<2x128xf32>
    %cst_84 = arith.constant dense<0.000000e+00> : vector<2x128xf32>
    %290 = tpu.matmul %285, %10, %cst_84 {dimension_numbers = #tpu.dot_dimension_numbers<[1], [0], [0], [1], [0, 0, 1, 1], [], []>} : vector<2x32xf32>, vector<32x128xf32>, vector<2x128xf32> -> vector<2x128xf32>
    %291 = vector.broadcast %16 : vector<1x128xf32> to vector<2x128xf32>
    %292 = arith.addf %290, %291 : vector<2x128xf32>
    %293 = arith.addf %41, %286 : vector<2x128xf32>
    %294 = arith.negf %293 : vector<2x128xf32>
    %295 = math.exp %294 : vector<2x128xf32>
    %cst_85 = arith.constant 1.000000e+00 : f32
    %296 = vector.broadcast %cst_85 : f32 to vector<2x128xf32>
    %297 = arith.addf %296, %295 : vector<2x128xf32>
    %298 = arith.divf %296, %297 : vector<2x128xf32>
    %299 = math.tanh %293 : vector<2x128xf32>
    %300 = vector.extract_strided_slice %298 {offsets = [0, 0], sizes = [2, 32], strides = [1, 1]} : vector<2x128xf32> to vector<2x32xf32>
    %301 = vector.extract_strided_slice %298 {offsets = [0, 32], sizes = [2, 32], strides = [1, 1]} : vector<2x128xf32> to vector<2x32xf32>
    %302 = vector.extract_strided_slice %299 {offsets = [0, 64], sizes = [2, 32], strides = [1, 1]} : vector<2x128xf32> to vector<2x32xf32>
    %303 = vector.extract_strided_slice %298 {offsets = [0, 96], sizes = [2, 32], strides = [1, 1]} : vector<2x128xf32> to vector<2x32xf32>
    %304 = arith.mulf %301, %249 : vector<2x32xf32>
    %305 = arith.mulf %300, %302 : vector<2x32xf32>
    %306 = arith.addf %304, %305 : vector<2x32xf32>
    %307 = math.tanh %306 : vector<2x32xf32>
    %308 = arith.mulf %303, %307 : vector<2x32xf32>
    %cst_86 = arith.constant dense<0.000000e+00> : vector<2x128xf32>
    %309 = tpu.matmul %308, %2, %cst_86 {dimension_numbers = #tpu.dot_dimension_numbers<[1], [0], [0], [1], [0, 0, 1, 1], [], []>} : vector<2x32xf32>, vector<32x128xf32>, vector<2x128xf32> -> vector<2x128xf32>
    %310 = arith.addf %309, %289 : vector<2x128xf32>
    %311 = arith.negf %310 : vector<2x128xf32>
    %312 = math.exp %311 : vector<2x128xf32>
    %cst_87 = arith.constant 1.000000e+00 : f32
    %313 = vector.broadcast %cst_87 : f32 to vector<2x128xf32>
    %314 = arith.addf %313, %312 : vector<2x128xf32>
    %315 = arith.divf %313, %314 : vector<2x128xf32>
    %316 = math.tanh %310 : vector<2x128xf32>
    %317 = vector.extract_strided_slice %315 {offsets = [0, 0], sizes = [2, 32], strides = [1, 1]} : vector<2x128xf32> to vector<2x32xf32>
    %318 = vector.extract_strided_slice %315 {offsets = [0, 32], sizes = [2, 32], strides = [1, 1]} : vector<2x128xf32> to vector<2x32xf32>
    %319 = vector.extract_strided_slice %316 {offsets = [0, 64], sizes = [2, 32], strides = [1, 1]} : vector<2x128xf32> to vector<2x32xf32>
    %320 = vector.extract_strided_slice %315 {offsets = [0, 96], sizes = [2, 32], strides = [1, 1]} : vector<2x128xf32> to vector<2x32xf32>
    %321 = arith.mulf %318, %266 : vector<2x32xf32>
    %322 = arith.mulf %317, %319 : vector<2x32xf32>
    %323 = arith.addf %321, %322 : vector<2x32xf32>
    %324 = math.tanh %323 : vector<2x32xf32>
    %325 = arith.mulf %320, %324 : vector<2x32xf32>
    %cst_88 = arith.constant dense<0.000000e+00> : vector<2x128xf32>
    %326 = tpu.matmul %325, %4, %cst_88 {dimension_numbers = #tpu.dot_dimension_numbers<[1], [0], [0], [1], [0, 0, 1, 1], [], []>} : vector<2x32xf32>, vector<32x128xf32>, vector<2x128xf32> -> vector<2x128xf32>
    %327 = arith.addf %326, %292 : vector<2x128xf32>
    %328 = arith.negf %327 : vector<2x128xf32>
    %329 = math.exp %328 : vector<2x128xf32>
    %cst_89 = arith.constant 1.000000e+00 : f32
    %330 = vector.broadcast %cst_89 : f32 to vector<2x128xf32>
    %331 = arith.addf %330, %329 : vector<2x128xf32>
    %332 = arith.divf %330, %331 : vector<2x128xf32>
    %333 = math.tanh %327 : vector<2x128xf32>
    %334 = vector.extract_strided_slice %332 {offsets = [0, 0], sizes = [2, 32], strides = [1, 1]} : vector<2x128xf32> to vector<2x32xf32>
    %335 = vector.extract_strided_slice %332 {offsets = [0, 32], sizes = [2, 32], strides = [1, 1]} : vector<2x128xf32> to vector<2x32xf32>
    %336 = vector.extract_strided_slice %333 {offsets = [0, 64], sizes = [2, 32], strides = [1, 1]} : vector<2x128xf32> to vector<2x32xf32>
    %337 = vector.extract_strided_slice %332 {offsets = [0, 96], sizes = [2, 32], strides = [1, 1]} : vector<2x128xf32> to vector<2x32xf32>
    %338 = arith.mulf %335, %283 : vector<2x32xf32>
    %339 = arith.mulf %334, %336 : vector<2x32xf32>
    %340 = arith.addf %338, %339 : vector<2x32xf32>
    %341 = math.tanh %340 : vector<2x32xf32>
    %342 = arith.mulf %337, %341 : vector<2x32xf32>
    %cst_90 = arith.constant dense<0.000000e+00> : vector<2x128xf32>
    %343 = tpu.matmul %308, %6, %cst_90 {dimension_numbers = #tpu.dot_dimension_numbers<[1], [0], [0], [1], [0, 0, 1, 1], [], []>} : vector<2x32xf32>, vector<32x128xf32>, vector<2x128xf32> -> vector<2x128xf32>
    %cst_91 = arith.constant dense<0.000000e+00> : vector<2x128xf32>
    %344 = tpu.matmul %325, %8, %cst_91 {dimension_numbers = #tpu.dot_dimension_numbers<[1], [0], [0], [1], [0, 0, 1, 1], [], []>} : vector<2x32xf32>, vector<32x128xf32>, vector<2x128xf32> -> vector<2x128xf32>
    %345 = vector.broadcast %14 : vector<1x128xf32> to vector<2x128xf32>
    %346 = arith.addf %344, %345 : vector<2x128xf32>
    %cst_92 = arith.constant dense<0.000000e+00> : vector<2x128xf32>
    %347 = tpu.matmul %342, %10, %cst_92 {dimension_numbers = #tpu.dot_dimension_numbers<[1], [0], [0], [1], [0, 0, 1, 1], [], []>} : vector<2x32xf32>, vector<32x128xf32>, vector<2x128xf32> -> vector<2x128xf32>
    %348 = vector.broadcast %16 : vector<1x128xf32> to vector<2x128xf32>
    %349 = arith.addf %347, %348 : vector<2x128xf32>
    %350 = arith.addf %46, %343 : vector<2x128xf32>
    %351 = arith.negf %350 : vector<2x128xf32>
    %352 = math.exp %351 : vector<2x128xf32>
    %cst_93 = arith.constant 1.000000e+00 : f32
    %353 = vector.broadcast %cst_93 : f32 to vector<2x128xf32>
    %354 = arith.addf %353, %352 : vector<2x128xf32>
    %355 = arith.divf %353, %354 : vector<2x128xf32>
    %356 = math.tanh %350 : vector<2x128xf32>
    %357 = vector.extract_strided_slice %355 {offsets = [0, 0], sizes = [2, 32], strides = [1, 1]} : vector<2x128xf32> to vector<2x32xf32>
    %358 = vector.extract_strided_slice %355 {offsets = [0, 32], sizes = [2, 32], strides = [1, 1]} : vector<2x128xf32> to vector<2x32xf32>
    %359 = vector.extract_strided_slice %356 {offsets = [0, 64], sizes = [2, 32], strides = [1, 1]} : vector<2x128xf32> to vector<2x32xf32>
    %360 = vector.extract_strided_slice %355 {offsets = [0, 96], sizes = [2, 32], strides = [1, 1]} : vector<2x128xf32> to vector<2x32xf32>
    %361 = arith.mulf %358, %306 : vector<2x32xf32>
    %362 = arith.mulf %357, %359 : vector<2x32xf32>
    %363 = arith.addf %361, %362 : vector<2x32xf32>
    %364 = math.tanh %363 : vector<2x32xf32>
    %365 = arith.mulf %360, %364 : vector<2x32xf32>
    %cst_94 = arith.constant dense<0.000000e+00> : vector<2x128xf32>
    %366 = tpu.matmul %365, %2, %cst_94 {dimension_numbers = #tpu.dot_dimension_numbers<[1], [0], [0], [1], [0, 0, 1, 1], [], []>} : vector<2x32xf32>, vector<32x128xf32>, vector<2x128xf32> -> vector<2x128xf32>
    %367 = arith.addf %366, %346 : vector<2x128xf32>
    %368 = arith.negf %367 : vector<2x128xf32>
    %369 = math.exp %368 : vector<2x128xf32>
    %cst_95 = arith.constant 1.000000e+00 : f32
    %370 = vector.broadcast %cst_95 : f32 to vector<2x128xf32>
    %371 = arith.addf %370, %369 : vector<2x128xf32>
    %372 = arith.divf %370, %371 : vector<2x128xf32>
    %373 = math.tanh %367 : vector<2x128xf32>
    %374 = vector.extract_strided_slice %372 {offsets = [0, 0], sizes = [2, 32], strides = [1, 1]} : vector<2x128xf32> to vector<2x32xf32>
    %375 = vector.extract_strided_slice %372 {offsets = [0, 32], sizes = [2, 32], strides = [1, 1]} : vector<2x128xf32> to vector<2x32xf32>
    %376 = vector.extract_strided_slice %373 {offsets = [0, 64], sizes = [2, 32], strides = [1, 1]} : vector<2x128xf32> to vector<2x32xf32>
    %377 = vector.extract_strided_slice %372 {offsets = [0, 96], sizes = [2, 32], strides = [1, 1]} : vector<2x128xf32> to vector<2x32xf32>
    %378 = arith.mulf %375, %323 : vector<2x32xf32>
    %379 = arith.mulf %374, %376 : vector<2x32xf32>
    %380 = arith.addf %378, %379 : vector<2x32xf32>
    %381 = math.tanh %380 : vector<2x32xf32>
    %382 = arith.mulf %377, %381 : vector<2x32xf32>
    %cst_96 = arith.constant dense<0.000000e+00> : vector<2x128xf32>
    %383 = tpu.matmul %382, %4, %cst_96 {dimension_numbers = #tpu.dot_dimension_numbers<[1], [0], [0], [1], [0, 0, 1, 1], [], []>} : vector<2x32xf32>, vector<32x128xf32>, vector<2x128xf32> -> vector<2x128xf32>
    %384 = arith.addf %383, %349 : vector<2x128xf32>
    %385 = arith.negf %384 : vector<2x128xf32>
    %386 = math.exp %385 : vector<2x128xf32>
    %cst_97 = arith.constant 1.000000e+00 : f32
    %387 = vector.broadcast %cst_97 : f32 to vector<2x128xf32>
    %388 = arith.addf %387, %386 : vector<2x128xf32>
    %389 = arith.divf %387, %388 : vector<2x128xf32>
    %390 = math.tanh %384 : vector<2x128xf32>
    %391 = vector.extract_strided_slice %389 {offsets = [0, 0], sizes = [2, 32], strides = [1, 1]} : vector<2x128xf32> to vector<2x32xf32>
    %392 = vector.extract_strided_slice %389 {offsets = [0, 32], sizes = [2, 32], strides = [1, 1]} : vector<2x128xf32> to vector<2x32xf32>
    %393 = vector.extract_strided_slice %390 {offsets = [0, 64], sizes = [2, 32], strides = [1, 1]} : vector<2x128xf32> to vector<2x32xf32>
    %394 = vector.extract_strided_slice %389 {offsets = [0, 96], sizes = [2, 32], strides = [1, 1]} : vector<2x128xf32> to vector<2x32xf32>
    %395 = arith.mulf %392, %340 : vector<2x32xf32>
    %396 = arith.mulf %391, %393 : vector<2x32xf32>
    %397 = arith.addf %395, %396 : vector<2x32xf32>
    %398 = math.tanh %397 : vector<2x32xf32>
    %399 = arith.mulf %394, %398 : vector<2x32xf32>
    %cst_98 = arith.constant dense<0.000000e+00> : vector<2x128xf32>
    %400 = tpu.matmul %365, %6, %cst_98 {dimension_numbers = #tpu.dot_dimension_numbers<[1], [0], [0], [1], [0, 0, 1, 1], [], []>} : vector<2x32xf32>, vector<32x128xf32>, vector<2x128xf32> -> vector<2x128xf32>
    %cst_99 = arith.constant dense<0.000000e+00> : vector<2x128xf32>
    %401 = tpu.matmul %382, %8, %cst_99 {dimension_numbers = #tpu.dot_dimension_numbers<[1], [0], [0], [1], [0, 0, 1, 1], [], []>} : vector<2x32xf32>, vector<32x128xf32>, vector<2x128xf32> -> vector<2x128xf32>
    %402 = vector.broadcast %14 : vector<1x128xf32> to vector<2x128xf32>
    %403 = arith.addf %401, %402 : vector<2x128xf32>
    %cst_100 = arith.constant dense<0.000000e+00> : vector<2x128xf32>
    %404 = tpu.matmul %399, %10, %cst_100 {dimension_numbers = #tpu.dot_dimension_numbers<[1], [0], [0], [1], [0, 0, 1, 1], [], []>} : vector<2x32xf32>, vector<32x128xf32>, vector<2x128xf32> -> vector<2x128xf32>
    %405 = vector.broadcast %16 : vector<1x128xf32> to vector<2x128xf32>
    %406 = arith.addf %404, %405 : vector<2x128xf32>
    %407 = arith.addf %51, %400 : vector<2x128xf32>
    %408 = arith.negf %407 : vector<2x128xf32>
    %409 = math.exp %408 : vector<2x128xf32>
    %cst_101 = arith.constant 1.000000e+00 : f32
    %410 = vector.broadcast %cst_101 : f32 to vector<2x128xf32>
    %411 = arith.addf %410, %409 : vector<2x128xf32>
    %412 = arith.divf %410, %411 : vector<2x128xf32>
    %413 = math.tanh %407 : vector<2x128xf32>
    %414 = vector.extract_strided_slice %412 {offsets = [0, 0], sizes = [2, 32], strides = [1, 1]} : vector<2x128xf32> to vector<2x32xf32>
    %415 = vector.extract_strided_slice %412 {offsets = [0, 32], sizes = [2, 32], strides = [1, 1]} : vector<2x128xf32> to vector<2x32xf32>
    %416 = vector.extract_strided_slice %413 {offsets = [0, 64], sizes = [2, 32], strides = [1, 1]} : vector<2x128xf32> to vector<2x32xf32>
    %417 = vector.extract_strided_slice %412 {offsets = [0, 96], sizes = [2, 32], strides = [1, 1]} : vector<2x128xf32> to vector<2x32xf32>
    %418 = arith.mulf %415, %363 : vector<2x32xf32>
    %419 = arith.mulf %414, %416 : vector<2x32xf32>
    %420 = arith.addf %418, %419 : vector<2x32xf32>
    %421 = math.tanh %420 : vector<2x32xf32>
    %422 = arith.mulf %417, %421 : vector<2x32xf32>
    %cst_102 = arith.constant dense<0.000000e+00> : vector<2x128xf32>
    %423 = tpu.matmul %422, %2, %cst_102 {dimension_numbers = #tpu.dot_dimension_numbers<[1], [0], [0], [1], [0, 0, 1, 1], [], []>} : vector<2x32xf32>, vector<32x128xf32>, vector<2x128xf32> -> vector<2x128xf32>
    %424 = arith.addf %423, %403 : vector<2x128xf32>
    %425 = arith.negf %424 : vector<2x128xf32>
    %426 = math.exp %425 : vector<2x128xf32>
    %cst_103 = arith.constant 1.000000e+00 : f32
    %427 = vector.broadcast %cst_103 : f32 to vector<2x128xf32>
    %428 = arith.addf %427, %426 : vector<2x128xf32>
    %429 = arith.divf %427, %428 : vector<2x128xf32>
    %430 = math.tanh %424 : vector<2x128xf32>
    %431 = vector.extract_strided_slice %429 {offsets = [0, 0], sizes = [2, 32], strides = [1, 1]} : vector<2x128xf32> to vector<2x32xf32>
    %432 = vector.extract_strided_slice %429 {offsets = [0, 32], sizes = [2, 32], strides = [1, 1]} : vector<2x128xf32> to vector<2x32xf32>
    %433 = vector.extract_strided_slice %430 {offsets = [0, 64], sizes = [2, 32], strides = [1, 1]} : vector<2x128xf32> to vector<2x32xf32>
    %434 = vector.extract_strided_slice %429 {offsets = [0, 96], sizes = [2, 32], strides = [1, 1]} : vector<2x128xf32> to vector<2x32xf32>
    %435 = arith.mulf %432, %380 : vector<2x32xf32>
    %436 = arith.mulf %431, %433 : vector<2x32xf32>
    %437 = arith.addf %435, %436 : vector<2x32xf32>
    %438 = math.tanh %437 : vector<2x32xf32>
    %439 = arith.mulf %434, %438 : vector<2x32xf32>
    %cst_104 = arith.constant dense<0.000000e+00> : vector<2x128xf32>
    %440 = tpu.matmul %439, %4, %cst_104 {dimension_numbers = #tpu.dot_dimension_numbers<[1], [0], [0], [1], [0, 0, 1, 1], [], []>} : vector<2x32xf32>, vector<32x128xf32>, vector<2x128xf32> -> vector<2x128xf32>
    %441 = arith.addf %440, %406 : vector<2x128xf32>
    %442 = arith.negf %441 : vector<2x128xf32>
    %443 = math.exp %442 : vector<2x128xf32>
    %cst_105 = arith.constant 1.000000e+00 : f32
    %444 = vector.broadcast %cst_105 : f32 to vector<2x128xf32>
    %445 = arith.addf %444, %443 : vector<2x128xf32>
    %446 = arith.divf %444, %445 : vector<2x128xf32>
    %447 = math.tanh %441 : vector<2x128xf32>
    %448 = vector.extract_strided_slice %446 {offsets = [0, 0], sizes = [2, 32], strides = [1, 1]} : vector<2x128xf32> to vector<2x32xf32>
    %449 = vector.extract_strided_slice %446 {offsets = [0, 32], sizes = [2, 32], strides = [1, 1]} : vector<2x128xf32> to vector<2x32xf32>
    %450 = vector.extract_strided_slice %447 {offsets = [0, 64], sizes = [2, 32], strides = [1, 1]} : vector<2x128xf32> to vector<2x32xf32>
    %451 = vector.extract_strided_slice %446 {offsets = [0, 96], sizes = [2, 32], strides = [1, 1]} : vector<2x128xf32> to vector<2x32xf32>
    %452 = arith.mulf %449, %397 : vector<2x32xf32>
    %453 = arith.mulf %448, %450 : vector<2x32xf32>
    %454 = arith.addf %452, %453 : vector<2x32xf32>
    %455 = math.tanh %454 : vector<2x32xf32>
    %456 = arith.mulf %451, %455 : vector<2x32xf32>
    %cst_106 = arith.constant dense<0.000000e+00> : vector<2x128xf32>
    %457 = tpu.matmul %422, %6, %cst_106 {dimension_numbers = #tpu.dot_dimension_numbers<[1], [0], [0], [1], [0, 0, 1, 1], [], []>} : vector<2x32xf32>, vector<32x128xf32>, vector<2x128xf32> -> vector<2x128xf32>
    %cst_107 = arith.constant dense<0.000000e+00> : vector<2x128xf32>
    %458 = tpu.matmul %439, %8, %cst_107 {dimension_numbers = #tpu.dot_dimension_numbers<[1], [0], [0], [1], [0, 0, 1, 1], [], []>} : vector<2x32xf32>, vector<32x128xf32>, vector<2x128xf32> -> vector<2x128xf32>
    %459 = vector.broadcast %14 : vector<1x128xf32> to vector<2x128xf32>
    %460 = arith.addf %458, %459 : vector<2x128xf32>
    %cst_108 = arith.constant dense<0.000000e+00> : vector<2x128xf32>
    %461 = tpu.matmul %456, %10, %cst_108 {dimension_numbers = #tpu.dot_dimension_numbers<[1], [0], [0], [1], [0, 0, 1, 1], [], []>} : vector<2x32xf32>, vector<32x128xf32>, vector<2x128xf32> -> vector<2x128xf32>
    %462 = vector.broadcast %16 : vector<1x128xf32> to vector<2x128xf32>
    %463 = arith.addf %461, %462 : vector<2x128xf32>
    %464 = arith.addf %56, %457 : vector<2x128xf32>
    %465 = arith.negf %464 : vector<2x128xf32>
    %466 = math.exp %465 : vector<2x128xf32>
    %cst_109 = arith.constant 1.000000e+00 : f32
    %467 = vector.broadcast %cst_109 : f32 to vector<2x128xf32>
    %468 = arith.addf %467, %466 : vector<2x128xf32>
    %469 = arith.divf %467, %468 : vector<2x128xf32>
    %470 = math.tanh %464 : vector<2x128xf32>
    %471 = vector.extract_strided_slice %469 {offsets = [0, 0], sizes = [2, 32], strides = [1, 1]} : vector<2x128xf32> to vector<2x32xf32>
    %472 = vector.extract_strided_slice %469 {offsets = [0, 32], sizes = [2, 32], strides = [1, 1]} : vector<2x128xf32> to vector<2x32xf32>
    %473 = vector.extract_strided_slice %470 {offsets = [0, 64], sizes = [2, 32], strides = [1, 1]} : vector<2x128xf32> to vector<2x32xf32>
    %474 = vector.extract_strided_slice %469 {offsets = [0, 96], sizes = [2, 32], strides = [1, 1]} : vector<2x128xf32> to vector<2x32xf32>
    %475 = arith.mulf %472, %420 : vector<2x32xf32>
    %476 = arith.mulf %471, %473 : vector<2x32xf32>
    %477 = arith.addf %475, %476 : vector<2x32xf32>
    %478 = math.tanh %477 : vector<2x32xf32>
    %479 = arith.mulf %474, %478 : vector<2x32xf32>
    %cst_110 = arith.constant dense<0.000000e+00> : vector<2x128xf32>
    %480 = tpu.matmul %479, %2, %cst_110 {dimension_numbers = #tpu.dot_dimension_numbers<[1], [0], [0], [1], [0, 0, 1, 1], [], []>} : vector<2x32xf32>, vector<32x128xf32>, vector<2x128xf32> -> vector<2x128xf32>
    %481 = arith.addf %480, %460 : vector<2x128xf32>
    %482 = arith.negf %481 : vector<2x128xf32>
    %483 = math.exp %482 : vector<2x128xf32>
    %cst_111 = arith.constant 1.000000e+00 : f32
    %484 = vector.broadcast %cst_111 : f32 to vector<2x128xf32>
    %485 = arith.addf %484, %483 : vector<2x128xf32>
    %486 = arith.divf %484, %485 : vector<2x128xf32>
    %487 = math.tanh %481 : vector<2x128xf32>
    %488 = vector.extract_strided_slice %486 {offsets = [0, 0], sizes = [2, 32], strides = [1, 1]} : vector<2x128xf32> to vector<2x32xf32>
    %489 = vector.extract_strided_slice %486 {offsets = [0, 32], sizes = [2, 32], strides = [1, 1]} : vector<2x128xf32> to vector<2x32xf32>
    %490 = vector.extract_strided_slice %487 {offsets = [0, 64], sizes = [2, 32], strides = [1, 1]} : vector<2x128xf32> to vector<2x32xf32>
    %491 = vector.extract_strided_slice %486 {offsets = [0, 96], sizes = [2, 32], strides = [1, 1]} : vector<2x128xf32> to vector<2x32xf32>
    %492 = arith.mulf %489, %437 : vector<2x32xf32>
    %493 = arith.mulf %488, %490 : vector<2x32xf32>
    %494 = arith.addf %492, %493 : vector<2x32xf32>
    %495 = math.tanh %494 : vector<2x32xf32>
    %496 = arith.mulf %491, %495 : vector<2x32xf32>
    %cst_112 = arith.constant dense<0.000000e+00> : vector<2x128xf32>
    %497 = tpu.matmul %496, %4, %cst_112 {dimension_numbers = #tpu.dot_dimension_numbers<[1], [0], [0], [1], [0, 0, 1, 1], [], []>} : vector<2x32xf32>, vector<32x128xf32>, vector<2x128xf32> -> vector<2x128xf32>
    %498 = arith.addf %497, %463 : vector<2x128xf32>
    %499 = arith.negf %498 : vector<2x128xf32>
    %500 = math.exp %499 : vector<2x128xf32>
    %cst_113 = arith.constant 1.000000e+00 : f32
    %501 = vector.broadcast %cst_113 : f32 to vector<2x128xf32>
    %502 = arith.addf %501, %500 : vector<2x128xf32>
    %503 = arith.divf %501, %502 : vector<2x128xf32>
    %504 = math.tanh %498 : vector<2x128xf32>
    %505 = vector.extract_strided_slice %503 {offsets = [0, 0], sizes = [2, 32], strides = [1, 1]} : vector<2x128xf32> to vector<2x32xf32>
    %506 = vector.extract_strided_slice %503 {offsets = [0, 32], sizes = [2, 32], strides = [1, 1]} : vector<2x128xf32> to vector<2x32xf32>
    %507 = vector.extract_strided_slice %504 {offsets = [0, 64], sizes = [2, 32], strides = [1, 1]} : vector<2x128xf32> to vector<2x32xf32>
    %508 = vector.extract_strided_slice %503 {offsets = [0, 96], sizes = [2, 32], strides = [1, 1]} : vector<2x128xf32> to vector<2x32xf32>
    %509 = arith.mulf %506, %454 : vector<2x32xf32>
    %510 = arith.mulf %505, %507 : vector<2x32xf32>
    %511 = arith.addf %509, %510 : vector<2x32xf32>
    %512 = math.tanh %511 : vector<2x32xf32>
    %513 = arith.mulf %508, %512 : vector<2x32xf32>
    %c0_114 = arith.constant 0 : index
    %c0_115 = arith.constant 0 : index
    %514 = vector.load %arg5[%c0_114, %c0_115] : memref<1x32xf32, #tpu.memory_space<vmem>>, vector<1x32xf32>
    %515 = vector.broadcast %514 : vector<1x32xf32> to vector<2x32xf32>
    %516 = arith.mulf %513, %515 : vector<2x32xf32>
    %cst_116 = arith.constant dense<0.000000e+00> : vector<2xf32>
    %517 = vector.multi_reduction <add>, %516, %cst_116 [1] : vector<2x32xf32> to vector<2xf32>
    %518 = vector.shape_cast %517 : vector<2xf32> to vector<2x1xf32>
    %c0_117 = arith.constant 0 : index
    %c0_118 = arith.constant 0 : index
    %519 = vector.load %arg6[%c0_117, %c0_118] : memref<1x1xf32, #tpu.memory_space<vmem>>, vector<1x1xf32>
    %520 = vector.broadcast %519 : vector<1x1xf32> to vector<2x1xf32>
    %521 = arith.addf %518, %520 : vector<2x1xf32>
    %c0_119 = arith.constant 0 : index
    %c0_120 = arith.constant 0 : index
    %522 = vector.load %arg7[%c0_119, %c0_120] : memref<2x1xf32, #tpu.memory_space<vmem>>, vector<2x1xf32>
    tpu.vector_store %arg7[%c0_119, %c0_120], %521 {strides = array<i32>} : memref<2x1xf32, #tpu.memory_space<vmem>>, vector<2x1xf32>,
    return
  }
}

</mosaic_0001>

<llo_original>
// kernel: my_model_forward.1
$region0: #{my_model_forward.1}
  #allocation0 [shape = 'u32[]', space=smem, size = 0x4, offset = 0x4, fixed_abs, tag = 'smem constant byte address 0x4 - core index']
  #allocation1 [shape = 'u32[144,128]{1,0:T(1,128)}', space=vmem, size = 0x12000, scoped, tag = 'internal scratch']
  #allocation2 [shape = 'f32[1,1]{1,0:T(1,128)S(1)}', space=vmem, size = 0x200, scoped, tag = 'scoped memory for my_model_forward.1']
  %s0 = inlined_call_operand.vmem [shape: f32[8,2,8], index: 0, kind: input, shape index: {}]
  %s1 = inlined_call_operand.vmem [shape: f32[8,128], index: 1, kind: input, shape index: {}]
  %s2 = inlined_call_operand.hbm [shape: f32[2,32,128], index: 2, kind: input, shape index: {}]
  %s3 = inlined_call_operand.hbm [shape: f32[3,32,128], index: 3, kind: input, shape index: {}]
  %s4 = inlined_call_operand.vmem [shape: f32[3,1,128], index: 4, kind: input, shape index: {}]
  %s5 = inlined_call_operand.vmem [shape: f32[1,32], index: 5, kind: input, shape index: {}]
  %s6 = inlined_call_operand.<no memory space> [shape: f32[1,1], index: 6, kind: input, shape index: {}]
  %s7 = inlined_call_operand.vmem [shape: f32[2,1], index: 7, kind: output, shape index: {}]
  %s8 = sld [smem:[#allocation0]]
  $region46: #{my_model_forward.1} parent=0
    _
  %s10 = ssub.s32 1, %s8
  %s11 = scalar_select 0, %s10, %s8
  %v12 = vstv %s6
  %13 = vst [vmem:[#allocation2] sm:$0x1] %v12
  $region1: #{my_model_forward.1} parent=0
    #allocation3 [shape = 'u8[32768]{0}', space=vmem, size = 0x8000, scoped, tag = 'input window, operand 2, single buffered']
    #allocation4 [shape = 's32[1]{0}', space=sflag, size = 0x4, scoped, tag = 'scoped memory for my_model_forward.1']
    #allocation5 [shape = 'u8[49152]{0}', space=vmem, size = 0xc000, scoped, tag = 'input window, operand 3, single buffered']
    #allocation6 [shape = 's32[1]{0}', space=sflag, size = 0x4, scoped, tag = 'scoped memory for my_model_forward.1']
    %14 = vsyncpa [#allocation4], 0
    %15 = vsyncpa [#allocation6], 0
    // Predicated region
    $region2: #{my_model_forward.1} parent=1 // pred_check
      _
    $region3: #{my_model_forward.1} parent=1 // pred_check_branch
      %17 = sbr.rel (0) target = $region5
    $region4: #{my_model_forward.1} parent=1 // pred_region
      _
    $region5: #{my_model_forward.1} parent=1 // pred_fallthru
      _
    // Predicated region
    $region6: #{my_model_forward.1} parent=1 // pred_check
      _
    $region7: #{my_model_forward.1} parent=1 // pred_check_branch
      %19 = sbr.rel (0) target = $region9
    $region8: #{my_model_forward.1} parent=1 // pred_region
      _
    $region9: #{my_model_forward.1} parent=1 // pred_fallthru
      _
    // Predicated region
    $region10: #{my_model_forward.1} parent=1 // pred_check
      _
    $region11: #{my_model_forward.1} parent=1 // pred_check_branch
      %21 = sbr.rel (0) target = $region13
    $region12: #{my_model_forward.1} parent=1 // pred_region
      %s23 = ssub.s32 1024, 1024
      %24 = vsyncadd [#allocation4], %s23
      %s25 = sshll.u32 [#allocation3], 4
      %s26 = int_to_ptr.vmem [resolvable:$true] %s25
      %31 = dma.hbm_to_vmem [thread:$0]  %s2, 1024, %s26, [#allocation4], 128, 128, 8
    $region13: #{my_model_forward.1} parent=1 // pred_fallthru
      _
    // Predicated region
    $region14: #{my_model_forward.1} parent=1 // pred_check
      _
    $region15: #{my_model_forward.1} parent=1 // pred_check_branch
      %33 = sbr.rel (0) target = $region17
    $region16: #{my_model_forward.1} parent=1 // pred_region
      %s35 = ssub.s32 1536, 1536
      %36 = vsyncadd [#allocation6], %s35
      %s37 = sshll.u32 [#allocation5], 4
      %s38 = int_to_ptr.vmem [resolvable:$true] %s37
      %43 = dma.hbm_to_vmem [thread:$0]  %s3, 1536, %s38, [#allocation6], 128, 128, 8
    $region17: #{my_model_forward.1} parent=1 // pred_fallthru
      _
    // Predicated region
    $region18: #{my_model_forward.1} parent=1 // pred_check
      _
    $region19: #{my_model_forward.1} parent=1 // pred_check_branch
      %45 = sbr.rel (0) target = $region21
    $region20: #{my_model_forward.1} parent=1 // pred_region
      _
    $region21: #{my_model_forward.1} parent=1 // pred_fallthru
      _
    // Predicated region
    $region22: #{my_model_forward.1} parent=1 // pred_check
      _
    $region23: #{my_model_forward.1} parent=1 // pred_check_branch
      %47 = sbr.rel (0) target = $region25
    $region24: #{my_model_forward.1} parent=1 // pred_region
      _
    $region25: #{my_model_forward.1} parent=1 // pred_fallthru
      _
    // Predicated region
    $region26: #{my_model_forward.1} parent=1 // pred_check
      _
    $region27: #{my_model_forward.1} parent=1 // pred_check_branch
      %49 = sbr.rel (0) target = $region29
    $region28: #{my_model_forward.1} parent=1 // pred_region
      _
    $region29: #{my_model_forward.1} parent=1 // pred_fallthru
      _
    // Predicated region
    $region30: #{my_model_forward.1} parent=1 // pred_check
      _
    $region31: #{my_model_forward.1} parent=1 // pred_check_branch
      %51 = sbr.rel (0) target = $region33
    $region32: #{my_model_forward.1} parent=1 // pred_region
      %52 = dma.done [#allocation4], 1024
    $region33: #{my_model_forward.1} parent=1 // pred_fallthru
      _
    // Predicated region
    $region34: #{my_model_forward.1} parent=1 // pred_check
      _
    $region35: #{my_model_forward.1} parent=1 // pred_check_branch
      %54 = sbr.rel (0) target = $region37
    $region36: #{my_model_forward.1} parent=1 // pred_region
      %55 = dma.done [#allocation6], 1536
    $region37: #{my_model_forward.1} parent=1 // pred_fallthru
      _
    %v56 = vld [vmem:[%s1] sm:$0xff]
    %v57 = vld [vmem:[#allocation3] sm:$0xff]
    %v58 = vld [vmem:[#allocation3 + $0x8] sm:$0xff]
    %v59 = vld [vmem:[#allocation3 + $0x10] sm:$0xff]
    %v60 = vld [vmem:[#allocation3 + $0x18] sm:$0xff]
    %s61 = scalar_lea.vmem [#allocation3], 32
    %v62 = vld [vmem:[%s61] sm:$0xff]
    %v63 = vld [vmem:[%s61 + $0x8] sm:$0xff]
    %v64 = vld [vmem:[%s61 + $0x10] sm:$0xff]
    %v65 = vld [vmem:[%s61 + $0x18] sm:$0xff]
    %v66 = vld [vmem:[#allocation5] sm:$0xff]
    %v67 = vld [vmem:[#allocation5 + $0x8] sm:$0xff]
    %v68 = vld [vmem:[#allocation5 + $0x10] sm:$0xff]
    %v69 = vld [vmem:[#allocation5 + $0x18] sm:$0xff]
    %s70 = scalar_lea.vmem [#allocation5], 32
    %v71 = vld [vmem:[%s70] sm:$0xff]
    %v72 = vld [vmem:[%s70 + $0x8] sm:$0xff]
    %v73 = vld [vmem:[%s70 + $0x10] sm:$0xff]
    %v74 = vld [vmem:[%s70 + $0x18] sm:$0xff]
    %s75 = scalar_lea.vmem [#allocation5], 64
    %v76 = vld [vmem:[%s75] sm:$0xff]
    %v77 = vld [vmem:[%s75 + $0x8] sm:$0xff]
    %v78 = vld [vmem:[%s75 + $0x10] sm:$0xff]
    %v79 = vld [vmem:[%s75 + $0x18] sm:$0xff]
    %v80 = vld [vmem:[%s4] sm:$0x1]
    %s81 = scalar_lea.vmem %s4, 1
    %v82 = vld [vmem:[%s81] sm:$0x1]
    %s83 = scalar_lea.vmem %s4, 2
    %v84 = vld [vmem:[%s83] sm:$0x1]
    %v85 = vld [vmem:[%s0] sm:$0x3]
    %v87 = vlaneseq
    %v88 = vshrl.u32 %v87, 7
    %v89 = vsub.s32 0, %v88
    %v90 = vrot.slane %v80, %v89
    %vm92 = vcmask 64512
    %v94 = vsel %vm92, %v85, 0
    %96 = vmatprep.subr.mxu0 0.0
    %97 = vmatpush1.msra.mxu0 0.0
    %98 = vmatprep.subr.mxu0 0.0
    %99 = vmatpush1.msra.mxu0 0.0
    %100 = vmatprep.subr.mxu0 0.0
    %101 = vmatpush1.msra.mxu0 0.0
    %102 = vmatprep.subr.mxu0 0.0
    %103 = vmatpush1.msra.mxu0 0.0
    %104 = vmatprep.subr.mxu0 0.0
    %105 = vmatpush1.msra.mxu0 0.0
    %106 = vmatprep.subr.mxu0 0.0
    %107 = vmatpush1.msra.mxu0 0.0
    %108 = vmatprep.subr.mxu0 0.0
    %109 = vmatpush1.msra.mxu0 0.0
    %110 = vmatprep.subr.mxu0 0.0
    %111 = vmatpush1.msra.mxu0 0.0
    %112 = vmatprep.subr.mxu0 0.0
    %113 = vmatpush1.msra.mxu0 0.0
    %114 = vmatprep.subr.mxu0 0.0
    %115 = vmatpush1.msra.mxu0 0.0
    %116 = vmatprep.subr.mxu0 0.0
    %117 = vmatpush1.msra.mxu0 0.0
    %118 = vmatprep.subr.mxu0 0.0
    %119 = vmatpush1.msra.mxu0 0.0
    %120 = vmatprep.subr.mxu0 0.0
    %121 = vmatpush1.msra.mxu0 0.0
    %122 = vmatprep.subr.mxu0 0.0
    %123 = vmatpush1.msra.mxu0 0.0
    %124 = vmatprep.subr.mxu0 0.0
    %125 = vmatpush1.msra.mxu0 0.0
    %126 = vmatprep.subr.mxu0 0.0
    %127 = vmatpush1.msra.mxu0 %v56
    %128 = vmatprep.subr.mxu0 0.0
    %129 = vmatpush2.msra.mxu0 0.0
    %130 = vmatprep.subr.mxu0 0.0
    %131 = vmatpush2.msra.mxu0 0.0
    %132 = vmatprep.subr.mxu0 0.0
    %133 = vmatpush2.msra.mxu0 0.0
    %134 = vmatprep.subr.mxu0 0.0
    %135 = vmatpush2.msra.mxu0 0.0
    %136 = vmatprep.subr.mxu0 0.0
    %137 = vmatpush2.msra.mxu0 0.0
    %138 = vmatprep.subr.mxu0 0.0
    %139 = vmatpush2.msra.mxu0 0.0
    %140 = vmatprep.subr.mxu0 0.0
    %141 = vmatpush2.msra.mxu0 0.0
    %142 = vmatprep.subr.mxu0 0.0
    %143 = vmatpush2.msra.mxu0 0.0
    %144 = vmatprep.subr.mxu0 0.0
    %145 = vmatpush2.msra.mxu0 0.0
    %146 = vmatprep.subr.mxu0 0.0
    %147 = vmatpush2.msra.mxu0 0.0
    %148 = vmatprep.subr.mxu0 0.0
    %149 = vmatpush2.msra.mxu0 0.0
    %150 = vmatprep.subr.mxu0 0.0
    %151 = vmatpush2.msra.mxu0 0.0
    %152 = vmatprep.subr.mxu0 0.0
    %153 = vmatpush2.msra.mxu0 0.0
    %154 = vmatprep.subr.mxu0 0.0
    %155 = vmatpush2.msra.mxu0 0.0
    %156 = vmatprep.subr.mxu0 0.0
    %157 = vmatpush2.msra.mxu0 0.0
    %158 = vmatprep.subr.mxu0 0.0
    %159 = vmatpush2.msra.mxu0 0.0
    %160 = vmatprep.mubr.f32.mxu0 0.0
    %161 = vmatmul.mubr.f32.gmra.mxu0 %v94
    %v162 = vpop.f32.mrf.mxu0
    %v163 = vadd.f32 %v90, %v162
    %v164 = vpop.f32.mrf.mxu0
    %165 = vdwg.mxu0
    %s166 = scalar_lea.vmem %s0, 2
    %v167 = vld [vmem:[%s166] sm:$0x3]
    %v169 = vsel %vm92, %v167, 0
    %171 = vmatprep.subr.mxu0 0.0
    %172 = vmatpush1.msra.mxu0 0.0
    %173 = vmatprep.subr.mxu0 0.0
    %174 = vmatpush1.msra.mxu0 0.0
    %175 = vmatprep.subr.mxu0 0.0
    %176 = vmatpush1.msra.mxu0 0.0
    %177 = vmatprep.subr.mxu0 0.0
    %178 = vmatpush1.msra.mxu0 0.0
    %179 = vmatprep.subr.mxu0 0.0
    %180 = vmatpush1.msra.mxu0 0.0
    %181 = vmatprep.subr.mxu0 0.0
    %182 = vmatpush1.msra.mxu0 0.0
    %183 = vmatprep.subr.mxu0 0.0
    %184 = vmatpush1.msra.mxu0 0.0
    %185 = vmatprep.subr.mxu0 0.0
    %186 = vmatpush1.msra.mxu0 0.0
    %187 = vmatprep.subr.mxu0 0.0
    %188 = vmatpush1.msra.mxu0 0.0
    %189 = vmatprep.subr.mxu0 0.0
    %190 = vmatpush1.msra.mxu0 0.0
    %191 = vmatprep.subr.mxu0 0.0
    %192 = vmatpush1.msra.mxu0 0.0
    %193 = vmatprep.subr.mxu0 0.0
    %194 = vmatpush1.msra.mxu0 0.0
    %195 = vmatprep.subr.mxu0 0.0
    %196 = vmatpush1.msra.mxu0 0.0
    %197 = vmatprep.subr.mxu0 0.0
    %198 = vmatpush1.msra.mxu0 0.0
    %199 = vmatprep.subr.mxu0 0.0
    %200 = vmatpush1.msra.mxu0 0.0
    %201 = vmatprep.subr.mxu0 0.0
    %202 = vmatpush1.msra.mxu0 %v56
    %203 = vmatprep.subr.mxu0 0.0
    %204 = vmatpush2.msra.mxu0 0.0
    %205 = vmatprep.subr.mxu0 0.0
    %206 = vmatpush2.msra.mxu0 0.0
    %207 = vmatprep.subr.mxu0 0.0
    %208 = vmatpush2.msra.mxu0 0.0
    %209 = vmatprep.subr.mxu0 0.0
    %210 = vmatpush2.msra.mxu0 0.0
    %211 = vmatprep.subr.mxu0 0.0
    %212 = vmatpush2.msra.mxu0 0.0
    %213 = vmatprep.subr.mxu0 0.0
    %214 = vmatpush2.msra.mxu0 0.0
    %215 = vmatprep.subr.mxu0 0.0
    %216 = vmatpush2.msra.mxu0 0.0
    %217 = vmatprep.subr.mxu0 0.0
    %218 = vmatpush2.msra.mxu0 0.0
    %219 = vmatprep.subr.mxu0 0.0
    %220 = vmatpush2.msra.mxu0 0.0
    %221 = vmatprep.subr.mxu0 0.0
    %222 = vmatpush2.msra.mxu0 0.0
    %223 = vmatprep.subr.mxu0 0.0
    %224 = vmatpush2.msra.mxu0 0.0
    %225 = vmatprep.subr.mxu0 0.0
    %226 = vmatpush2.msra.mxu0 0.0
    %227 = vmatprep.subr.mxu0 0.0
    %228 = vmatpush2.msra.mxu0 0.0
    %229 = vmatprep.subr.mxu0 0.0
    %230 = vmatpush2.msra.mxu0 0.0
    %231 = vmatprep.subr.mxu0 0.0
    %232 = vmatpush2.msra.mxu0 0.0
    %233 = vmatprep.subr.mxu0 0.0
    %234 = vmatpush2.msra.mxu0 0.0
    %235 = vmatprep.mubr.f32.mxu0 0.0
    %236 = vmatmul.mubr.f32.gmra.mxu0 %v169
    %v237 = vpop.f32.mrf.mxu0
    %v238 = vadd.f32 %v90, %v237
    %v239 = vpop.f32.mrf.mxu0
    %240 = vdwg.mxu0
    %s241 = scalar_lea.vmem %s0, 4
    %v242 = vld [vmem:[%s241] sm:$0x3]
    %v244 = vsel %vm92, %v242, 0
    %246 = vmatprep.subr.mxu0 0.0
    %247 = vmatpush1.msra.mxu0 0.0
    %248 = vmatprep.subr.mxu0 0.0
    %249 = vmatpush1.msra.mxu0 0.0
    %250 = vmatprep.subr.mxu0 0.0
    %251 = vmatpush1.msra.mxu0 0.0
    %252 = vmatprep.subr.mxu0 0.0
    %253 = vmatpush1.msra.mxu0 0.0
    %254 = vmatprep.subr.mxu0 0.0
    %255 = vmatpush1.msra.mxu0 0.0
    %256 = vmatprep.subr.mxu0 0.0
    %257 = vmatpush1.msra.mxu0 0.0
    %258 = vmatprep.subr.mxu0 0.0
    %259 = vmatpush1.msra.mxu0 0.0
    %260 = vmatprep.subr.mxu0 0.0
    %261 = vmatpush1.msra.mxu0 0.0
    %262 = vmatprep.subr.mxu0 0.0
    %263 = vmatpush1.msra.mxu0 0.0
    %264 = vmatprep.subr.mxu0 0.0
    %265 = vmatpush1.msra.mxu0 0.0
    %266 = vmatprep.subr.mxu0 0.0
    %267 = vmatpush1.msra.mxu0 0.0
    %268 = vmatprep.subr.mxu0 0.0
    %269 = vmatpush1.msra.mxu0 0.0
    %270 = vmatprep.subr.mxu0 0.0
    %271 = vmatpush1.msra.mxu0 0.0
    %272 = vmatprep.subr.mxu0 0.0
    %273 = vmatpush1.msra.mxu0 0.0
    %274 = vmatprep.subr.mxu0 0.0
    %275 = vmatpush1.msra.mxu0 0.0
    %276 = vmatprep.subr.mxu0 0.0
    %277 = vmatpush1.msra.mxu0 %v56
    %278 = vmatprep.subr.mxu0 0.0
    %279 = vmatpush2.msra.mxu0 0.0
    %280 = vmatprep.subr.mxu0 0.0
    %281 = vmatpush2.msra.mxu0 0.0
    %282 = vmatprep.subr.mxu0 0.0
    %283 = vmatpush2.msra.mxu0 0.0
    %284 = vmatprep.subr.mxu0 0.0
    %285 = vmatpush2.msra.mxu0 0.0
    %286 = vmatprep.subr.mxu0 0.0
    %287 = vmatpush2.msra.mxu0 0.0
    %288 = vmatprep.subr.mxu0 0.0
    %289 = vmatpush2.msra.mxu0 0.0
    %290 = vmatprep.subr.mxu0 0.0
    %291 = vmatpush2.msra.mxu0 0.0
    %292 = vmatprep.subr.mxu0 0.0
    %293 = vmatpush2.msra.mxu0 0.0
    %294 = vmatprep.subr.mxu0 0.0
    %295 = vmatpush2.msra.mxu0 0.0
    %296 = vmatprep.subr.mxu0 0.0
    %297 = vmatpush2.msra.mxu0 0.0
    %298 = vmatprep.subr.mxu0 0.0
    %299 = vmatpush2.msra.mxu0 0.0
    %300 = vmatprep.subr.mxu0 0.0
    %301 = vmatpush2.msra.mxu0 0.0
    %302 = vmatprep.subr.mxu0 0.0
    %303 = vmatpush2.msra.mxu0 0.0
    %304 = vmatprep.subr.mxu0 0.0
    %305 = vmatpush2.msra.mxu0 0.0
    %306 = vmatprep.subr.mxu0 0.0
    %307 = vmatpush2.msra.mxu0 0.0
    %308 = vmatprep.subr.mxu0 0.0
    %309 = vmatpush2.msra.mxu0 0.0
    %310 = vmatprep.mubr.f32.mxu0 0.0
    %311 = vmatmul.mubr.f32.gmra.mxu0 %v244
    %v312 = vpop.f32.mrf.mxu0
    %v313 = vadd.f32 %v90, %v312
    %v314 = vpop.f32.mrf.mxu0
    %315 = vdwg.mxu0
    %s316 = scalar_lea.vmem %s0, 6
    %v317 = vld [vmem:[%s316] sm:$0x3]
    %v319 = vsel %vm92, %v317, 0
    %321 = vmatprep.subr.mxu0 0.0
    %322 = vmatpush1.msra.mxu0 0.0
    %323 = vmatprep.subr.mxu0 0.0
    %324 = vmatpush1.msra.mxu0 0.0
    %325 = vmatprep.subr.mxu0 0.0
    %326 = vmatpush1.msra.mxu0 0.0
    %327 = vmatprep.subr.mxu0 0.0
    %328 = vmatpush1.msra.mxu0 0.0
    %329 = vmatprep.subr.mxu0 0.0
    %330 = vmatpush1.msra.mxu0 0.0
    %331 = vmatprep.subr.mxu0 0.0
    %332 = vmatpush1.msra.mxu0 0.0
    %333 = vmatprep.subr.mxu0 0.0
    %334 = vmatpush1.msra.mxu0 0.0
    %335 = vmatprep.subr.mxu0 0.0
    %336 = vmatpush1.msra.mxu0 0.0
    %337 = vmatprep.subr.mxu0 0.0
    %338 = vmatpush1.msra.mxu0 0.0
    %339 = vmatprep.subr.mxu0 0.0
    %340 = vmatpush1.msra.mxu0 0.0
    %341 = vmatprep.subr.mxu0 0.0
    %342 = vmatpush1.msra.mxu0 0.0
    %343 = vmatprep.subr.mxu0 0.0
    %344 = vmatpush1.msra.mxu0 0.0
    %345 = vmatprep.subr.mxu0 0.0
    %346 = vmatpush1.msra.mxu0 0.0
    %347 = vmatprep.subr.mxu0 0.0
    %348 = vmatpush1.msra.mxu0 0.0
    %349 = vmatprep.subr.mxu0 0.0
    %350 = vmatpush1.msra.mxu0 0.0
    %351 = vmatprep.subr.mxu0 0.0
    %352 = vmatpush1.msra.mxu0 %v56
    %353 = vmatprep.subr.mxu0 0.0
    %354 = vmatpush2.msra.mxu0 0.0
    %355 = vmatprep.subr.mxu0 0.0
    %356 = vmatpush2.msra.mxu0 0.0
    %357 = vmatprep.subr.mxu0 0.0
    %358 = vmatpush2.msra.mxu0 0.0
    %359 = vmatprep.subr.mxu0 0.0
    %360 = vmatpush2.msra.mxu0 0.0
    %361 = vmatprep.subr.mxu0 0.0
    %362 = vmatpush2.msra.mxu0 0.0
    %363 = vmatprep.subr.mxu0 0.0
    %364 = vmatpush2.msra.mxu0 0.0
    %365 = vmatprep.subr.mxu0 0.0
    %366 = vmatpush2.msra.mxu0 0.0
    %367 = vmatprep.subr.mxu0 0.0
    %368 = vmatpush2.msra.mxu0 0.0
    %369 = vmatprep.subr.mxu0 0.0
    %370 = vmatpush2.msra.mxu0 0.0
    %371 = vmatprep.subr.mxu0 0.0
    %372 = vmatpush2.msra.mxu0 0.0
    %373 = vmatprep.subr.mxu0 0.0
    %374 = vmatpush2.msra.mxu0 0.0
    %375 = vmatprep.subr.mxu0 0.0
    %376 = vmatpush2.msra.mxu0 0.0
    %377 = vmatprep.subr.mxu0 0.0
    %378 = vmatpush2.msra.mxu0 0.0
    %379 = vmatprep.subr.mxu0 0.0
    %380 = vmatpush2.msra.mxu0 0.0
    %381 = vmatprep.subr.mxu0 0.0
    %382 = vmatpush2.msra.mxu0 0.0
    %383 = vmatprep.subr.mxu0 0.0
    %384 = vmatpush2.msra.mxu0 0.0
    %385 = vmatprep.mubr.f32.mxu0 0.0
    %386 = vmatmul.mubr.f32.gmra.mxu0 %v319
    %v387 = vpop.f32.mrf.mxu0
    %v388 = vadd.f32 %v90, %v387
    %v389 = vpop.f32.mrf.mxu0
    %390 = vdwg.mxu0
    %s391 = scalar_lea.vmem %s0, 8
    %v392 = vld [vmem:[%s391] sm:$0x3]
    %v394 = vsel %vm92, %v392, 0
    %396 = vmatprep.subr.mxu0 0.0
    %397 = vmatpush1.msra.mxu0 0.0
    %398 = vmatprep.subr.mxu0 0.0
    %399 = vmatpush1.msra.mxu0 0.0
    %400 = vmatprep.subr.mxu0 0.0
    %401 = vmatpush1.msra.mxu0 0.0
    %402 = vmatprep.subr.mxu0 0.0
    %403 = vmatpush1.msra.mxu0 0.0
    %404 = vmatprep.subr.mxu0 0.0
    %405 = vmatpush1.msra.mxu0 0.0
    %406 = vmatprep.subr.mxu0 0.0
    %407 = vmatpush1.msra.mxu0 0.0
    %408 = vmatprep.subr.mxu0 0.0
    %409 = vmatpush1.msra.mxu0 0.0
    %410 = vmatprep.subr.mxu0 0.0
    %411 = vmatpush1.msra.mxu0 0.0
    %412 = vmatprep.subr.mxu0 0.0
    %413 = vmatpush1.msra.mxu0 0.0
    %414 = vmatprep.subr.mxu0 0.0
    %415 = vmatpush1.msra.mxu0 0.0
    %416 = vmatprep.subr.mxu0 0.0
    %417 = vmatpush1.msra.mxu0 0.0
    %418 = vmatprep.subr.mxu0 0.0
    %419 = vmatpush1.msra.mxu0 0.0
    %420 = vmatprep.subr.mxu0 0.0
    %421 = vmatpush1.msra.mxu0 0.0
    %422 = vmatprep.subr.mxu0 0.0
    %423 = vmatpush1.msra.mxu0 0.0
    %424 = vmatprep.subr.mxu0 0.0
    %425 = vmatpush1.msra.mxu0 0.0
    %426 = vmatprep.subr.mxu0 0.0
    %427 = vmatpush1.msra.mxu0 %v56
    %428 = vmatprep.subr.mxu0 0.0
    %429 = vmatpush2.msra.mxu0 0.0
    %430 = vmatprep.subr.mxu0 0.0
    %431 = vmatpush2.msra.mxu0 0.0
    %432 = vmatprep.subr.mxu0 0.0
    %433 = vmatpush2.msra.mxu0 0.0
    %434 = vmatprep.subr.mxu0 0.0
    %435 = vmatpush2.msra.mxu0 0.0
    %436 = vmatprep.subr.mxu0 0.0
    %437 = vmatpush2.msra.mxu0 0.0
    %438 = vmatprep.subr.mxu0 0.0
    %439 = vmatpush2.msra.mxu0 0.0
    %440 = vmatprep.subr.mxu0 0.0
    %441 = vmatpush2.msra.mxu0 0.0
    %442 = vmatprep.subr.mxu0 0.0
    %443 = vmatpush2.msra.mxu0 0.0
    %444 = vmatprep.subr.mxu0 0.0
    %445 = vmatpush2.msra.mxu0 0.0
    %446 = vmatprep.subr.mxu0 0.0
    %447 = vmatpush2.msra.mxu0 0.0
    %448 = vmatprep.subr.mxu0 0.0
    %449 = vmatpush2.msra.mxu0 0.0
    %450 = vmatprep.subr.mxu0 0.0
    %451 = vmatpush2.msra.mxu0 0.0
    %452 = vmatprep.subr.mxu0 0.0
    %453 = vmatpush2.msra.mxu0 0.0
    %454 = vmatprep.subr.mxu0 0.0
    %455 = vmatpush2.msra.mxu0 0.0
    %456 = vmatprep.subr.mxu0 0.0
    %457 = vmatpush2.msra.mxu0 0.0
    %458 = vmatprep.subr.mxu0 0.0
    %459 = vmatpush2.msra.mxu0 0.0
    %460 = vmatprep.mubr.f32.mxu0 0.0
    %461 = vmatmul.mubr.f32.gmra.mxu0 %v394
    %v462 = vpop.f32.mrf.mxu0
    %v463 = vadd.f32 %v90, %v462
    %v464 = vpop.f32.mrf.mxu0
    %465 = vdwg.mxu0
    %s466 = scalar_lea.vmem %s0, 10
    %v467 = vld [vmem:[%s466] sm:$0x3]
    %v469 = vsel %vm92, %v467, 0
    %471 = vmatprep.subr.mxu0 0.0
    %472 = vmatpush1.msra.mxu0 0.0
    %473 = vmatprep.subr.mxu0 0.0
    %474 = vmatpush1.msra.mxu0 0.0
    %475 = vmatprep.subr.mxu0 0.0
    %476 = vmatpush1.msra.mxu0 0.0
    %477 = vmatprep.subr.mxu0 0.0
    %478 = vmatpush1.msra.mxu0 0.0
    %479 = vmatprep.subr.mxu0 0.0
    %480 = vmatpush1.msra.mxu0 0.0
    %481 = vmatprep.subr.mxu0 0.0
    %482 = vmatpush1.msra.mxu0 0.0
    %483 = vmatprep.subr.mxu0 0.0
    %484 = vmatpush1.msra.mxu0 0.0
    %485 = vmatprep.subr.mxu0 0.0
    %486 = vmatpush1.msra.mxu0 0.0
    %487 = vmatprep.subr.mxu0 0.0
    %488 = vmatpush1.msra.mxu0 0.0
    %489 = vmatprep.subr.mxu0 0.0
    %490 = vmatpush1.msra.mxu0 0.0
    %491 = vmatprep.subr.mxu0 0.0
    %492 = vmatpush1.msra.mxu0 0.0
    %493 = vmatprep.subr.mxu0 0.0
    %494 = vmatpush1.msra.mxu0 0.0
    %495 = vmatprep.subr.mxu0 0.0
    %496 = vmatpush1.msra.mxu0 0.0
    %497 = vmatprep.subr.mxu0 0.0
    %498 = vmatpush1.msra.mxu0 0.0
    %499 = vmatprep.subr.mxu0 0.0
    %500 = vmatpush1.msra.mxu0 0.0
    %501 = vmatprep.subr.mxu0 0.0
    %502 = vmatpush1.msra.mxu0 %v56
    %503 = vmatprep.subr.mxu0 0.0
    %504 = vmatpush2.msra.mxu0 0.0
    %505 = vmatprep.subr.mxu0 0.0
    %506 = vmatpush2.msra.mxu0 0.0
    %507 = vmatprep.subr.mxu0 0.0
    %508 = vmatpush2.msra.mxu0 0.0
    %509 = vmatprep.subr.mxu0 0.0
    %510 = vmatpush2.msra.mxu0 0.0
    %511 = vmatprep.subr.mxu0 0.0
    %512 = vmatpush2.msra.mxu0 0.0
    %513 = vmatprep.subr.mxu0 0.0
    %514 = vmatpush2.msra.mxu0 0.0
    %515 = vmatprep.subr.mxu0 0.0
    %516 = vmatpush2.msra.mxu0 0.0
    %517 = vmatprep.subr.mxu0 0.0
    %518 = vmatpush2.msra.mxu0 0.0
    %519 = vmatprep.subr.mxu0 0.0
    %520 = vmatpush2.msra.mxu0 0.0
    %521 = vmatprep.subr.mxu0 0.0
    %522 = vmatpush2.msra.mxu0 0.0
    %523 = vmatprep.subr.mxu0 0.0
    %524 = vmatpush2.msra.mxu0 0.0
    %525 = vmatprep.subr.mxu0 0.0
    %526 = vmatpush2.msra.mxu0 0.0
    %527 = vmatprep.subr.mxu0 0.0
    %528 = vmatpush2.msra.mxu0 0.0
    %529 = vmatprep.subr.mxu0 0.0
    %530 = vmatpush2.msra.mxu0 0.0
    %531 = vmatprep.subr.mxu0 0.0
    %532 = vmatpush2.msra.mxu0 0.0
    %533 = vmatprep.subr.mxu0 0.0
    %534 = vmatpush2.msra.mxu0 0.0
    %535 = vmatprep.mubr.f32.mxu0 0.0
    %536 = vmatmul.mubr.f32.gmra.mxu0 %v469
    %v537 = vpop.f32.mrf.mxu0
    %v538 = vadd.f32 %v90, %v537
    %v539 = vpop.f32.mrf.mxu0
    %540 = vdwg.mxu0
    %s541 = scalar_lea.vmem %s0, 12
    %v542 = vld [vmem:[%s541] sm:$0x3]
    %v544 = vsel %vm92, %v542, 0
    %546 = vmatprep.subr.mxu0 0.0
    %547 = vmatpush1.msra.mxu0 0.0
    %548 = vmatprep.subr.mxu0 0.0
    %549 = vmatpush1.msra.mxu0 0.0
    %550 = vmatprep.subr.mxu0 0.0
    %551 = vmatpush1.msra.mxu0 0.0
    %552 = vmatprep.subr.mxu0 0.0
    %553 = vmatpush1.msra.mxu0 0.0
    %554 = vmatprep.subr.mxu0 0.0
    %555 = vmatpush1.msra.mxu0 0.0
    %556 = vmatprep.subr.mxu0 0.0
    %557 = vmatpush1.msra.mxu0 0.0
    %558 = vmatprep.subr.mxu0 0.0
    %559 = vmatpush1.msra.mxu0 0.0
    %560 = vmatprep.subr.mxu0 0.0
    %561 = vmatpush1.msra.mxu0 0.0
    %562 = vmatprep.subr.mxu0 0.0
    %563 = vmatpush1.msra.mxu0 0.0
    %564 = vmatprep.subr.mxu0 0.0
    %565 = vmatpush1.msra.mxu0 0.0
    %566 = vmatprep.subr.mxu0 0.0
    %567 = vmatpush1.msra.mxu0 0.0
    %568 = vmatprep.subr.mxu0 0.0
    %569 = vmatpush1.msra.mxu0 0.0
    %570 = vmatprep.subr.mxu0 0.0
    %571 = vmatpush1.msra.mxu0 0.0
    %572 = vmatprep.subr.mxu0 0.0
    %573 = vmatpush1.msra.mxu0 0.0
    %574 = vmatprep.subr.mxu0 0.0
    %575 = vmatpush1.msra.mxu0 0.0
    %576 = vmatprep.subr.mxu0 0.0
    %577 = vmatpush1.msra.mxu0 %v56
    %578 = vmatprep.subr.mxu0 0.0
    %579 = vmatpush2.msra.mxu0 0.0
    %580 = vmatprep.subr.mxu0 0.0
    %581 = vmatpush2.msra.mxu0 0.0
    %582 = vmatprep.subr.mxu0 0.0
    %583 = vmatpush2.msra.mxu0 0.0
    %584 = vmatprep.subr.mxu0 0.0
    %585 = vmatpush2.msra.mxu0 0.0
    %586 = vmatprep.subr.mxu0 0.0
    %587 = vmatpush2.msra.mxu0 0.0
    %588 = vmatprep.subr.mxu0 0.0
    %589 = vmatpush2.msra.mxu0 0.0
    %590 = vmatprep.subr.mxu0 0.0
    %591 = vmatpush2.msra.mxu0 0.0
    %592 = vmatprep.subr.mxu0 0.0
    %593 = vmatpush2.msra.mxu0 0.0
    %594 = vmatprep.subr.mxu0 0.0
    %595 = vmatpush2.msra.mxu0 0.0
    %596 = vmatprep.subr.mxu0 0.0
    %597 = vmatpush2.msra.mxu0 0.0
    %598 = vmatprep.subr.mxu0 0.0
    %599 = vmatpush2.msra.mxu0 0.0
    %600 = vmatprep.subr.mxu0 0.0
    %601 = vmatpush2.msra.mxu0 0.0
    %602 = vmatprep.subr.mxu0 0.0
    %603 = vmatpush2.msra.mxu0 0.0
    %604 = vmatprep.subr.mxu0 0.0
    %605 = vmatpush2.msra.mxu0 0.0
    %606 = vmatprep.subr.mxu0 0.0
    %607 = vmatpush2.msra.mxu0 0.0
    %608 = vmatprep.subr.mxu0 0.0
    %609 = vmatpush2.msra.mxu0 0.0
    %610 = vmatprep.mubr.f32.mxu0 0.0
    %611 = vmatmul.mubr.f32.gmra.mxu0 %v544
    %v612 = vpop.f32.mrf.mxu0
    %v613 = vadd.f32 %v90, %v612
    %v614 = vpop.f32.mrf.mxu0
    %615 = vdwg.mxu0
    %s616 = scalar_lea.vmem %s0, 14
    %v617 = vld [vmem:[%s616] sm:$0x3]
    %v619 = vsel %vm92, %v617, 0
    %621 = vmatprep.subr.mxu0 0.0
    %622 = vmatpush1.msra.mxu0 0.0
    %623 = vmatprep.subr.mxu0 0.0
    %624 = vmatpush1.msra.mxu0 0.0
    %625 = vmatprep.subr.mxu0 0.0
    %626 = vmatpush1.msra.mxu0 0.0
    %627 = vmatprep.subr.mxu0 0.0
    %628 = vmatpush1.msra.mxu0 0.0
    %629 = vmatprep.subr.mxu0 0.0
    %630 = vmatpush1.msra.mxu0 0.0
    %631 = vmatprep.subr.mxu0 0.0
    %632 = vmatpush1.msra.mxu0 0.0
    %633 = vmatprep.subr.mxu0 0.0
    %634 = vmatpush1.msra.mxu0 0.0
    %635 = vmatprep.subr.mxu0 0.0
    %636 = vmatpush1.msra.mxu0 0.0
    %637 = vmatprep.subr.mxu0 0.0
    %638 = vmatpush1.msra.mxu0 0.0
    %639 = vmatprep.subr.mxu0 0.0
    %640 = vmatpush1.msra.mxu0 0.0
    %641 = vmatprep.subr.mxu0 0.0
    %642 = vmatpush1.msra.mxu0 0.0
    %643 = vmatprep.subr.mxu0 0.0
    %644 = vmatpush1.msra.mxu0 0.0
    %645 = vmatprep.subr.mxu0 0.0
    %646 = vmatpush1.msra.mxu0 0.0
    %647 = vmatprep.subr.mxu0 0.0
    %648 = vmatpush1.msra.mxu0 0.0
    %649 = vmatprep.subr.mxu0 0.0
    %650 = vmatpush1.msra.mxu0 0.0
    %651 = vmatprep.subr.mxu0 0.0
    %652 = vmatpush1.msra.mxu0 %v56
    %653 = vmatprep.subr.mxu0 0.0
    %654 = vmatpush2.msra.mxu0 0.0
    %655 = vmatprep.subr.mxu0 0.0
    %656 = vmatpush2.msra.mxu0 0.0
    %657 = vmatprep.subr.mxu0 0.0
    %658 = vmatpush2.msra.mxu0 0.0
    %659 = vmatprep.subr.mxu0 0.0
    %660 = vmatpush2.msra.mxu0 0.0
    %661 = vmatprep.subr.mxu0 0.0
    %662 = vmatpush2.msra.mxu0 0.0
    %663 = vmatprep.subr.mxu0 0.0
    %664 = vmatpush2.msra.mxu0 0.0
    %665 = vmatprep.subr.mxu0 0.0
    %666 = vmatpush2.msra.mxu0 0.0
    %667 = vmatprep.subr.mxu0 0.0
    %668 = vmatpush2.msra.mxu0 0.0
    %669 = vmatprep.subr.mxu0 0.0
    %670 = vmatpush2.msra.mxu0 0.0
    %671 = vmatprep.subr.mxu0 0.0
    %672 = vmatpush2.msra.mxu0 0.0
    %673 = vmatprep.subr.mxu0 0.0
    %674 = vmatpush2.msra.mxu0 0.0
    %675 = vmatprep.subr.mxu0 0.0
    %676 = vmatpush2.msra.mxu0 0.0
    %677 = vmatprep.subr.mxu0 0.0
    %678 = vmatpush2.msra.mxu0 0.0
    %679 = vmatprep.subr.mxu0 0.0
    %680 = vmatpush2.msra.mxu0 0.0
    %681 = vmatprep.subr.mxu0 0.0
    %682 = vmatpush2.msra.mxu0 0.0
    %683 = vmatprep.subr.mxu0 0.0
    %684 = vmatpush2.msra.mxu0 0.0
    %685 = vmatprep.mubr.f32.mxu0 0.0
    %686 = vmatmul.mubr.f32.gmra.mxu0 %v619
    %v687 = vpop.f32.mrf.mxu0
    %v688 = vadd.f32 %v90, %v687
    %v689 = vpop.f32.mrf.mxu0
    %690 = vdwg.mxu0
    %vm691 = vcmask 261120
    %v693 = vsel %vm691, 0.0, 0
    %695 = vmatprep.subr.mxu0 0.0
    %696 = vmatpush1.msra.mxu0 0.0
    %697 = vmatprep.subr.mxu0 0.0
    %698 = vmatpush1.msra.mxu0 0.0
    %699 = vmatprep.subr.mxu0 0.0
    %700 = vmatpush1.msra.mxu0 0.0
    %701 = vmatprep.subr.mxu0 0.0
    %702 = vmatpush1.msra.mxu0 0.0
    %703 = vmatprep.subr.mxu0 0.0
    %704 = vmatpush1.msra.mxu0 0.0
    %705 = vmatprep.subr.mxu0 0.0
    %706 = vmatpush1.msra.mxu0 0.0
    %707 = vmatprep.subr.mxu0 0.0
    %708 = vmatpush1.msra.mxu0 0.0
    %709 = vmatprep.subr.mxu0 0.0
    %710 = vmatpush1.msra.mxu0 0.0
    %711 = vmatprep.subr.mxu0 0.0
    %712 = vmatpush1.msra.mxu0 0.0
    %713 = vmatprep.subr.mxu0 0.0
    %714 = vmatpush1.msra.mxu0 0.0
    %715 = vmatprep.subr.mxu0 0.0
    %716 = vmatpush1.msra.mxu0 0.0
    %717 = vmatprep.subr.mxu0 0.0
    %718 = vmatpush1.msra.mxu0 0.0
    %719 = vmatprep.subr.mxu0 0.0
    %720 = vmatpush1.msra.mxu0 %v69
    %721 = vmatprep.subr.mxu0 0.0
    %722 = vmatpush1.msra.mxu0 %v68
    %723 = vmatprep.subr.mxu0 0.0
    %724 = vmatpush1.msra.mxu0 %v67
    %725 = vmatprep.subr.mxu0 0.0
    %726 = vmatpush1.msra.mxu0 %v66
    %727 = vmatprep.subr.mxu0 0.0
    %728 = vmatpush2.msra.mxu0 0.0
    %729 = vmatprep.subr.mxu0 0.0
    %730 = vmatpush2.msra.mxu0 0.0
    %731 = vmatprep.subr.mxu0 0.0
    %732 = vmatpush2.msra.mxu0 0.0
    %733 = vmatprep.subr.mxu0 0.0
    %734 = vmatpush2.msra.mxu0 0.0
    %735 = vmatprep.subr.mxu0 0.0
    %736 = vmatpush2.msra.mxu0 0.0
    %737 = vmatprep.subr.mxu0 0.0
    %738 = vmatpush2.msra.mxu0 0.0
    %739 = vmatprep.subr.mxu0 0.0
    %740 = vmatpush2.msra.mxu0 0.0
    %741 = vmatprep.subr.mxu0 0.0
    %742 = vmatpush2.msra.mxu0 0.0
    %743 = vmatprep.subr.mxu0 0.0
    %744 = vmatpush2.msra.mxu0 0.0
    %745 = vmatprep.subr.mxu0 0.0
    %746 = vmatpush2.msra.mxu0 0.0
    %747 = vmatprep.subr.mxu0 0.0
    %748 = vmatpush2.msra.mxu0 0.0
    %749 = vmatprep.subr.mxu0 0.0
    %750 = vmatpush2.msra.mxu0 0.0
    %751 = vmatprep.subr.mxu0 0.0
    %752 = vmatpush2.msra.mxu0 0.0
    %753 = vmatprep.subr.mxu0 0.0
    %754 = vmatpush2.msra.mxu0 0.0
    %755 = vmatprep.subr.mxu0 0.0
    %756 = vmatpush2.msra.mxu0 0.0
    %757 = vmatprep.subr.mxu0 0.0
    %758 = vmatpush2.msra.mxu0 0.0
    %759 = vmatprep.mubr.f32.mxu0 0.0
    %760 = vmatmul.mubr.f32.gmra.mxu0 %v693
    %v761 = vpop.f32.mrf.mxu0
    %v762 = vadd.f32 0.0, %v761
    %v763 = vpop.f32.mrf.mxu0
    %764 = vdwg.mxu0
    %v766 = vlaneseq
    %v767 = vshrl.u32 %v766, 7
    %v768 = vsub.s32 0, %v767
    %v769 = vrot.slane %v82, %v768
    %771 = vmatprep.subr.mxu0 0.0
    %772 = vmatpush1.msra.mxu0 0.0
    %773 = vmatprep.subr.mxu0 0.0
    %774 = vmatpush1.msra.mxu0 0.0
    %775 = vmatprep.subr.mxu0 0.0
    %776 = vmatpush1.msra.mxu0 0.0
    %777 = vmatprep.subr.mxu0 0.0
    %778 = vmatpush1.msra.mxu0 0.0
    %779 = vmatprep.subr.mxu0 0.0
    %780 = vmatpush1.msra.mxu0 0.0
    %781 = vmatprep.subr.mxu0 0.0
    %782 = vmatpush1.msra.mxu0 0.0
    %783 = vmatprep.subr.mxu0 0.0
    %784 = vmatpush1.msra.mxu0 0.0
    %785 = vmatprep.subr.mxu0 0.0
    %786 = vmatpush1.msra.mxu0 0.0
    %787 = vmatprep.subr.mxu0 0.0
    %788 = vmatpush1.msra.mxu0 0.0
    %789 = vmatprep.subr.mxu0 0.0
    %790 = vmatpush1.msra.mxu0 0.0
    %791 = vmatprep.subr.mxu0 0.0
    %792 = vmatpush1.msra.mxu0 0.0
    %793 = vmatprep.subr.mxu0 0.0
    %794 = vmatpush1.msra.mxu0 0.0
    %795 = vmatprep.subr.mxu0 0.0
    %796 = vmatpush1.msra.mxu0 %v74
    %797 = vmatprep.subr.mxu0 0.0
    %798 = vmatpush1.msra.mxu0 %v73
    %799 = vmatprep.subr.mxu0 0.0
    %800 = vmatpush1.msra.mxu0 %v72
    %801 = vmatprep.subr.mxu0 0.0
    %802 = vmatpush1.msra.mxu0 %v71
    %803 = vmatprep.subr.mxu0 0.0
    %804 = vmatpush2.msra.mxu0 0.0
    %805 = vmatprep.subr.mxu0 0.0
    %806 = vmatpush2.msra.mxu0 0.0
    %807 = vmatprep.subr.mxu0 0.0
    %808 = vmatpush2.msra.mxu0 0.0
    %809 = vmatprep.subr.mxu0 0.0
    %810 = vmatpush2.msra.mxu0 0.0
    %811 = vmatprep.subr.mxu0 0.0
    %812 = vmatpush2.msra.mxu0 0.0
    %813 = vmatprep.subr.mxu0 0.0
    %814 = vmatpush2.msra.mxu0 0.0
    %815 = vmatprep.subr.mxu0 0.0
    %816 = vmatpush2.msra.mxu0 0.0
    %817 = vmatprep.subr.mxu0 0.0
    %818 = vmatpush2.msra.mxu0 0.0
    %819 = vmatprep.subr.mxu0 0.0
    %820 = vmatpush2.msra.mxu0 0.0
    %821 = vmatprep.subr.mxu0 0.0
    %822 = vmatpush2.msra.mxu0 0.0
    %823 = vmatprep.subr.mxu0 0.0
    %824 = vmatpush2.msra.mxu0 0.0
    %825 = vmatprep.subr.mxu0 0.0
    %826 = vmatpush2.msra.mxu0 0.0
    %827 = vmatprep.subr.mxu0 0.0
    %828 = vmatpush2.msra.mxu0 0.0
    %829 = vmatprep.subr.mxu0 0.0
    %830 = vmatpush2.msra.mxu0 0.0
    %831 = vmatprep.subr.mxu0 0.0
    %832 = vmatpush2.msra.mxu0 0.0
    %833 = vmatprep.subr.mxu0 0.0
    %834 = vmatpush2.msra.mxu0 0.0
    %835 = vmatprep.mubr.f32.mxu0 0.0
    %836 = vmatmul.mubr.f32.gmra.mxu0 %v693
    %v837 = vpop.f32.mrf.mxu0
    %v838 = vadd.f32 %v769, %v837
    %v839 = vpop.f32.mrf.mxu0
    %840 = vdwg.mxu0
    %v842 = vlaneseq
    %v843 = vshrl.u32 %v842, 7
    %v844 = vsub.s32 0, %v843
    %v845 = vrot.slane %v84, %v844
    %847 = vmatprep.subr.mxu0 0.0
    %848 = vmatpush1.msra.mxu0 0.0
    %849 = vmatprep.subr.mxu0 0.0
    %850 = vmatpush1.msra.mxu0 0.0
    %851 = vmatprep.subr.mxu0 0.0
    %852 = vmatpush1.msra.mxu0 0.0
    %853 = vmatprep.subr.mxu0 0.0
    %854 = vmatpush1.msra.mxu0 0.0
    %855 = vmatprep.subr.mxu0 0.0
    %856 = vmatpush1.msra.mxu0 0.0
    %857 = vmatprep.subr.mxu0 0.0
    %858 = vmatpush1.msra.mxu0 0.0
    %859 = vmatprep.subr.mxu0 0.0
    %860 = vmatpush1.msra.mxu0 0.0
    %861 = vmatprep.subr.mxu0 0.0
    %862 = vmatpush1.msra.mxu0 0.0
    %863 = vmatprep.subr.mxu0 0.0
    %864 = vmatpush1.msra.mxu0 0.0
    %865 = vmatprep.subr.mxu0 0.0
    %866 = vmatpush1.msra.mxu0 0.0
    %867 = vmatprep.subr.mxu0 0.0
    %868 = vmatpush1.msra.mxu0 0.0
    %869 = vmatprep.subr.mxu0 0.0
    %870 = vmatpush1.msra.mxu0 0.0
    %871 = vmatprep.subr.mxu0 0.0
    %872 = vmatpush1.msra.mxu0 %v79
    %873 = vmatprep.subr.mxu0 0.0
    %874 = vmatpush1.msra.mxu0 %v78
    %875 = vmatprep.subr.mxu0 0.0
    %876 = vmatpush1.msra.mxu0 %v77
    %877 = vmatprep.subr.mxu0 0.0
    %878 = vmatpush1.msra.mxu0 %v76
    %879 = vmatprep.subr.mxu0 0.0
    %880 = vmatpush2.msra.mxu0 0.0
    %881 = vmatprep.subr.mxu0 0.0
    %882 = vmatpush2.msra.mxu0 0.0
    %883 = vmatprep.subr.mxu0 0.0
    %884 = vmatpush2.msra.mxu0 0.0
    %885 = vmatprep.subr.mxu0 0.0
    %886 = vmatpush2.msra.mxu0 0.0
    %887 = vmatprep.subr.mxu0 0.0
    %888 = vmatpush2.msra.mxu0 0.0
    %889 = vmatprep.subr.mxu0 0.0
    %890 = vmatpush2.msra.mxu0 0.0
    %891 = vmatprep.subr.mxu0 0.0
    %892 = vmatpush2.msra.mxu0 0.0
    %893 = vmatprep.subr.mxu0 0.0
    %894 = vmatpush2.msra.mxu0 0.0
    %895 = vmatprep.subr.mxu0 0.0
    %896 = vmatpush2.msra.mxu0 0.0
    %897 = vmatprep.subr.mxu0 0.0
    %898 = vmatpush2.msra.mxu0 0.0
    %899 = vmatprep.subr.mxu0 0.0
    %900 = vmatpush2.msra.mxu0 0.0
    %901 = vmatprep.subr.mxu0 0.0
    %902 = vmatpush2.msra.mxu0 0.0
    %903 = vmatprep.subr.mxu0 0.0
    %904 = vmatpush2.msra.mxu0 0.0
    %905 = vmatprep.subr.mxu0 0.0
    %906 = vmatpush2.msra.mxu0 0.0
    %907 = vmatprep.subr.mxu0 0.0
    %908 = vmatpush2.msra.mxu0 0.0
    %909 = vmatprep.subr.mxu0 0.0
    %910 = vmatpush2.msra.mxu0 0.0
    %911 = vmatprep.mubr.f32.mxu0 0.0
    %912 = vmatmul.mubr.f32.gmra.mxu0 %v693
    %v913 = vpop.f32.mrf.mxu0
    %v914 = vadd.f32 %v845, %v913
    %v915 = vpop.f32.mrf.mxu0
    %916 = vdwg.mxu0
    %v917 = vadd.f32 %v163, %v762
    %v918 = vxor.u32 %v917, 2147483648
    %v919 = vmul.f32 %v918, 1.442695
    %v920 = vpow.pop %v919
    %v921 = vadd.f32 %v920, 1.0
    %v922 = vrcp.pop %v921
    %v923 = vmul.f32 1.0, %v922
    %v924 = vtanh.pop %v917
    %v925 = vmul.f32 %v923, 0.0
    %927 = vrot.lane.b32.xlu0 %v924, 64
    %v928 = vpop.permute.xlu0 %927
    %v930 = vmul.f32 %v923, %v928
    %932 = vrot.lane.b32.xlu0 %v930, 32
    %v933 = vpop.permute.xlu0 %932
    %v935 = vadd.f32 %v925, %v933
    %v936 = vtanh.pop %v935
    %938 = vrot.lane.b32.xlu0 %v936, 64
    %v939 = vpop.permute.xlu0 %938
    %v941 = vmul.f32 %v923, %v939
    %943 = vrot.lane.b32.xlu0 %v941, 32
    %v944 = vpop.permute.xlu0 %943
    %v945 = vsel %vm691, %v944, 0
    %947 = vmatprep.subr.mxu0 0.0
    %948 = vmatpush1.msra.mxu0 0.0
    %949 = vmatprep.subr.mxu0 0.0
    %950 = vmatpush1.msra.mxu0 0.0
    %951 = vmatprep.subr.mxu0 0.0
    %952 = vmatpush1.msra.mxu0 0.0
    %953 = vmatprep.subr.mxu0 0.0
    %954 = vmatpush1.msra.mxu0 0.0
    %955 = vmatprep.subr.mxu0 0.0
    %956 = vmatpush1.msra.mxu0 0.0
    %957 = vmatprep.subr.mxu0 0.0
    %958 = vmatpush1.msra.mxu0 0.0
    %959 = vmatprep.subr.mxu0 0.0
    %960 = vmatpush1.msra.mxu0 0.0
    %961 = vmatprep.subr.mxu0 0.0
    %962 = vmatpush1.msra.mxu0 0.0
    %963 = vmatprep.subr.mxu0 0.0
    %964 = vmatpush1.msra.mxu0 0.0
    %965 = vmatprep.subr.mxu0 0.0
    %966 = vmatpush1.msra.mxu0 0.0
    %967 = vmatprep.subr.mxu0 0.0
    %968 = vmatpush1.msra.mxu0 0.0
    %969 = vmatprep.subr.mxu0 0.0
    %970 = vmatpush1.msra.mxu0 0.0
    %971 = vmatprep.subr.mxu0 0.0
    %972 = vmatpush1.msra.mxu0 %v60
    %973 = vmatprep.subr.mxu0 0.0
    %974 = vmatpush1.msra.mxu0 %v59
    %975 = vmatprep.subr.mxu0 0.0
    %976 = vmatpush1.msra.mxu0 %v58
    %977 = vmatprep.subr.mxu0 0.0
    %978 = vmatpush1.msra.mxu0 %v57
    %979 = vmatprep.subr.mxu0 0.0
    %980 = vmatpush2.msra.mxu0 0.0
    %981 = vmatprep.subr.mxu0 0.0
    %982 = vmatpush2.msra.mxu0 0.0
    %983 = vmatprep.subr.mxu0 0.0
    %984 = vmatpush2.msra.mxu0 0.0
    %985 = vmatprep.subr.mxu0 0.0
    %986 = vmatpush2.msra.mxu0 0.0
    %987 = vmatprep.subr.mxu0 0.0
    %988 = vmatpush2.msra.mxu0 0.0
    %989 = vmatprep.subr.mxu0 0.0
    %990 = vmatpush2.msra.mxu0 0.0
    %991 = vmatprep.subr.mxu0 0.0
    %992 = vmatpush2.msra.mxu0 0.0
    %993 = vmatprep.subr.mxu0 0.0
    %994 = vmatpush2.msra.mxu0 0.0
    %995 = vmatprep.subr.mxu0 0.0
    %996 = vmatpush2.msra.mxu0 0.0
    %997 = vmatprep.subr.mxu0 0.0
    %998 = vmatpush2.msra.mxu0 0.0
    %999 = vmatprep.subr.mxu0 0.0
    %1000 = vmatpush2.msra.mxu0 0.0
    %1001 = vmatprep.subr.mxu0 0.0
    %1002 = vmatpush2.msra.mxu0 0.0
    %1003 = vmatprep.subr.mxu0 0.0
    %1004 = vmatpush2.msra.mxu0 0.0
    %1005 = vmatprep.subr.mxu0 0.0
    %1006 = vmatpush2.msra.mxu0 0.0
    %1007 = vmatprep.subr.mxu0 0.0
    %1008 = vmatpush2.msra.mxu0 0.0
    %1009 = vmatprep.subr.mxu0 0.0
    %1010 = vmatpush2.msra.mxu0 0.0
    %1011 = vmatprep.mubr.f32.mxu0 0.0
    %1012 = vmatmul.mubr.f32.gmra.mxu0 %v945
    %v1013 = vpop.f32.mrf.mxu0
    %v1014 = vadd.f32 %v838, %v1013
    %v1015 = vpop.f32.mrf.mxu0
    %1016 = vdwg.mxu0
    %v1017 = vxor.u32 %v1014, 2147483648
    %v1018 = vmul.f32 %v1017, 1.442695
    %v1019 = vpow.pop %v1018
    %v1020 = vadd.f32 %v1019, 1.0
    %v1021 = vrcp.pop %v1020
    %v1022 = vmul.f32 1.0, %v1021
    %v1023 = vtanh.pop %v1014
    %v1024 = vmul.f32 %v1022, 0.0
    %1026 = vrot.lane.b32.xlu0 %v1023, 64
    %v1027 = vpop.permute.xlu0 %1026
    %v1029 = vmul.f32 %v1022, %v1027
    %1031 = vrot.lane.b32.xlu0 %v1029, 32
    %v1032 = vpop.permute.xlu0 %1031
    %v1034 = vadd.f32 %v1024, %v1032
    %v1035 = vtanh.pop %v1034
    %1037 = vrot.lane.b32.xlu0 %v1035, 64
    %v1038 = vpop.permute.xlu0 %1037
    %v1040 = vmul.f32 %v1022, %v1038
    %1042 = vrot.lane.b32.xlu0 %v1040, 32
    %v1043 = vpop.permute.xlu0 %1042
    %v1044 = vsel %vm691, %v1043, 0
    %1046 = vmatprep.subr.mxu0 0.0
    %1047 = vmatpush1.msra.mxu0 0.0
    %1048 = vmatprep.subr.mxu0 0.0
    %1049 = vmatpush1.msra.mxu0 0.0
    %1050 = vmatprep.subr.mxu0 0.0
    %1051 = vmatpush1.msra.mxu0 0.0
    %1052 = vmatprep.subr.mxu0 0.0
    %1053 = vmatpush1.msra.mxu0 0.0
    %1054 = vmatprep.subr.mxu0 0.0
    %1055 = vmatpush1.msra.mxu0 0.0
    %1056 = vmatprep.subr.mxu0 0.0
    %1057 = vmatpush1.msra.mxu0 0.0
    %1058 = vmatprep.subr.mxu0 0.0
    %1059 = vmatpush1.msra.mxu0 0.0
    %1060 = vmatprep.subr.mxu0 0.0
    %1061 = vmatpush1.msra.mxu0 0.0
    %1062 = vmatprep.subr.mxu0 0.0
    %1063 = vmatpush1.msra.mxu0 0.0
    %1064 = vmatprep.subr.mxu0 0.0
    %1065 = vmatpush1.msra.mxu0 0.0
    %1066 = vmatprep.subr.mxu0 0.0
    %1067 = vmatpush1.msra.mxu0 0.0
    %1068 = vmatprep.subr.mxu0 0.0
    %1069 = vmatpush1.msra.mxu0 0.0
    %1070 = vmatprep.subr.mxu0 0.0
    %1071 = vmatpush1.msra.mxu0 %v65
    %1072 = vmatprep.subr.mxu0 0.0
    %1073 = vmatpush1.msra.mxu0 %v64
    %1074 = vmatprep.subr.mxu0 0.0
    %1075 = vmatpush1.msra.mxu0 %v63
    %1076 = vmatprep.subr.mxu0 0.0
    %1077 = vmatpush1.msra.mxu0 %v62
    %1078 = vmatprep.subr.mxu0 0.0
    %1079 = vmatpush2.msra.mxu0 0.0
    %1080 = vmatprep.subr.mxu0 0.0
    %1081 = vmatpush2.msra.mxu0 0.0
    %1082 = vmatprep.subr.mxu0 0.0
    %1083 = vmatpush2.msra.mxu0 0.0
    %1084 = vmatprep.subr.mxu0 0.0
    %1085 = vmatpush2.msra.mxu0 0.0
    %1086 = vmatprep.subr.mxu0 0.0
    %1087 = vmatpush2.msra.mxu0 0.0
    %1088 = vmatprep.subr.mxu0 0.0
    %1089 = vmatpush2.msra.mxu0 0.0
    %1090 = vmatprep.subr.mxu0 0.0
    %1091 = vmatpush2.msra.mxu0 0.0
    %1092 = vmatprep.subr.mxu0 0.0
    %1093 = vmatpush2.msra.mxu0 0.0
    %1094 = vmatprep.subr.mxu0 0.0
    %1095 = vmatpush2.msra.mxu0 0.0
    %1096 = vmatprep.subr.mxu0 0.0
    %1097 = vmatpush2.msra.mxu0 0.0
    %1098 = vmatprep.subr.mxu0 0.0
    %1099 = vmatpush2.msra.mxu0 0.0
    %1100 = vmatprep.subr.mxu0 0.0
    %1101 = vmatpush2.msra.mxu0 0.0
    %1102 = vmatprep.subr.mxu0 0.0
    %1103 = vmatpush2.msra.mxu0 0.0
    %1104 = vmatprep.subr.mxu0 0.0
    %1105 = vmatpush2.msra.mxu0 0.0
    %1106 = vmatprep.subr.mxu0 0.0
    %1107 = vmatpush2.msra.mxu0 0.0
    %1108 = vmatprep.subr.mxu0 0.0
    %1109 = vmatpush2.msra.mxu0 0.0
    %1110 = vmatprep.mubr.f32.mxu0 0.0
    %1111 = vmatmul.mubr.f32.gmra.mxu0 %v1044
    %v1112 = vpop.f32.mrf.mxu0
    %v1113 = vadd.f32 %v914, %v1112
    %v1114 = vpop.f32.mrf.mxu0
    %1115 = vdwg.mxu0
    %v1116 = vxor.u32 %v1113, 2147483648
    %v1117 = vmul.f32 %v1116, 1.442695
    %v1118 = vpow.pop %v1117
    %v1119 = vadd.f32 %v1118, 1.0
    %v1120 = vrcp.pop %v1119
    %v1121 = vmul.f32 1.0, %v1120
    %v1122 = vtanh.pop %v1113
    %v1123 = vmul.f32 %v1121, 0.0
    %1125 = vrot.lane.b32.xlu0 %v1122, 64
    %v1126 = vpop.permute.xlu0 %1125
    %v1128 = vmul.f32 %v1121, %v1126
    %1130 = vrot.lane.b32.xlu0 %v1128, 32
    %v1131 = vpop.permute.xlu0 %1130
    %v1133 = vadd.f32 %v1123, %v1131
    %v1134 = vtanh.pop %v1133
    %1136 = vrot.lane.b32.xlu0 %v1134, 64
    %v1137 = vpop.permute.xlu0 %1136
    %v1139 = vmul.f32 %v1121, %v1137
    %1140 = vmatprep.subr.mxu0 0.0
    %1141 = vmatpush1.msra.mxu0 0.0
    %1142 = vmatprep.subr.mxu0 0.0
    %1143 = vmatpush1.msra.mxu0 0.0
    %1144 = vmatprep.subr.mxu0 0.0
    %1145 = vmatpush1.msra.mxu0 0.0
    %1146 = vmatprep.subr.mxu0 0.0
    %1147 = vmatpush1.msra.mxu0 0.0
    %1148 = vmatprep.subr.mxu0 0.0
    %1149 = vmatpush1.msra.mxu0 0.0
    %1150 = vmatprep.subr.mxu0 0.0
    %1151 = vmatpush1.msra.mxu0 0.0
    %1152 = vmatprep.subr.mxu0 0.0
    %1153 = vmatpush1.msra.mxu0 0.0
    %1154 = vmatprep.subr.mxu0 0.0
    %1155 = vmatpush1.msra.mxu0 0.0
    %1156 = vmatprep.subr.mxu0 0.0
    %1157 = vmatpush1.msra.mxu0 0.0
    %1158 = vmatprep.subr.mxu0 0.0
    %1159 = vmatpush1.msra.mxu0 0.0
    %1160 = vmatprep.subr.mxu0 0.0
    %1161 = vmatpush1.msra.mxu0 0.0
    %1162 = vmatprep.subr.mxu0 0.0
    %1163 = vmatpush1.msra.mxu0 0.0
    %1164 = vmatprep.subr.mxu0 0.0
    %1165 = vmatpush1.msra.mxu0 %v69
    %1166 = vmatprep.subr.mxu0 0.0
    %1167 = vmatpush1.msra.mxu0 %v68
    %1168 = vmatprep.subr.mxu0 0.0
    %1169 = vmatpush1.msra.mxu0 %v67
    %1170 = vmatprep.subr.mxu0 0.0
    %1171 = vmatpush1.msra.mxu0 %v66
    %1172 = vmatprep.subr.mxu0 0.0
    %1173 = vmatpush2.msra.mxu0 0.0
    %1174 = vmatprep.subr.mxu0 0.0
    %1175 = vmatpush2.msra.mxu0 0.0
    %1176 = vmatprep.subr.mxu0 0.0
    %1177 = vmatpush2.msra.mxu0 0.0
    %1178 = vmatprep.subr.mxu0 0.0
    %1179 = vmatpush2.msra.mxu0 0.0
    %1180 = vmatprep.subr.mxu0 0.0
    %1181 = vmatpush2.msra.mxu0 0.0
    %1182 = vmatprep.subr.mxu0 0.0
    %1183 = vmatpush2.msra.mxu0 0.0
    %1184 = vmatprep.subr.mxu0 0.0
    %1185 = vmatpush2.msra.mxu0 0.0
    %1186 = vmatprep.subr.mxu0 0.0
    %1187 = vmatpush2.msra.mxu0 0.0
    %1188 = vmatprep.subr.mxu0 0.0
    %1189 = vmatpush2.msra.mxu0 0.0
    %1190 = vmatprep.subr.mxu0 0.0
    %1191 = vmatpush2.msra.mxu0 0.0
    %1192 = vmatprep.subr.mxu0 0.0
    %1193 = vmatpush2.msra.mxu0 0.0
    %1194 = vmatprep.subr.mxu0 0.0
    %1195 = vmatpush2.msra.mxu0 0.0
    %1196 = vmatprep.subr.mxu0 0.0
    %1197 = vmatpush2.msra.mxu0 0.0
    %1198 = vmatprep.subr.mxu0 0.0
    %1199 = vmatpush2.msra.mxu0 0.0
    %1200 = vmatprep.subr.mxu0 0.0
    %1201 = vmatpush2.msra.mxu0 0.0
    %1202 = vmatprep.subr.mxu0 0.0
    %1203 = vmatpush2.msra.mxu0 0.0
    %1204 = vmatprep.mubr.f32.mxu0 0.0
    %1205 = vmatmul.mubr.f32.gmra.mxu0 %v945
    %v1206 = vpop.f32.mrf.mxu0
    %v1207 = vadd.f32 0.0, %v1206
    %v1208 = vpop.f32.mrf.mxu0
    %1209 = vdwg.mxu0
    %1210 = vmatprep.subr.mxu0 0.0
    %1211 = vmatpush1.msra.mxu0 0.0
    %1212 = vmatprep.subr.mxu0 0.0
    %1213 = vmatpush1.msra.mxu0 0.0
    %1214 = vmatprep.subr.mxu0 0.0
    %1215 = vmatpush1.msra.mxu0 0.0
    %1216 = vmatprep.subr.mxu0 0.0
    %1217 = vmatpush1.msra.mxu0 0.0
    %1218 = vmatprep.subr.mxu0 0.0
    %1219 = vmatpush1.msra.mxu0 0.0
    %1220 = vmatprep.subr.mxu0 0.0
    %1221 = vmatpush1.msra.mxu0 0.0
    %1222 = vmatprep.subr.mxu0 0.0
    %1223 = vmatpush1.msra.mxu0 0.0
    %1224 = vmatprep.subr.mxu0 0.0
    %1225 = vmatpush1.msra.mxu0 0.0
    %1226 = vmatprep.subr.mxu0 0.0
    %1227 = vmatpush1.msra.mxu0 0.0
    %1228 = vmatprep.subr.mxu0 0.0
    %1229 = vmatpush1.msra.mxu0 0.0
    %1230 = vmatprep.subr.mxu0 0.0
    %1231 = vmatpush1.msra.mxu0 0.0
    %1232 = vmatprep.subr.mxu0 0.0
    %1233 = vmatpush1.msra.mxu0 0.0
    %1234 = vmatprep.subr.mxu0 0.0
    %1235 = vmatpush1.msra.mxu0 %v74
    %1236 = vmatprep.subr.mxu0 0.0
    %1237 = vmatpush1.msra.mxu0 %v73
    %1238 = vmatprep.subr.mxu0 0.0
    %1239 = vmatpush1.msra.mxu0 %v72
    %1240 = vmatprep.subr.mxu0 0.0
    %1241 = vmatpush1.msra.mxu0 %v71
    %1242 = vmatprep.subr.mxu0 0.0
    %1243 = vmatpush2.msra.mxu0 0.0
    %1244 = vmatprep.subr.mxu0 0.0
    %1245 = vmatpush2.msra.mxu0 0.0
    %1246 = vmatprep.subr.mxu0 0.0
    %1247 = vmatpush2.msra.mxu0 0.0
    %1248 = vmatprep.subr.mxu0 0.0
    %1249 = vmatpush2.msra.mxu0 0.0
    %1250 = vmatprep.subr.mxu0 0.0
    %1251 = vmatpush2.msra.mxu0 0.0
    %1252 = vmatprep.subr.mxu0 0.0
    %1253 = vmatpush2.msra.mxu0 0.0
    %1254 = vmatprep.subr.mxu0 0.0
    %1255 = vmatpush2.msra.mxu0 0.0
    %1256 = vmatprep.subr.mxu0 0.0
    %1257 = vmatpush2.msra.mxu0 0.0
    %1258 = vmatprep.subr.mxu0 0.0
    %1259 = vmatpush2.msra.mxu0 0.0
    %1260 = vmatprep.subr.mxu0 0.0
    %1261 = vmatpush2.msra.mxu0 0.0
    %1262 = vmatprep.subr.mxu0 0.0
    %1263 = vmatpush2.msra.mxu0 0.0
    %1264 = vmatprep.subr.mxu0 0.0
    %1265 = vmatpush2.msra.mxu0 0.0
    %1266 = vmatprep.subr.mxu0 0.0
    %1267 = vmatpush2.msra.mxu0 0.0
    %1268 = vmatprep.subr.mxu0 0.0
    %1269 = vmatpush2.msra.mxu0 0.0
    %1270 = vmatprep.subr.mxu0 0.0
    %1271 = vmatpush2.msra.mxu0 0.0
    %1272 = vmatprep.subr.mxu0 0.0
    %1273 = vmatpush2.msra.mxu0 0.0
    %1274 = vmatprep.mubr.f32.mxu0 0.0
    %1275 = vmatmul.mubr.f32.gmra.mxu0 %v1044
    %v1276 = vpop.f32.mrf.mxu0
    %v1277 = vadd.f32 %v769, %v1276
    %v1278 = vpop.f32.mrf.mxu0
    %1279 = vdwg.mxu0
    %1281 = vrot.lane.b32.xlu0 %v1139, 32
    %v1282 = vpop.permute.xlu0 %1281
    %v1283 = vsel %vm691, %v1282, 0
    %1285 = vmatprep.subr.mxu0 0.0
    %1286 = vmatpush1.msra.mxu0 0.0
    %1287 = vmatprep.subr.mxu0 0.0
    %1288 = vmatpush1.msra.mxu0 0.0
    %1289 = vmatprep.subr.mxu0 0.0
    %1290 = vmatpush1.msra.mxu0 0.0
    %1291 = vmatprep.subr.mxu0 0.0
    %1292 = vmatpush1.msra.mxu0 0.0
    %1293 = vmatprep.subr.mxu0 0.0
    %1294 = vmatpush1.msra.mxu0 0.0
    %1295 = vmatprep.subr.mxu0 0.0
    %1296 = vmatpush1.msra.mxu0 0.0
    %1297 = vmatprep.subr.mxu0 0.0
    %1298 = vmatpush1.msra.mxu0 0.0
    %1299 = vmatprep.subr.mxu0 0.0
    %1300 = vmatpush1.msra.mxu0 0.0
    %1301 = vmatprep.subr.mxu0 0.0
    %1302 = vmatpush1.msra.mxu0 0.0
    %1303 = vmatprep.subr.mxu0 0.0
    %1304 = vmatpush1.msra.mxu0 0.0
    %1305 = vmatprep.subr.mxu0 0.0
    %1306 = vmatpush1.msra.mxu0 0.0
    %1307 = vmatprep.subr.mxu0 0.0
    %1308 = vmatpush1.msra.mxu0 0.0
    %1309 = vmatprep.subr.mxu0 0.0
    %1310 = vmatpush1.msra.mxu0 %v79
    %1311 = vmatprep.subr.mxu0 0.0
    %1312 = vmatpush1.msra.mxu0 %v78
    %1313 = vmatprep.subr.mxu0 0.0
    %1314 = vmatpush1.msra.mxu0 %v77
    %1315 = vmatprep.subr.mxu0 0.0
    %1316 = vmatpush1.msra.mxu0 %v76
    %1317 = vmatprep.subr.mxu0 0.0
    %1318 = vmatpush2.msra.mxu0 0.0
    %1319 = vmatprep.subr.mxu0 0.0
    %1320 = vmatpush2.msra.mxu0 0.0
    %1321 = vmatprep.subr.mxu0 0.0
    %1322 = vmatpush2.msra.mxu0 0.0
    %1323 = vmatprep.subr.mxu0 0.0
    %1324 = vmatpush2.msra.mxu0 0.0
    %1325 = vmatprep.subr.mxu0 0.0
    %1326 = vmatpush2.msra.mxu0 0.0
    %1327 = vmatprep.subr.mxu0 0.0
    %1328 = vmatpush2.msra.mxu0 0.0
    %1329 = vmatprep.subr.mxu0 0.0
    %1330 = vmatpush2.msra.mxu0 0.0
    %1331 = vmatprep.subr.mxu0 0.0
    %1332 = vmatpush2.msra.mxu0 0.0
    %1333 = vmatprep.subr.mxu0 0.0
    %1334 = vmatpush2.msra.mxu0 0.0
    %1335 = vmatprep.subr.mxu0 0.0
    %1336 = vmatpush2.msra.mxu0 0.0
    %1337 = vmatprep.subr.mxu0 0.0
    %1338 = vmatpush2.msra.mxu0 0.0
    %1339 = vmatprep.subr.mxu0 0.0
    %1340 = vmatpush2.msra.mxu0 0.0
    %1341 = vmatprep.subr.mxu0 0.0
    %1342 = vmatpush2.msra.mxu0 0.0
    %1343 = vmatprep.subr.mxu0 0.0
    %1344 = vmatpush2.msra.mxu0 0.0
    %1345 = vmatprep.subr.mxu0 0.0
    %1346 = vmatpush2.msra.mxu0 0.0
    %1347 = vmatprep.subr.mxu0 0.0
    %1348 = vmatpush2.msra.mxu0 0.0
    %1349 = vmatprep.mubr.f32.mxu0 0.0
    %1350 = vmatmul.mubr.f32.gmra.mxu0 %v1283
    %v1351 = vpop.f32.mrf.mxu0
    %v1352 = vadd.f32 %v845, %v1351
    %v1353 = vpop.f32.mrf.mxu0
    %1354 = vdwg.mxu0
    %v1355 = vadd.f32 %v238, %v1207
    %v1356 = vxor.u32 %v1355, 2147483648
    %v1357 = vmul.f32 %v1356, 1.442695
    %v1358 = vpow.pop %v1357
    %v1359 = vadd.f32 %v1358, 1.0
    %v1360 = vrcp.pop %v1359
    %v1361 = vmul.f32 1.0, %v1360
    %v1362 = vtanh.pop %v1355
    %v1363 = vmul.f32 %v1361, %v935
    %1365 = vrot.lane.b32.xlu0 %v1362, 64
    %v1366 = vpop.permute.xlu0 %1365
    %v1368 = vmul.f32 %v1361, %v1366
    %1370 = vrot.lane.b32.xlu0 %v1368, 32
    %v1371 = vpop.permute.xlu0 %1370
    %v1373 = vadd.f32 %v1363, %v1371
    %v1374 = vtanh.pop %v1373
    %1376 = vrot.lane.b32.xlu0 %v1374, 64
    %v1377 = vpop.permute.xlu0 %1376
    %v1379 = vmul.f32 %v1361, %v1377
    %1381 = vrot.lane.b32.xlu0 %v1379, 32
    %v1382 = vpop.permute.xlu0 %1381
    %v1383 = vsel %vm691, %v1382, 0
    %1385 = vmatprep.subr.mxu0 0.0
    %1386 = vmatpush1.msra.mxu0 0.0
    %1387 = vmatprep.subr.mxu0 0.0
    %1388 = vmatpush1.msra.mxu0 0.0
    %1389 = vmatprep.subr.mxu0 0.0
    %1390 = vmatpush1.msra.mxu0 0.0
    %1391 = vmatprep.subr.mxu0 0.0
    %1392 = vmatpush1.msra.mxu0 0.0
    %1393 = vmatprep.subr.mxu0 0.0
    %1394 = vmatpush1.msra.mxu0 0.0
    %1395 = vmatprep.subr.mxu0 0.0
    %1396 = vmatpush1.msra.mxu0 0.0
    %1397 = vmatprep.subr.mxu0 0.0
    %1398 = vmatpush1.msra.mxu0 0.0
    %1399 = vmatprep.subr.mxu0 0.0
    %1400 = vmatpush1.msra.mxu0 0.0
    %1401 = vmatprep.subr.mxu0 0.0
    %1402 = vmatpush1.msra.mxu0 0.0
    %1403 = vmatprep.subr.mxu0 0.0
    %1404 = vmatpush1.msra.mxu0 0.0
    %1405 = vmatprep.subr.mxu0 0.0
    %1406 = vmatpush1.msra.mxu0 0.0
    %1407 = vmatprep.subr.mxu0 0.0
    %1408 = vmatpush1.msra.mxu0 0.0
    %1409 = vmatprep.subr.mxu0 0.0
    %1410 = vmatpush1.msra.mxu0 %v60
    %1411 = vmatprep.subr.mxu0 0.0
    %1412 = vmatpush1.msra.mxu0 %v59
    %1413 = vmatprep.subr.mxu0 0.0
    %1414 = vmatpush1.msra.mxu0 %v58
    %1415 = vmatprep.subr.mxu0 0.0
    %1416 = vmatpush1.msra.mxu0 %v57
    %1417 = vmatprep.subr.mxu0 0.0
    %1418 = vmatpush2.msra.mxu0 0.0
    %1419 = vmatprep.subr.mxu0 0.0
    %1420 = vmatpush2.msra.mxu0 0.0
    %1421 = vmatprep.subr.mxu0 0.0
    %1422 = vmatpush2.msra.mxu0 0.0
    %1423 = vmatprep.subr.mxu0 0.0
    %1424 = vmatpush2.msra.mxu0 0.0
    %1425 = vmatprep.subr.mxu0 0.0
    %1426 = vmatpush2.msra.mxu0 0.0
    %1427 = vmatprep.subr.mxu0 0.0
    %1428 = vmatpush2.msra.mxu0 0.0
    %1429 = vmatprep.subr.mxu0 0.0
    %1430 = vmatpush2.msra.mxu0 0.0
    %1431 = vmatprep.subr.mxu0 0.0
    %1432 = vmatpush2.msra.mxu0 0.0
    %1433 = vmatprep.subr.mxu0 0.0
    %1434 = vmatpush2.msra.mxu0 0.0
    %1435 = vmatprep.subr.mxu0 0.0
    %1436 = vmatpush2.msra.mxu0 0.0
    %1437 = vmatprep.subr.mxu0 0.0
    %1438 = vmatpush2.msra.mxu0 0.0
    %1439 = vmatprep.subr.mxu0 0.0
    %1440 = vmatpush2.msra.mxu0 0.0
    %1441 = vmatprep.subr.mxu0 0.0
    %1442 = vmatpush2.msra.mxu0 0.0
    %1443 = vmatprep.subr.mxu0 0.0
    %1444 = vmatpush2.msra.mxu0 0.0
    %1445 = vmatprep.subr.mxu0 0.0
    %1446 = vmatpush2.msra.mxu0 0.0
    %1447 = vmatprep.subr.mxu0 0.0
    %1448 = vmatpush2.msra.mxu0 0.0
    %1449 = vmatprep.mubr.f32.mxu0 0.0
    %1450 = vmatmul.mubr.f32.gmra.mxu0 %v1383
    %v1451 = vpop.f32.mrf.mxu0
    %v1452 = vadd.f32 %v1277, %v1451
    %v1453 = vpop.f32.mrf.mxu0
    %1454 = vdwg.mxu0
    %v1455 = vxor.u32 %v1452, 2147483648
    %v1456 = vmul.f32 %v1455, 1.442695
    %v1457 = vpow.pop %v1456
    %v1458 = vadd.f32 %v1457, 1.0
    %v1459 = vrcp.pop %v1458
    %v1460 = vmul.f32 1.0, %v1459
    %v1461 = vtanh.pop %v1452
    %v1462 = vmul.f32 %v1460, %v1034
    %1464 = vrot.lane.b32.xlu0 %v1461, 64
    %v1465 = vpop.permute.xlu0 %1464
    %v1467 = vmul.f32 %v1460, %v1465
    %1469 = vrot.lane.b32.xlu0 %v1467, 32
    %v1470 = vpop.permute.xlu0 %1469
    %v1472 = vadd.f32 %v1462, %v1470
    %v1473 = vtanh.pop %v1472
    %1475 = vrot.lane.b32.xlu0 %v1473, 64
    %v1476 = vpop.permute.xlu0 %1475
    %v1478 = vmul.f32 %v1460, %v1476
    %1480 = vrot.lane.b32.xlu0 %v1478, 32
    %v1481 = vpop.permute.xlu0 %1480
    %v1482 = vsel %vm691, %v1481, 0
    %1484 = vmatprep.subr.mxu0 0.0
    %1485 = vmatpush1.msra.mxu0 0.0
    %1486 = vmatprep.subr.mxu0 0.0
    %1487 = vmatpush1.msra.mxu0 0.0
    %1488 = vmatprep.subr.mxu0 0.0
    %1489 = vmatpush1.msra.mxu0 0.0
    %1490 = vmatprep.subr.mxu0 0.0
    %1491 = vmatpush1.msra.mxu0 0.0
    %1492 = vmatprep.subr.mxu0 0.0
    %1493 = vmatpush1.msra.mxu0 0.0
    %1494 = vmatprep.subr.mxu0 0.0
    %1495 = vmatpush1.msra.mxu0 0.0
    %1496 = vmatprep.subr.mxu0 0.0
    %1497 = vmatpush1.msra.mxu0 0.0
    %1498 = vmatprep.subr.mxu0 0.0
    %1499 = vmatpush1.msra.mxu0 0.0
    %1500 = vmatprep.subr.mxu0 0.0
    %1501 = vmatpush1.msra.mxu0 0.0
    %1502 = vmatprep.subr.mxu0 0.0
    %1503 = vmatpush1.msra.mxu0 0.0
    %1504 = vmatprep.subr.mxu0 0.0
    %1505 = vmatpush1.msra.mxu0 0.0
    %1506 = vmatprep.subr.mxu0 0.0
    %1507 = vmatpush1.msra.mxu0 0.0
    %1508 = vmatprep.subr.mxu0 0.0
    %1509 = vmatpush1.msra.mxu0 %v65
    %1510 = vmatprep.subr.mxu0 0.0
    %1511 = vmatpush1.msra.mxu0 %v64
    %1512 = vmatprep.subr.mxu0 0.0
    %1513 = vmatpush1.msra.mxu0 %v63
    %1514 = vmatprep.subr.mxu0 0.0
    %1515 = vmatpush1.msra.mxu0 %v62
    %1516 = vmatprep.subr.mxu0 0.0
    %1517 = vmatpush2.msra.mxu0 0.0
    %1518 = vmatprep.subr.mxu0 0.0
    %1519 = vmatpush2.msra.mxu0 0.0
    %1520 = vmatprep.subr.mxu0 0.0
    %1521 = vmatpush2.msra.mxu0 0.0
    %1522 = vmatprep.subr.mxu0 0.0
    %1523 = vmatpush2.msra.mxu0 0.0
    %1524 = vmatprep.subr.mxu0 0.0
    %1525 = vmatpush2.msra.mxu0 0.0
    %1526 = vmatprep.subr.mxu0 0.0
    %1527 = vmatpush2.msra.mxu0 0.0
    %1528 = vmatprep.subr.mxu0 0.0
    %1529 = vmatpush2.msra.mxu0 0.0
    %1530 = vmatprep.subr.mxu0 0.0
    %1531 = vmatpush2.msra.mxu0 0.0
    %1532 = vmatprep.subr.mxu0 0.0
    %1533 = vmatpush2.msra.mxu0 0.0
    %1534 = vmatprep.subr.mxu0 0.0
    %1535 = vmatpush2.msra.mxu0 0.0
    %1536 = vmatprep.subr.mxu0 0.0
    %1537 = vmatpush2.msra.mxu0 0.0
    %1538 = vmatprep.subr.mxu0 0.0
    %1539 = vmatpush2.msra.mxu0 0.0
    %1540 = vmatprep.subr.mxu0 0.0
    %1541 = vmatpush2.msra.mxu0 0.0
    %1542 = vmatprep.subr.mxu0 0.0
    %1543 = vmatpush2.msra.mxu0 0.0
    %1544 = vmatprep.subr.mxu0 0.0
    %1545 = vmatpush2.msra.mxu0 0.0
    %1546 = vmatprep.subr.mxu0 0.0
    %1547 = vmatpush2.msra.mxu0 0.0
    %1548 = vmatprep.mubr.f32.mxu0 0.0
    %1549 = vmatmul.mubr.f32.gmra.mxu0 %v1482
    %v1550 = vpop.f32.mrf.mxu0
    %v1551 = vadd.f32 %v1352, %v1550
    %v1552 = vpop.f32.mrf.mxu0
    %1553 = vdwg.mxu0
    %v1554 = vxor.u32 %v1551, 2147483648
    %v1555 = vmul.f32 %v1554, 1.442695
    %v1556 = vpow.pop %v1555
    %v1557 = vadd.f32 %v1556, 1.0
    %v1558 = vrcp.pop %v1557
    %v1559 = vmul.f32 1.0, %v1558
    %v1560 = vtanh.pop %v1551
    %v1561 = vmul.f32 %v1559, %v1133
    %1563 = vrot.lane.b32.xlu0 %v1560, 64
    %v1564 = vpop.permute.xlu0 %1563
    %v1566 = vmul.f32 %v1559, %v1564
    %1568 = vrot.lane.b32.xlu0 %v1566, 32
    %v1569 = vpop.permute.xlu0 %1568
    %v1571 = vadd.f32 %v1561, %v1569
    %v1572 = vtanh.pop %v1571
    %1574 = vrot.lane.b32.xlu0 %v1572, 64
    %v1575 = vpop.permute.xlu0 %1574
    %v1577 = vmul.f32 %v1559, %v1575
    %1578 = vmatprep.subr.mxu0 0.0
    %1579 = vmatpush1.msra.mxu0 0.0
    %1580 = vmatprep.subr.mxu0 0.0
    %1581 = vmatpush1.msra.mxu0 0.0
    %1582 = vmatprep.subr.mxu0 0.0
    %1583 = vmatpush1.msra.mxu0 0.0
    %1584 = vmatprep.subr.mxu0 0.0
    %1585 = vmatpush1.msra.mxu0 0.0
    %1586 = vmatprep.subr.mxu0 0.0
    %1587 = vmatpush1.msra.mxu0 0.0
    %1588 = vmatprep.subr.mxu0 0.0
    %1589 = vmatpush1.msra.mxu0 0.0
    %1590 = vmatprep.subr.mxu0 0.0
    %1591 = vmatpush1.msra.mxu0 0.0
    %1592 = vmatprep.subr.mxu0 0.0
    %1593 = vmatpush1.msra.mxu0 0.0
    %1594 = vmatprep.subr.mxu0 0.0
    %1595 = vmatpush1.msra.mxu0 0.0
    %1596 = vmatprep.subr.mxu0 0.0
    %1597 = vmatpush1.msra.mxu0 0.0
    %1598 = vmatprep.subr.mxu0 0.0
    %1599 = vmatpush1.msra.mxu0 0.0
    %1600 = vmatprep.subr.mxu0 0.0
    %1601 = vmatpush1.msra.mxu0 0.0
    %1602 = vmatprep.subr.mxu0 0.0
    %1603 = vmatpush1.msra.mxu0 %v69
    %1604 = vmatprep.subr.mxu0 0.0
    %1605 = vmatpush1.msra.mxu0 %v68
    %1606 = vmatprep.subr.mxu0 0.0
    %1607 = vmatpush1.msra.mxu0 %v67
    %1608 = vmatprep.subr.mxu0 0.0
    %1609 = vmatpush1.msra.mxu0 %v66
    %1610 = vmatprep.subr.mxu0 0.0
    %1611 = vmatpush2.msra.mxu0 0.0
    %1612 = vmatprep.subr.mxu0 0.0
    %1613 = vmatpush2.msra.mxu0 0.0
    %1614 = vmatprep.subr.mxu0 0.0
    %1615 = vmatpush2.msra.mxu0 0.0
    %1616 = vmatprep.subr.mxu0 0.0
    %1617 = vmatpush2.msra.mxu0 0.0
    %1618 = vmatprep.subr.mxu0 0.0
    %1619 = vmatpush2.msra.mxu0 0.0
    %1620 = vmatprep.subr.mxu0 0.0
    %1621 = vmatpush2.msra.mxu0 0.0
    %1622 = vmatprep.subr.mxu0 0.0
    %1623 = vmatpush2.msra.mxu0 0.0
    %1624 = vmatprep.subr.mxu0 0.0
    %1625 = vmatpush2.msra.mxu0 0.0
    %1626 = vmatprep.subr.mxu0 0.0
    %1627 = vmatpush2.msra.mxu0 0.0
    %1628 = vmatprep.subr.mxu0 0.0
    %1629 = vmatpush2.msra.mxu0 0.0
    %1630 = vmatprep.subr.mxu0 0.0
    %1631 = vmatpush2.msra.mxu0 0.0
    %1632 = vmatprep.subr.mxu0 0.0
    %1633 = vmatpush2.msra.mxu0 0.0
    %1634 = vmatprep.subr.mxu0 0.0
    %1635 = vmatpush2.msra.mxu0 0.0
    %1636 = vmatprep.subr.mxu0 0.0
    %1637 = vmatpush2.msra.mxu0 0.0
    %1638 = vmatprep.subr.mxu0 0.0
    %1639 = vmatpush2.msra.mxu0 0.0
    %1640 = vmatprep.subr.mxu0 0.0
    %1641 = vmatpush2.msra.mxu0 0.0
    %1642 = vmatprep.mubr.f32.mxu0 0.0
    %1643 = vmatmul.mubr.f32.gmra.mxu0 %v1383
    %v1644 = vpop.f32.mrf.mxu0
    %v1645 = vadd.f32 0.0, %v1644
    %v1646 = vpop.f32.mrf.mxu0
    %1647 = vdwg.mxu0
    %1648 = vmatprep.subr.mxu0 0.0
    %1649 = vmatpush1.msra.mxu0 0.0
    %1650 = vmatprep.subr.mxu0 0.0
    %1651 = vmatpush1.msra.mxu0 0.0
    %1652 = vmatprep.subr.mxu0 0.0
    %1653 = vmatpush1.msra.mxu0 0.0
    %1654 = vmatprep.subr.mxu0 0.0
    %1655 = vmatpush1.msra.mxu0 0.0
    %1656 = vmatprep.subr.mxu0 0.0
    %1657 = vmatpush1.msra.mxu0 0.0
    %1658 = vmatprep.subr.mxu0 0.0
    %1659 = vmatpush1.msra.mxu0 0.0
    %1660 = vmatprep.subr.mxu0 0.0
    %1661 = vmatpush1.msra.mxu0 0.0
    %1662 = vmatprep.subr.mxu0 0.0
    %1663 = vmatpush1.msra.mxu0 0.0
    %1664 = vmatprep.subr.mxu0 0.0
    %1665 = vmatpush1.msra.mxu0 0.0
    %1666 = vmatprep.subr.mxu0 0.0
    %1667 = vmatpush1.msra.mxu0 0.0
    %1668 = vmatprep.subr.mxu0 0.0
    %1669 = vmatpush1.msra.mxu0 0.0
    %1670 = vmatprep.subr.mxu0 0.0
    %1671 = vmatpush1.msra.mxu0 0.0
    %1672 = vmatprep.subr.mxu0 0.0
    %1673 = vmatpush1.msra.mxu0 %v74
    %1674 = vmatprep.subr.mxu0 0.0
    %1675 = vmatpush1.msra.mxu0 %v73
    %1676 = vmatprep.subr.mxu0 0.0
    %1677 = vmatpush1.msra.mxu0 %v72
    %1678 = vmatprep.subr.mxu0 0.0
    %1679 = vmatpush1.msra.mxu0 %v71
    %1680 = vmatprep.subr.mxu0 0.0
    %1681 = vmatpush2.msra.mxu0 0.0
    %1682 = vmatprep.subr.mxu0 0.0
    %1683 = vmatpush2.msra.mxu0 0.0
    %1684 = vmatprep.subr.mxu0 0.0
    %1685 = vmatpush2.msra.mxu0 0.0
    %1686 = vmatprep.subr.mxu0 0.0
    %1687 = vmatpush2.msra.mxu0 0.0
    %1688 = vmatprep.subr.mxu0 0.0
    %1689 = vmatpush2.msra.mxu0 0.0
    %1690 = vmatprep.subr.mxu0 0.0
    %1691 = vmatpush2.msra.mxu0 0.0
    %1692 = vmatprep.subr.mxu0 0.0
    %1693 = vmatpush2.msra.mxu0 0.0
    %1694 = vmatprep.subr.mxu0 0.0
    %1695 = vmatpush2.msra.mxu0 0.0
    %1696 = vmatprep.subr.mxu0 0.0
    %1697 = vmatpush2.msra.mxu0 0.0
    %1698 = vmatprep.subr.mxu0 0.0
    %1699 = vmatpush2.msra.mxu0 0.0
    %1700 = vmatprep.subr.mxu0 0.0
    %1701 = vmatpush2.msra.mxu0 0.0
    %1702 = vmatprep.subr.mxu0 0.0
    %1703 = vmatpush2.msra.mxu0 0.0
    %1704 = vmatprep.subr.mxu0 0.0
    %1705 = vmatpush2.msra.mxu0 0.0
    %1706 = vmatprep.subr.mxu0 0.0
    %1707 = vmatpush2.msra.mxu0 0.0
    %1708 = vmatprep.subr.mxu0 0.0
    %1709 = vmatpush2.msra.mxu0 0.0
    %1710 = vmatprep.subr.mxu0 0.0
    %1711 = vmatpush2.msra.mxu0 0.0
    %1712 = vmatprep.mubr.f32.mxu0 0.0
    %1713 = vmatmul.mubr.f32.gmra.mxu0 %v1482
    %v1714 = vpop.f32.mrf.mxu0
    %v1715 = vadd.f32 %v769, %v1714
    %v1716 = vpop.f32.mrf.mxu0
    %1717 = vdwg.mxu0
    %1719 = vrot.lane.b32.xlu0 %v1577, 32
    %v1720 = vpop.permute.xlu0 %1719
    %v1721 = vsel %vm691, %v1720, 0
    %1723 = vmatprep.subr.mxu0 0.0
    %1724 = vmatpush1.msra.mxu0 0.0
    %1725 = vmatprep.subr.mxu0 0.0
    %1726 = vmatpush1.msra.mxu0 0.0
    %1727 = vmatprep.subr.mxu0 0.0
    %1728 = vmatpush1.msra.mxu0 0.0
    %1729 = vmatprep.subr.mxu0 0.0
    %1730 = vmatpush1.msra.mxu0 0.0
    %1731 = vmatprep.subr.mxu0 0.0
    %1732 = vmatpush1.msra.mxu0 0.0
    %1733 = vmatprep.subr.mxu0 0.0
    %1734 = vmatpush1.msra.mxu0 0.0
    %1735 = vmatprep.subr.mxu0 0.0
    %1736 = vmatpush1.msra.mxu0 0.0
    %1737 = vmatprep.subr.mxu0 0.0
    %1738 = vmatpush1.msra.mxu0 0.0
    %1739 = vmatprep.subr.mxu0 0.0
    %1740 = vmatpush1.msra.mxu0 0.0
    %1741 = vmatprep.subr.mxu0 0.0
    %1742 = vmatpush1.msra.mxu0 0.0
    %1743 = vmatprep.subr.mxu0 0.0
    %1744 = vmatpush1.msra.mxu0 0.0
    %1745 = vmatprep.subr.mxu0 0.0
    %1746 = vmatpush1.msra.mxu0 0.0
    %1747 = vmatprep.subr.mxu0 0.0
    %1748 = vmatpush1.msra.mxu0 %v79
    %1749 = vmatprep.subr.mxu0 0.0
    %1750 = vmatpush1.msra.mxu0 %v78
    %1751 = vmatprep.subr.mxu0 0.0
    %1752 = vmatpush1.msra.mxu0 %v77
    %1753 = vmatprep.subr.mxu0 0.0
    %1754 = vmatpush1.msra.mxu0 %v76
    %1755 = vmatprep.subr.mxu0 0.0
    %1756 = vmatpush2.msra.mxu0 0.0
    %1757 = vmatprep.subr.mxu0 0.0
    %1758 = vmatpush2.msra.mxu0 0.0
    %1759 = vmatprep.subr.mxu0 0.0
    %1760 = vmatpush2.msra.mxu0 0.0
    %1761 = vmatprep.subr.mxu0 0.0
    %1762 = vmatpush2.msra.mxu0 0.0
    %1763 = vmatprep.subr.mxu0 0.0
    %1764 = vmatpush2.msra.mxu0 0.0
    %1765 = vmatprep.subr.mxu0 0.0
    %1766 = vmatpush2.msra.mxu0 0.0
    %1767 = vmatprep.subr.mxu0 0.0
    %1768 = vmatpush2.msra.mxu0 0.0
    %1769 = vmatprep.subr.mxu0 0.0
    %1770 = vmatpush2.msra.mxu0 0.0
    %1771 = vmatprep.subr.mxu0 0.0
    %1772 = vmatpush2.msra.mxu0 0.0
    %1773 = vmatprep.subr.mxu0 0.0
    %1774 = vmatpush2.msra.mxu0 0.0
    %1775 = vmatprep.subr.mxu0 0.0
    %1776 = vmatpush2.msra.mxu0 0.0
    %1777 = vmatprep.subr.mxu0 0.0
    %1778 = vmatpush2.msra.mxu0 0.0
    %1779 = vmatprep.subr.mxu0 0.0
    %1780 = vmatpush2.msra.mxu0 0.0
    %1781 = vmatprep.subr.mxu0 0.0
    %1782 = vmatpush2.msra.mxu0 0.0
    %1783 = vmatprep.subr.mxu0 0.0
    %1784 = vmatpush2.msra.mxu0 0.0
    %1785 = vmatprep.subr.mxu0 0.0
    %1786 = vmatpush2.msra.mxu0 0.0
    %1787 = vmatprep.mubr.f32.mxu0 0.0
    %1788 = vmatmul.mubr.f32.gmra.mxu0 %v1721
    %v1789 = vpop.f32.mrf.mxu0
    %v1790 = vadd.f32 %v845, %v1789
    %v1791 = vpop.f32.mrf.mxu0
    %1792 = vdwg.mxu0
    %v1793 = vadd.f32 %v313, %v1645
    %v1794 = vxor.u32 %v1793, 2147483648
    %v1795 = vmul.f32 %v1794, 1.442695
    %v1796 = vpow.pop %v1795
    %v1797 = vadd.f32 %v1796, 1.0
    %v1798 = vrcp.pop %v1797
    %v1799 = vmul.f32 1.0, %v1798
    %v1800 = vtanh.pop %v1793
    %v1801 = vmul.f32 %v1799, %v1373
    %1803 = vrot.lane.b32.xlu0 %v1800, 64
    %v1804 = vpop.permute.xlu0 %1803
    %v1806 = vmul.f32 %v1799, %v1804
    %1808 = vrot.lane.b32.xlu0 %v1806, 32
    %v1809 = vpop.permute.xlu0 %1808
    %v1811 = vadd.f32 %v1801, %v1809
    %v1812 = vtanh.pop %v1811
    %1814 = vrot.lane.b32.xlu0 %v1812, 64
    %v1815 = vpop.permute.xlu0 %1814
    %v1817 = vmul.f32 %v1799, %v1815
    %1819 = vrot.lane.b32.xlu0 %v1817, 32
    %v1820 = vpop.permute.xlu0 %1819
    %v1821 = vsel %vm691, %v1820, 0
    %1823 = vmatprep.subr.mxu0 0.0
    %1824 = vmatpush1.msra.mxu0 0.0
    %1825 = vmatprep.subr.mxu0 0.0
    %1826 = vmatpush1.msra.mxu0 0.0
    %1827 = vmatprep.subr.mxu0 0.0
    %1828 = vmatpush1.msra.mxu0 0.0
    %1829 = vmatprep.subr.mxu0 0.0
    %1830 = vmatpush1.msra.mxu0 0.0
    %1831 = vmatprep.subr.mxu0 0.0
    %1832 = vmatpush1.msra.mxu0 0.0
    %1833 = vmatprep.subr.mxu0 0.0
    %1834 = vmatpush1.msra.mxu0 0.0
    %1835 = vmatprep.subr.mxu0 0.0
    %1836 = vmatpush1.msra.mxu0 0.0
    %1837 = vmatprep.subr.mxu0 0.0
    %1838 = vmatpush1.msra.mxu0 0.0
    %1839 = vmatprep.subr.mxu0 0.0
    %1840 = vmatpush1.msra.mxu0 0.0
    %1841 = vmatprep.subr.mxu0 0.0
    %1842 = vmatpush1.msra.mxu0 0.0
    %1843 = vmatprep.subr.mxu0 0.0
    %1844 = vmatpush1.msra.mxu0 0.0
    %1845 = vmatprep.subr.mxu0 0.0
    %1846 = vmatpush1.msra.mxu0 0.0
    %1847 = vmatprep.subr.mxu0 0.0
    %1848 = vmatpush1.msra.mxu0 %v60
    %1849 = vmatprep.subr.mxu0 0.0
    %1850 = vmatpush1.msra.mxu0 %v59
    %1851 = vmatprep.subr.mxu0 0.0
    %1852 = vmatpush1.msra.mxu0 %v58
    %1853 = vmatprep.subr.mxu0 0.0
    %1854 = vmatpush1.msra.mxu0 %v57
    %1855 = vmatprep.subr.mxu0 0.0
    %1856 = vmatpush2.msra.mxu0 0.0
    %1857 = vmatprep.subr.mxu0 0.0
    %1858 = vmatpush2.msra.mxu0 0.0
    %1859 = vmatprep.subr.mxu0 0.0
    %1860 = vmatpush2.msra.mxu0 0.0
    %1861 = vmatprep.subr.mxu0 0.0
    %1862 = vmatpush2.msra.mxu0 0.0
    %1863 = vmatprep.subr.mxu0 0.0
    %1864 = vmatpush2.msra.mxu0 0.0
    %1865 = vmatprep.subr.mxu0 0.0
    %1866 = vmatpush2.msra.mxu0 0.0
    %1867 = vmatprep.subr.mxu0 0.0
    %1868 = vmatpush2.msra.mxu0 0.0
    %1869 = vmatprep.subr.mxu0 0.0
    %1870 = vmatpush2.msra.mxu0 0.0
    %1871 = vmatprep.subr.mxu0 0.0
    %1872 = vmatpush2.msra.mxu0 0.0
    %1873 = vmatprep.subr.mxu0 0.0
    %1874 = vmatpush2.msra.mxu0 0.0
    %1875 = vmatprep.subr.mxu0 0.0
    %1876 = vmatpush2.msra.mxu0 0.0
    %1877 = vmatprep.subr.mxu0 0.0
    %1878 = vmatpush2.msra.mxu0 0.0
    %1879 = vmatprep.subr.mxu0 0.0
    %1880 = vmatpush2.msra.mxu0 0.0
    %1881 = vmatprep.subr.mxu0 0.0
    %1882 = vmatpush2.msra.mxu0 0.0
    %1883 = vmatprep.subr.mxu0 0.0
    %1884 = vmatpush2.msra.mxu0 0.0
    %1885 = vmatprep.subr.mxu0 0.0
    %1886 = vmatpush2.msra.mxu0 0.0
    %1887 = vmatprep.mubr.f32.mxu0 0.0
    %1888 = vmatmul.mubr.f32.gmra.mxu0 %v1821
    %v1889 = vpop.f32.mrf.mxu0
    %v1890 = vadd.f32 %v1715, %v1889
    %v1891 = vpop.f32.mrf.mxu0
    %1892 = vdwg.mxu0
    %v1893 = vxor.u32 %v1890, 2147483648
    %v1894 = vmul.f32 %v1893, 1.442695
    %v1895 = vpow.pop %v1894
    %v1896 = vadd.f32 %v1895, 1.0
    %v1897 = vrcp.pop %v1896
    %v1898 = vmul.f32 1.0, %v1897
    %v1899 = vtanh.pop %v1890
    %v1900 = vmul.f32 %v1898, %v1472
    %1902 = vrot.lane.b32.xlu0 %v1899, 64
    %v1903 = vpop.permute.xlu0 %1902
    %v1905 = vmul.f32 %v1898, %v1903
    %1907 = vrot.lane.b32.xlu0 %v1905, 32
    %v1908 = vpop.permute.xlu0 %1907
    %v1910 = vadd.f32 %v1900, %v1908
    %v1911 = vtanh.pop %v1910
    %1913 = vrot.lane.b32.xlu0 %v1911, 64
    %v1914 = vpop.permute.xlu0 %1913
    %v1916 = vmul.f32 %v1898, %v1914
    %1918 = vrot.lane.b32.xlu0 %v1916, 32
    %v1919 = vpop.permute.xlu0 %1918
    %v1920 = vsel %vm691, %v1919, 0
    %1922 = vmatprep.subr.mxu0 0.0
    %1923 = vmatpush1.msra.mxu0 0.0
    %1924 = vmatprep.subr.mxu0 0.0
    %1925 = vmatpush1.msra.mxu0 0.0
    %1926 = vmatprep.subr.mxu0 0.0
    %1927 = vmatpush1.msra.mxu0 0.0
    %1928 = vmatprep.subr.mxu0 0.0
    %1929 = vmatpush1.msra.mxu0 0.0
    %1930 = vmatprep.subr.mxu0 0.0
    %1931 = vmatpush1.msra.mxu0 0.0
    %1932 = vmatprep.subr.mxu0 0.0
    %1933 = vmatpush1.msra.mxu0 0.0
    %1934 = vmatprep.subr.mxu0 0.0
    %1935 = vmatpush1.msra.mxu0 0.0
    %1936 = vmatprep.subr.mxu0 0.0
    %1937 = vmatpush1.msra.mxu0 0.0
    %1938 = vmatprep.subr.mxu0 0.0
    %1939 = vmatpush1.msra.mxu0 0.0
    %1940 = vmatprep.subr.mxu0 0.0
    %1941 = vmatpush1.msra.mxu0 0.0
    %1942 = vmatprep.subr.mxu0 0.0
    %1943 = vmatpush1.msra.mxu0 0.0
    %1944 = vmatprep.subr.mxu0 0.0
    %1945 = vmatpush1.msra.mxu0 0.0
    %1946 = vmatprep.subr.mxu0 0.0
    %1947 = vmatpush1.msra.mxu0 %v65
    %1948 = vmatprep.subr.mxu0 0.0
    %1949 = vmatpush1.msra.mxu0 %v64
    %1950 = vmatprep.subr.mxu0 0.0
    %1951 = vmatpush1.msra.mxu0 %v63
    %1952 = vmatprep.subr.mxu0 0.0
    %1953 = vmatpush1.msra.mxu0 %v62
    %1954 = vmatprep.subr.mxu0 0.0
    %1955 = vmatpush2.msra.mxu0 0.0
    %1956 = vmatprep.subr.mxu0 0.0
    %1957 = vmatpush2.msra.mxu0 0.0
    %1958 = vmatprep.subr.mxu0 0.0
    %1959 = vmatpush2.msra.mxu0 0.0
    %1960 = vmatprep.subr.mxu0 0.0
    %1961 = vmatpush2.msra.mxu0 0.0
    %1962 = vmatprep.subr.mxu0 0.0
    %1963 = vmatpush2.msra.mxu0 0.0
    %1964 = vmatprep.subr.mxu0 0.0
    %1965 = vmatpush2.msra.mxu0 0.0
    %1966 = vmatprep.subr.mxu0 0.0
    %1967 = vmatpush2.msra.mxu0 0.0
    %1968 = vmatprep.subr.mxu0 0.0
    %1969 = vmatpush2.msra.mxu0 0.0
    %1970 = vmatprep.subr.mxu0 0.0
    %1971 = vmatpush2.msra.mxu0 0.0
    %1972 = vmatprep.subr.mxu0 0.0
    %1973 = vmatpush2.msra.mxu0 0.0
    %1974 = vmatprep.subr.mxu0 0.0
    %1975 = vmatpush2.msra.mxu0 0.0
    %1976 = vmatprep.subr.mxu0 0.0
    %1977 = vmatpush2.msra.mxu0 0.0
    %1978 = vmatprep.subr.mxu0 0.0
    %1979 = vmatpush2.msra.mxu0 0.0
    %1980 = vmatprep.subr.mxu0 0.0
    %1981 = vmatpush2.msra.mxu0 0.0
    %1982 = vmatprep.subr.mxu0 0.0
    %1983 = vmatpush2.msra.mxu0 0.0
    %1984 = vmatprep.subr.mxu0 0.0
    %1985 = vmatpush2.msra.mxu0 0.0
    %1986 = vmatprep.mubr.f32.mxu0 0.0
    %1987 = vmatmul.mubr.f32.gmra.mxu0 %v1920
    %v1988 = vpop.f32.mrf.mxu0
    %v1989 = vadd.f32 %v1790, %v1988
    %v1990 = vpop.f32.mrf.mxu0
    %1991 = vdwg.mxu0
    %v1992 = vxor.u32 %v1989, 2147483648
    %v1993 = vmul.f32 %v1992, 1.442695
    %v1994 = vpow.pop %v1993
    %v1995 = vadd.f32 %v1994, 1.0
    %v1996 = vrcp.pop %v1995
    %v1997 = vmul.f32 1.0, %v1996
    %v1998 = vtanh.pop %v1989
    %v1999 = vmul.f32 %v1997, %v1571
    %2001 = vrot.lane.b32.xlu0 %v1998, 64
    %v2002 = vpop.permute.xlu0 %2001
    %v2004 = vmul.f32 %v1997, %v2002
    %2006 = vrot.lane.b32.xlu0 %v2004, 32
    %v2007 = vpop.permute.xlu0 %2006
    %v2009 = vadd.f32 %v1999, %v2007
    %v2010 = vtanh.pop %v2009
    %2012 = vrot.lane.b32.xlu0 %v2010, 64
    %v2013 = vpop.permute.xlu0 %2012
    %v2015 = vmul.f32 %v1997, %v2013
    %2016 = vmatprep.subr.mxu0 0.0
    %2017 = vmatpush1.msra.mxu0 0.0
    %2018 = vmatprep.subr.mxu0 0.0
    %2019 = vmatpush1.msra.mxu0 0.0
    %2020 = vmatprep.subr.mxu0 0.0
    %2021 = vmatpush1.msra.mxu0 0.0
    %2022 = vmatprep.subr.mxu0 0.0
    %2023 = vmatpush1.msra.mxu0 0.0
    %2024 = vmatprep.subr.mxu0 0.0
    %2025 = vmatpush1.msra.mxu0 0.0
    %2026 = vmatprep.subr.mxu0 0.0
    %2027 = vmatpush1.msra.mxu0 0.0
    %2028 = vmatprep.subr.mxu0 0.0
    %2029 = vmatpush1.msra.mxu0 0.0
    %2030 = vmatprep.subr.mxu0 0.0
    %2031 = vmatpush1.msra.mxu0 0.0
    %2032 = vmatprep.subr.mxu0 0.0
    %2033 = vmatpush1.msra.mxu0 0.0
    %2034 = vmatprep.subr.mxu0 0.0
    %2035 = vmatpush1.msra.mxu0 0.0
    %2036 = vmatprep.subr.mxu0 0.0
    %2037 = vmatpush1.msra.mxu0 0.0
    %2038 = vmatprep.subr.mxu0 0.0
    %2039 = vmatpush1.msra.mxu0 0.0
    %2040 = vmatprep.subr.mxu0 0.0
    %2041 = vmatpush1.msra.mxu0 %v69
    %2042 = vmatprep.subr.mxu0 0.0
    %2043 = vmatpush1.msra.mxu0 %v68
    %2044 = vmatprep.subr.mxu0 0.0
    %2045 = vmatpush1.msra.mxu0 %v67
    %2046 = vmatprep.subr.mxu0 0.0
    %2047 = vmatpush1.msra.mxu0 %v66
    %2048 = vmatprep.subr.mxu0 0.0
    %2049 = vmatpush2.msra.mxu0 0.0
    %2050 = vmatprep.subr.mxu0 0.0
    %2051 = vmatpush2.msra.mxu0 0.0
    %2052 = vmatprep.subr.mxu0 0.0
    %2053 = vmatpush2.msra.mxu0 0.0
    %2054 = vmatprep.subr.mxu0 0.0
    %2055 = vmatpush2.msra.mxu0 0.0
    %2056 = vmatprep.subr.mxu0 0.0
    %2057 = vmatpush2.msra.mxu0 0.0
    %2058 = vmatprep.subr.mxu0 0.0
    %2059 = vmatpush2.msra.mxu0 0.0
    %2060 = vmatprep.subr.mxu0 0.0
    %2061 = vmatpush2.msra.mxu0 0.0
    %2062 = vmatprep.subr.mxu0 0.0
    %2063 = vmatpush2.msra.mxu0 0.0
    %2064 = vmatprep.subr.mxu0 0.0
    %2065 = vmatpush2.msra.mxu0 0.0
    %2066 = vmatprep.subr.mxu0 0.0
    %2067 = vmatpush2.msra.mxu0 0.0
    %2068 = vmatprep.subr.mxu0 0.0
    %2069 = vmatpush2.msra.mxu0 0.0
    %2070 = vmatprep.subr.mxu0 0.0
    %2071 = vmatpush2.msra.mxu0 0.0
    %2072 = vmatprep.subr.mxu0 0.0
    %2073 = vmatpush2.msra.mxu0 0.0
    %2074 = vmatprep.subr.mxu0 0.0
    %2075 = vmatpush2.msra.mxu0 0.0
    %2076 = vmatprep.subr.mxu0 0.0
    %2077 = vmatpush2.msra.mxu0 0.0
    %2078 = vmatprep.subr.mxu0 0.0
    %2079 = vmatpush2.msra.mxu0 0.0
    %2080 = vmatprep.mubr.f32.mxu0 0.0
    %2081 = vmatmul.mubr.f32.gmra.mxu0 %v1821
    %v2082 = vpop.f32.mrf.mxu0
    %v2083 = vadd.f32 0.0, %v2082
    %v2084 = vpop.f32.mrf.mxu0
    %2085 = vdwg.mxu0
    %2086 = vmatprep.subr.mxu0 0.0
    %2087 = vmatpush1.msra.mxu0 0.0
    %2088 = vmatprep.subr.mxu0 0.0
    %2089 = vmatpush1.msra.mxu0 0.0
    %2090 = vmatprep.subr.mxu0 0.0
    %2091 = vmatpush1.msra.mxu0 0.0
    %2092 = vmatprep.subr.mxu0 0.0
    %2093 = vmatpush1.msra.mxu0 0.0
    %2094 = vmatprep.subr.mxu0 0.0
    %2095 = vmatpush1.msra.mxu0 0.0
    %2096 = vmatprep.subr.mxu0 0.0
    %2097 = vmatpush1.msra.mxu0 0.0
    %2098 = vmatprep.subr.mxu0 0.0
    %2099 = vmatpush1.msra.mxu0 0.0
    %2100 = vmatprep.subr.mxu0 0.0
    %2101 = vmatpush1.msra.mxu0 0.0
    %2102 = vmatprep.subr.mxu0 0.0
    %2103 = vmatpush1.msra.mxu0 0.0
    %2104 = vmatprep.subr.mxu0 0.0
    %2105 = vmatpush1.msra.mxu0 0.0
    %2106 = vmatprep.subr.mxu0 0.0
    %2107 = vmatpush1.msra.mxu0 0.0
    %2108 = vmatprep.subr.mxu0 0.0
    %2109 = vmatpush1.msra.mxu0 0.0
    %2110 = vmatprep.subr.mxu0 0.0
    %2111 = vmatpush1.msra.mxu0 %v74
    %2112 = vmatprep.subr.mxu0 0.0
    %2113 = vmatpush1.msra.mxu0 %v73
    %2114 = vmatprep.subr.mxu0 0.0
    %2115 = vmatpush1.msra.mxu0 %v72
    %2116 = vmatprep.subr.mxu0 0.0
    %2117 = vmatpush1.msra.mxu0 %v71
    %2118 = vmatprep.subr.mxu0 0.0
    %2119 = vmatpush2.msra.mxu0 0.0
    %2120 = vmatprep.subr.mxu0 0.0
    %2121 = vmatpush2.msra.mxu0 0.0
    %2122 = vmatprep.subr.mxu0 0.0
    %2123 = vmatpush2.msra.mxu0 0.0
    %2124 = vmatprep.subr.mxu0 0.0
    %2125 = vmatpush2.msra.mxu0 0.0
    %2126 = vmatprep.subr.mxu0 0.0
    %2127 = vmatpush2.msra.mxu0 0.0
    %2128 = vmatprep.subr.mxu0 0.0
    %2129 = vmatpush2.msra.mxu0 0.0
    %2130 = vmatprep.subr.mxu0 0.0
    %2131 = vmatpush2.msra.mxu0 0.0
    %2132 = vmatprep.subr.mxu0 0.0
    %2133 = vmatpush2.msra.mxu0 0.0
    %2134 = vmatprep.subr.mxu0 0.0
    %2135 = vmatpush2.msra.mxu0 0.0
    %2136 = vmatprep.subr.mxu0 0.0
    %2137 = vmatpush2.msra.mxu0 0.0
    %2138 = vmatprep.subr.mxu0 0.0
    %2139 = vmatpush2.msra.mxu0 0.0
    %2140 = vmatprep.subr.mxu0 0.0
    %2141 = vmatpush2.msra.mxu0 0.0
    %2142 = vmatprep.subr.mxu0 0.0
    %2143 = vmatpush2.msra.mxu0 0.0
    %2144 = vmatprep.subr.mxu0 0.0
    %2145 = vmatpush2.msra.mxu0 0.0
    %2146 = vmatprep.subr.mxu0 0.0
    %2147 = vmatpush2.msra.mxu0 0.0
    %2148 = vmatprep.subr.mxu0 0.0
    %2149 = vmatpush2.msra.mxu0 0.0
    %2150 = vmatprep.mubr.f32.mxu0 0.0
    %2151 = vmatmul.mubr.f32.gmra.mxu0 %v1920
    %v2152 = vpop.f32.mrf.mxu0
    %v2153 = vadd.f32 %v769, %v2152
    %v2154 = vpop.f32.mrf.mxu0
    %2155 = vdwg.mxu0
    %2157 = vrot.lane.b32.xlu0 %v2015, 32
    %v2158 = vpop.permute.xlu0 %2157
    %v2159 = vsel %vm691, %v2158, 0
    %2161 = vmatprep.subr.mxu0 0.0
    %2162 = vmatpush1.msra.mxu0 0.0
    %2163 = vmatprep.subr.mxu0 0.0
    %2164 = vmatpush1.msra.mxu0 0.0
    %2165 = vmatprep.subr.mxu0 0.0
    %2166 = vmatpush1.msra.mxu0 0.0
    %2167 = vmatprep.subr.mxu0 0.0
    %2168 = vmatpush1.msra.mxu0 0.0
    %2169 = vmatprep.subr.mxu0 0.0
    %2170 = vmatpush1.msra.mxu0 0.0
    %2171 = vmatprep.subr.mxu0 0.0
    %2172 = vmatpush1.msra.mxu0 0.0
    %2173 = vmatprep.subr.mxu0 0.0
    %2174 = vmatpush1.msra.mxu0 0.0
    %2175 = vmatprep.subr.mxu0 0.0
    %2176 = vmatpush1.msra.mxu0 0.0
    %2177 = vmatprep.subr.mxu0 0.0
    %2178 = vmatpush1.msra.mxu0 0.0
    %2179 = vmatprep.subr.mxu0 0.0
    %2180 = vmatpush1.msra.mxu0 0.0
    %2181 = vmatprep.subr.mxu0 0.0
    %2182 = vmatpush1.msra.mxu0 0.0
    %2183 = vmatprep.subr.mxu0 0.0
    %2184 = vmatpush1.msra.mxu0 0.0
    %2185 = vmatprep.subr.mxu0 0.0
    %2186 = vmatpush1.msra.mxu0 %v79
    %2187 = vmatprep.subr.mxu0 0.0
    %2188 = vmatpush1.msra.mxu0 %v78
    %2189 = vmatprep.subr.mxu0 0.0
    %2190 = vmatpush1.msra.mxu0 %v77
    %2191 = vmatprep.subr.mxu0 0.0
    %2192 = vmatpush1.msra.mxu0 %v76
    %2193 = vmatprep.subr.mxu0 0.0
    %2194 = vmatpush2.msra.mxu0 0.0
    %2195 = vmatprep.subr.mxu0 0.0
    %2196 = vmatpush2.msra.mxu0 0.0
    %2197 = vmatprep.subr.mxu0 0.0
    %2198 = vmatpush2.msra.mxu0 0.0
    %2199 = vmatprep.subr.mxu0 0.0
    %2200 = vmatpush2.msra.mxu0 0.0
    %2201 = vmatprep.subr.mxu0 0.0
    %2202 = vmatpush2.msra.mxu0 0.0
    %2203 = vmatprep.subr.mxu0 0.0
    %2204 = vmatpush2.msra.mxu0 0.0
    %2205 = vmatprep.subr.mxu0 0.0
    %2206 = vmatpush2.msra.mxu0 0.0
    %2207 = vmatprep.subr.mxu0 0.0
    %2208 = vmatpush2.msra.mxu0 0.0
    %2209 = vmatprep.subr.mxu0 0.0
    %2210 = vmatpush2.msra.mxu0 0.0
    %2211 = vmatprep.subr.mxu0 0.0
    %2212 = vmatpush2.msra.mxu0 0.0
    %2213 = vmatprep.subr.mxu0 0.0
    %2214 = vmatpush2.msra.mxu0 0.0
    %2215 = vmatprep.subr.mxu0 0.0
    %2216 = vmatpush2.msra.mxu0 0.0
    %2217 = vmatprep.subr.mxu0 0.0
    %2218 = vmatpush2.msra.mxu0 0.0
    %2219 = vmatprep.subr.mxu0 0.0
    %2220 = vmatpush2.msra.mxu0 0.0
    %2221 = vmatprep.subr.mxu0 0.0
    %2222 = vmatpush2.msra.mxu0 0.0
    %2223 = vmatprep.subr.mxu0 0.0
    %2224 = vmatpush2.msra.mxu0 0.0
    %2225 = vmatprep.mubr.f32.mxu0 0.0
    %2226 = vmatmul.mubr.f32.gmra.mxu0 %v2159
    %v2227 = vpop.f32.mrf.mxu0
    %v2228 = vadd.f32 %v845, %v2227
    %v2229 = vpop.f32.mrf.mxu0
    %2230 = vdwg.mxu0
    %v2231 = vadd.f32 %v388, %v2083
    %v2232 = vxor.u32 %v2231, 2147483648
    %v2233 = vmul.f32 %v2232, 1.442695
    %v2234 = vpow.pop %v2233
    %v2235 = vadd.f32 %v2234, 1.0
    %v2236 = vrcp.pop %v2235
    %v2237 = vmul.f32 1.0, %v2236
    %v2238 = vtanh.pop %v2231
    %v2239 = vmul.f32 %v2237, %v1811
    %2241 = vrot.lane.b32.xlu0 %v2238, 64
    %v2242 = vpop.permute.xlu0 %2241
    %v2244 = vmul.f32 %v2237, %v2242
    %2246 = vrot.lane.b32.xlu0 %v2244, 32
    %v2247 = vpop.permute.xlu0 %2246
    %v2249 = vadd.f32 %v2239, %v2247
    %v2250 = vtanh.pop %v2249
    %2252 = vrot.lane.b32.xlu0 %v2250, 64
    %v2253 = vpop.permute.xlu0 %2252
    %v2255 = vmul.f32 %v2237, %v2253
    %2257 = vrot.lane.b32.xlu0 %v2255, 32
    %v2258 = vpop.permute.xlu0 %2257
    %v2259 = vsel %vm691, %v2258, 0
    %2261 = vmatprep.subr.mxu0 0.0
    %2262 = vmatpush1.msra.mxu0 0.0
    %2263 = vmatprep.subr.mxu0 0.0
    %2264 = vmatpush1.msra.mxu0 0.0
    %2265 = vmatprep.subr.mxu0 0.0
    %2266 = vmatpush1.msra.mxu0 0.0
    %2267 = vmatprep.subr.mxu0 0.0
    %2268 = vmatpush1.msra.mxu0 0.0
    %2269 = vmatprep.subr.mxu0 0.0
    %2270 = vmatpush1.msra.mxu0 0.0
    %2271 = vmatprep.subr.mxu0 0.0
    %2272 = vmatpush1.msra.mxu0 0.0
    %2273 = vmatprep.subr.mxu0 0.0
    %2274 = vmatpush1.msra.mxu0 0.0
    %2275 = vmatprep.subr.mxu0 0.0
    %2276 = vmatpush1.msra.mxu0 0.0
    %2277 = vmatprep.subr.mxu0 0.0
    %2278 = vmatpush1.msra.mxu0 0.0
    %2279 = vmatprep.subr.mxu0 0.0
    %2280 = vmatpush1.msra.mxu0 0.0
    %2281 = vmatprep.subr.mxu0 0.0
    %2282 = vmatpush1.msra.mxu0 0.0
    %2283 = vmatprep.subr.mxu0 0.0
    %2284 = vmatpush1.msra.mxu0 0.0
    %2285 = vmatprep.subr.mxu0 0.0
    %2286 = vmatpush1.msra.mxu0 %v60
    %2287 = vmatprep.subr.mxu0 0.0
    %2288 = vmatpush1.msra.mxu0 %v59
    %2289 = vmatprep.subr.mxu0 0.0
    %2290 = vmatpush1.msra.mxu0 %v58
    %2291 = vmatprep.subr.mxu0 0.0
    %2292 = vmatpush1.msra.mxu0 %v57
    %2293 = vmatprep.subr.mxu0 0.0
    %2294 = vmatpush2.msra.mxu0 0.0
    %2295 = vmatprep.subr.mxu0 0.0
    %2296 = vmatpush2.msra.mxu0 0.0
    %2297 = vmatprep.subr.mxu0 0.0
    %2298 = vmatpush2.msra.mxu0 0.0
    %2299 = vmatprep.subr.mxu0 0.0
    %2300 = vmatpush2.msra.mxu0 0.0
    %2301 = vmatprep.subr.mxu0 0.0
    %2302 = vmatpush2.msra.mxu0 0.0
    %2303 = vmatprep.subr.mxu0 0.0
    %2304 = vmatpush2.msra.mxu0 0.0
    %2305 = vmatprep.subr.mxu0 0.0
    %2306 = vmatpush2.msra.mxu0 0.0
    %2307 = vmatprep.subr.mxu0 0.0
    %2308 = vmatpush2.msra.mxu0 0.0
    %2309 = vmatprep.subr.mxu0 0.0
    %2310 = vmatpush2.msra.mxu0 0.0
    %2311 = vmatprep.subr.mxu0 0.0
    %2312 = vmatpush2.msra.mxu0 0.0
    %2313 = vmatprep.subr.mxu0 0.0
    %2314 = vmatpush2.msra.mxu0 0.0
    %2315 = vmatprep.subr.mxu0 0.0
    %2316 = vmatpush2.msra.mxu0 0.0
    %2317 = vmatprep.subr.mxu0 0.0
    %2318 = vmatpush2.msra.mxu0 0.0
    %2319 = vmatprep.subr.mxu0 0.0
    %2320 = vmatpush2.msra.mxu0 0.0
    %2321 = vmatprep.subr.mxu0 0.0
    %2322 = vmatpush2.msra.mxu0 0.0
    %2323 = vmatprep.subr.mxu0 0.0
    %2324 = vmatpush2.msra.mxu0 0.0
    %2325 = vmatprep.mubr.f32.mxu0 0.0
    %2326 = vmatmul.mubr.f32.gmra.mxu0 %v2259
    %v2327 = vpop.f32.mrf.mxu0
    %v2328 = vadd.f32 %v2153, %v2327
    %v2329 = vpop.f32.mrf.mxu0
    %2330 = vdwg.mxu0
    %v2331 = vxor.u32 %v2328, 2147483648
    %v2332 = vmul.f32 %v2331, 1.442695
    %v2333 = vpow.pop %v2332
    %v2334 = vadd.f32 %v2333, 1.0
    %v2335 = vrcp.pop %v2334
    %v2336 = vmul.f32 1.0, %v2335
    %v2337 = vtanh.pop %v2328
    %v2338 = vmul.f32 %v2336, %v1910
    %2340 = vrot.lane.b32.xlu0 %v2337, 64
    %v2341 = vpop.permute.xlu0 %2340
    %v2343 = vmul.f32 %v2336, %v2341
    %2345 = vrot.lane.b32.xlu0 %v2343, 32
    %v2346 = vpop.permute.xlu0 %2345
    %v2348 = vadd.f32 %v2338, %v2346
    %v2349 = vtanh.pop %v2348
    %2351 = vrot.lane.b32.xlu0 %v2349, 64
    %v2352 = vpop.permute.xlu0 %2351
    %v2354 = vmul.f32 %v2336, %v2352
    %2356 = vrot.lane.b32.xlu0 %v2354, 32
    %v2357 = vpop.permute.xlu0 %2356
    %v2358 = vsel %vm691, %v2357, 0
    %2360 = vmatprep.subr.mxu0 0.0
    %2361 = vmatpush1.msra.mxu0 0.0
    %2362 = vmatprep.subr.mxu0 0.0
    %2363 = vmatpush1.msra.mxu0 0.0
    %2364 = vmatprep.subr.mxu0 0.0
    %2365 = vmatpush1.msra.mxu0 0.0
    %2366 = vmatprep.subr.mxu0 0.0
    %2367 = vmatpush1.msra.mxu0 0.0
    %2368 = vmatprep.subr.mxu0 0.0
    %2369 = vmatpush1.msra.mxu0 0.0
    %2370 = vmatprep.subr.mxu0 0.0
    %2371 = vmatpush1.msra.mxu0 0.0
    %2372 = vmatprep.subr.mxu0 0.0
    %2373 = vmatpush1.msra.mxu0 0.0
    %2374 = vmatprep.subr.mxu0 0.0
    %2375 = vmatpush1.msra.mxu0 0.0
    %2376 = vmatprep.subr.mxu0 0.0
    %2377 = vmatpush1.msra.mxu0 0.0
    %2378 = vmatprep.subr.mxu0 0.0
    %2379 = vmatpush1.msra.mxu0 0.0
    %2380 = vmatprep.subr.mxu0 0.0
    %2381 = vmatpush1.msra.mxu0 0.0
    %2382 = vmatprep.subr.mxu0 0.0
    %2383 = vmatpush1.msra.mxu0 0.0
    %2384 = vmatprep.subr.mxu0 0.0
    %2385 = vmatpush1.msra.mxu0 %v65
    %2386 = vmatprep.subr.mxu0 0.0
    %2387 = vmatpush1.msra.mxu0 %v64
    %2388 = vmatprep.subr.mxu0 0.0
    %2389 = vmatpush1.msra.mxu0 %v63
    %2390 = vmatprep.subr.mxu0 0.0
    %2391 = vmatpush1.msra.mxu0 %v62
    %2392 = vmatprep.subr.mxu0 0.0
    %2393 = vmatpush2.msra.mxu0 0.0
    %2394 = vmatprep.subr.mxu0 0.0
    %2395 = vmatpush2.msra.mxu0 0.0
    %2396 = vmatprep.subr.mxu0 0.0
    %2397 = vmatpush2.msra.mxu0 0.0
    %2398 = vmatprep.subr.mxu0 0.0
    %2399 = vmatpush2.msra.mxu0 0.0
    %2400 = vmatprep.subr.mxu0 0.0
    %2401 = vmatpush2.msra.mxu0 0.0
    %2402 = vmatprep.subr.mxu0 0.0
    %2403 = vmatpush2.msra.mxu0 0.0
    %2404 = vmatprep.subr.mxu0 0.0
    %2405 = vmatpush2.msra.mxu0 0.0
    %2406 = vmatprep.subr.mxu0 0.0
    %2407 = vmatpush2.msra.mxu0 0.0
    %2408 = vmatprep.subr.mxu0 0.0
    %2409 = vmatpush2.msra.mxu0 0.0
    %2410 = vmatprep.subr.mxu0 0.0
    %2411 = vmatpush2.msra.mxu0 0.0
    %2412 = vmatprep.subr.mxu0 0.0
    %2413 = vmatpush2.msra.mxu0 0.0
    %2414 = vmatprep.subr.mxu0 0.0
    %2415 = vmatpush2.msra.mxu0 0.0
    %2416 = vmatprep.subr.mxu0 0.0
    %2417 = vmatpush2.msra.mxu0 0.0
    %2418 = vmatprep.subr.mxu0 0.0
    %2419 = vmatpush2.msra.mxu0 0.0
    %2420 = vmatprep.subr.mxu0 0.0
    %2421 = vmatpush2.msra.mxu0 0.0
    %2422 = vmatprep.subr.mxu0 0.0
    %2423 = vmatpush2.msra.mxu0 0.0
    %2424 = vmatprep.mubr.f32.mxu0 0.0
    %2425 = vmatmul.mubr.f32.gmra.mxu0 %v2358
    %v2426 = vpop.f32.mrf.mxu0
    %v2427 = vadd.f32 %v2228, %v2426
    %v2428 = vpop.f32.mrf.mxu0
    %2429 = vdwg.mxu0
    %v2430 = vxor.u32 %v2427, 2147483648
    %v2431 = vmul.f32 %v2430, 1.442695
    %v2432 = vpow.pop %v2431
    %v2433 = vadd.f32 %v2432, 1.0
    %v2434 = vrcp.pop %v2433
    %v2435 = vmul.f32 1.0, %v2434
    %v2436 = vtanh.pop %v2427
    %v2437 = vmul.f32 %v2435, %v2009
    %2439 = vrot.lane.b32.xlu0 %v2436, 64
    %v2440 = vpop.permute.xlu0 %2439
    %v2442 = vmul.f32 %v2435, %v2440
    %2444 = vrot.lane.b32.xlu0 %v2442, 32
    %v2445 = vpop.permute.xlu0 %2444
    %v2447 = vadd.f32 %v2437, %v2445
    %v2448 = vtanh.pop %v2447
    %2450 = vrot.lane.b32.xlu0 %v2448, 64
    %v2451 = vpop.permute.xlu0 %2450
    %v2453 = vmul.f32 %v2435, %v2451
    %2454 = vmatprep.subr.mxu0 0.0
    %2455 = vmatpush1.msra.mxu0 0.0
    %2456 = vmatprep.subr.mxu0 0.0
    %2457 = vmatpush1.msra.mxu0 0.0
    %2458 = vmatprep.subr.mxu0 0.0
    %2459 = vmatpush1.msra.mxu0 0.0
    %2460 = vmatprep.subr.mxu0 0.0
    %2461 = vmatpush1.msra.mxu0 0.0
    %2462 = vmatprep.subr.mxu0 0.0
    %2463 = vmatpush1.msra.mxu0 0.0
    %2464 = vmatprep.subr.mxu0 0.0
    %2465 = vmatpush1.msra.mxu0 0.0
    %2466 = vmatprep.subr.mxu0 0.0
    %2467 = vmatpush1.msra.mxu0 0.0
    %2468 = vmatprep.subr.mxu0 0.0
    %2469 = vmatpush1.msra.mxu0 0.0
    %2470 = vmatprep.subr.mxu0 0.0
    %2471 = vmatpush1.msra.mxu0 0.0
    %2472 = vmatprep.subr.mxu0 0.0
    %2473 = vmatpush1.msra.mxu0 0.0
    %2474 = vmatprep.subr.mxu0 0.0
    %2475 = vmatpush1.msra.mxu0 0.0
    %2476 = vmatprep.subr.mxu0 0.0
    %2477 = vmatpush1.msra.mxu0 0.0
    %2478 = vmatprep.subr.mxu0 0.0
    %2479 = vmatpush1.msra.mxu0 %v69
    %2480 = vmatprep.subr.mxu0 0.0
    %2481 = vmatpush1.msra.mxu0 %v68
    %2482 = vmatprep.subr.mxu0 0.0
    %2483 = vmatpush1.msra.mxu0 %v67
    %2484 = vmatprep.subr.mxu0 0.0
    %2485 = vmatpush1.msra.mxu0 %v66
    %2486 = vmatprep.subr.mxu0 0.0
    %2487 = vmatpush2.msra.mxu0 0.0
    %2488 = vmatprep.subr.mxu0 0.0
    %2489 = vmatpush2.msra.mxu0 0.0
    %2490 = vmatprep.subr.mxu0 0.0
    %2491 = vmatpush2.msra.mxu0 0.0
    %2492 = vmatprep.subr.mxu0 0.0
    %2493 = vmatpush2.msra.mxu0 0.0
    %2494 = vmatprep.subr.mxu0 0.0
    %2495 = vmatpush2.msra.mxu0 0.0
    %2496 = vmatprep.subr.mxu0 0.0
    %2497 = vmatpush2.msra.mxu0 0.0
    %2498 = vmatprep.subr.mxu0 0.0
    %2499 = vmatpush2.msra.mxu0 0.0
    %2500 = vmatprep.subr.mxu0 0.0
    %2501 = vmatpush2.msra.mxu0 0.0
    %2502 = vmatprep.subr.mxu0 0.0
    %2503 = vmatpush2.msra.mxu0 0.0
    %2504 = vmatprep.subr.mxu0 0.0
    %2505 = vmatpush2.msra.mxu0 0.0
    %2506 = vmatprep.subr.mxu0 0.0
    %2507 = vmatpush2.msra.mxu0 0.0
    %2508 = vmatprep.subr.mxu0 0.0
    %2509 = vmatpush2.msra.mxu0 0.0
    %2510 = vmatprep.subr.mxu0 0.0
    %2511 = vmatpush2.msra.mxu0 0.0
    %2512 = vmatprep.subr.mxu0 0.0
    %2513 = vmatpush2.msra.mxu0 0.0
    %2514 = vmatprep.subr.mxu0 0.0
    %2515 = vmatpush2.msra.mxu0 0.0
    %2516 = vmatprep.subr.mxu0 0.0
    %2517 = vmatpush2.msra.mxu0 0.0
    %2518 = vmatprep.mubr.f32.mxu0 0.0
    %2519 = vmatmul.mubr.f32.gmra.mxu0 %v2259
    %v2520 = vpop.f32.mrf.mxu0
    %v2521 = vadd.f32 0.0, %v2520
    %v2522 = vpop.f32.mrf.mxu0
    %2523 = vdwg.mxu0
    %2524 = vmatprep.subr.mxu0 0.0
    %2525 = vmatpush1.msra.mxu0 0.0
    %2526 = vmatprep.subr.mxu0 0.0
    %2527 = vmatpush1.msra.mxu0 0.0
    %2528 = vmatprep.subr.mxu0 0.0
    %2529 = vmatpush1.msra.mxu0 0.0
    %2530 = vmatprep.subr.mxu0 0.0
    %2531 = vmatpush1.msra.mxu0 0.0
    %2532 = vmatprep.subr.mxu0 0.0
    %2533 = vmatpush1.msra.mxu0 0.0
    %2534 = vmatprep.subr.mxu0 0.0
    %2535 = vmatpush1.msra.mxu0 0.0
    %2536 = vmatprep.subr.mxu0 0.0
    %2537 = vmatpush1.msra.mxu0 0.0
    %2538 = vmatprep.subr.mxu0 0.0
    %2539 = vmatpush1.msra.mxu0 0.0
    %2540 = vmatprep.subr.mxu0 0.0
    %2541 = vmatpush1.msra.mxu0 0.0
    %2542 = vmatprep.subr.mxu0 0.0
    %2543 = vmatpush1.msra.mxu0 0.0
    %2544 = vmatprep.subr.mxu0 0.0
    %2545 = vmatpush1.msra.mxu0 0.0
    %2546 = vmatprep.subr.mxu0 0.0
    %2547 = vmatpush1.msra.mxu0 0.0
    %2548 = vmatprep.subr.mxu0 0.0
    %2549 = vmatpush1.msra.mxu0 %v74
    %2550 = vmatprep.subr.mxu0 0.0
    %2551 = vmatpush1.msra.mxu0 %v73
    %2552 = vmatprep.subr.mxu0 0.0
    %2553 = vmatpush1.msra.mxu0 %v72
    %2554 = vmatprep.subr.mxu0 0.0
    %2555 = vmatpush1.msra.mxu0 %v71
    %2556 = vmatprep.subr.mxu0 0.0
    %2557 = vmatpush2.msra.mxu0 0.0
    %2558 = vmatprep.subr.mxu0 0.0
    %2559 = vmatpush2.msra.mxu0 0.0
    %2560 = vmatprep.subr.mxu0 0.0
    %2561 = vmatpush2.msra.mxu0 0.0
    %2562 = vmatprep.subr.mxu0 0.0
    %2563 = vmatpush2.msra.mxu0 0.0
    %2564 = vmatprep.subr.mxu0 0.0
    %2565 = vmatpush2.msra.mxu0 0.0
    %2566 = vmatprep.subr.mxu0 0.0
    %2567 = vmatpush2.msra.mxu0 0.0
    %2568 = vmatprep.subr.mxu0 0.0
    %2569 = vmatpush2.msra.mxu0 0.0
    %2570 = vmatprep.subr.mxu0 0.0
    %2571 = vmatpush2.msra.mxu0 0.0
    %2572 = vmatprep.subr.mxu0 0.0
    %2573 = vmatpush2.msra.mxu0 0.0
    %2574 = vmatprep.subr.mxu0 0.0
    %2575 = vmatpush2.msra.mxu0 0.0
    %2576 = vmatprep.subr.mxu0 0.0
    %2577 = vmatpush2.msra.mxu0 0.0
    %2578 = vmatprep.subr.mxu0 0.0
    %2579 = vmatpush2.msra.mxu0 0.0
    %2580 = vmatprep.subr.mxu0 0.0
    %2581 = vmatpush2.msra.mxu0 0.0
    %2582 = vmatprep.subr.mxu0 0.0
    %2583 = vmatpush2.msra.mxu0 0.0
    %2584 = vmatprep.subr.mxu0 0.0
    %2585 = vmatpush2.msra.mxu0 0.0
    %2586 = vmatprep.subr.mxu0 0.0
    %2587 = vmatpush2.msra.mxu0 0.0
    %2588 = vmatprep.mubr.f32.mxu0 0.0
    %2589 = vmatmul.mubr.f32.gmra.mxu0 %v2358
    %v2590 = vpop.f32.mrf.mxu0
    %v2591 = vadd.f32 %v769, %v2590
    %v2592 = vpop.f32.mrf.mxu0
    %2593 = vdwg.mxu0
    %2595 = vrot.lane.b32.xlu0 %v2453, 32
    %v2596 = vpop.permute.xlu0 %2595
    %v2597 = vsel %vm691, %v2596, 0
    %2599 = vmatprep.subr.mxu0 0.0
    %2600 = vmatpush1.msra.mxu0 0.0
    %2601 = vmatprep.subr.mxu0 0.0
    %2602 = vmatpush1.msra.mxu0 0.0
    %2603 = vmatprep.subr.mxu0 0.0
    %2604 = vmatpush1.msra.mxu0 0.0
    %2605 = vmatprep.subr.mxu0 0.0
    %2606 = vmatpush1.msra.mxu0 0.0
    %2607 = vmatprep.subr.mxu0 0.0
    %2608 = vmatpush1.msra.mxu0 0.0
    %2609 = vmatprep.subr.mxu0 0.0
    %2610 = vmatpush1.msra.mxu0 0.0
    %2611 = vmatprep.subr.mxu0 0.0
    %2612 = vmatpush1.msra.mxu0 0.0
    %2613 = vmatprep.subr.mxu0 0.0
    %2614 = vmatpush1.msra.mxu0 0.0
    %2615 = vmatprep.subr.mxu0 0.0
    %2616 = vmatpush1.msra.mxu0 0.0
    %2617 = vmatprep.subr.mxu0 0.0
    %2618 = vmatpush1.msra.mxu0 0.0
    %2619 = vmatprep.subr.mxu0 0.0
    %2620 = vmatpush1.msra.mxu0 0.0
    %2621 = vmatprep.subr.mxu0 0.0
    %2622 = vmatpush1.msra.mxu0 0.0
    %2623 = vmatprep.subr.mxu0 0.0
    %2624 = vmatpush1.msra.mxu0 %v79
    %2625 = vmatprep.subr.mxu0 0.0
    %2626 = vmatpush1.msra.mxu0 %v78
    %2627 = vmatprep.subr.mxu0 0.0
    %2628 = vmatpush1.msra.mxu0 %v77
    %2629 = vmatprep.subr.mxu0 0.0
    %2630 = vmatpush1.msra.mxu0 %v76
    %2631 = vmatprep.subr.mxu0 0.0
    %2632 = vmatpush2.msra.mxu0 0.0
    %2633 = vmatprep.subr.mxu0 0.0
    %2634 = vmatpush2.msra.mxu0 0.0
    %2635 = vmatprep.subr.mxu0 0.0
    %2636 = vmatpush2.msra.mxu0 0.0
    %2637 = vmatprep.subr.mxu0 0.0
    %2638 = vmatpush2.msra.mxu0 0.0
    %2639 = vmatprep.subr.mxu0 0.0
    %2640 = vmatpush2.msra.mxu0 0.0
    %2641 = vmatprep.subr.mxu0 0.0
    %2642 = vmatpush2.msra.mxu0 0.0
    %2643 = vmatprep.subr.mxu0 0.0
    %2644 = vmatpush2.msra.mxu0 0.0
    %2645 = vmatprep.subr.mxu0 0.0
    %2646 = vmatpush2.msra.mxu0 0.0
    %2647 = vmatprep.subr.mxu0 0.0
    %2648 = vmatpush2.msra.mxu0 0.0
    %2649 = vmatprep.subr.mxu0 0.0
    %2650 = vmatpush2.msra.mxu0 0.0
    %2651 = vmatprep.subr.mxu0 0.0
    %2652 = vmatpush2.msra.mxu0 0.0
    %2653 = vmatprep.subr.mxu0 0.0
    %2654 = vmatpush2.msra.mxu0 0.0
    %2655 = vmatprep.subr.mxu0 0.0
    %2656 = vmatpush2.msra.mxu0 0.0
    %2657 = vmatprep.subr.mxu0 0.0
    %2658 = vmatpush2.msra.mxu0 0.0
    %2659 = vmatprep.subr.mxu0 0.0
    %2660 = vmatpush2.msra.mxu0 0.0
    %2661 = vmatprep.subr.mxu0 0.0
    %2662 = vmatpush2.msra.mxu0 0.0
    %2663 = vmatprep.mubr.f32.mxu0 0.0
    %2664 = vmatmul.mubr.f32.gmra.mxu0 %v2597
    %v2665 = vpop.f32.mrf.mxu0
    %v2666 = vadd.f32 %v845, %v2665
    %v2667 = vpop.f32.mrf.mxu0
    %2668 = vdwg.mxu0
    %v2669 = vadd.f32 %v463, %v2521
    %v2670 = vxor.u32 %v2669, 2147483648
    %v2671 = vmul.f32 %v2670, 1.442695
    %v2672 = vpow.pop %v2671
    %v2673 = vadd.f32 %v2672, 1.0
    %v2674 = vrcp.pop %v2673
    %v2675 = vmul.f32 1.0, %v2674
    %v2676 = vtanh.pop %v2669
    %v2677 = vmul.f32 %v2675, %v2249
    %2679 = vrot.lane.b32.xlu0 %v2676, 64
    %v2680 = vpop.permute.xlu0 %2679
    %v2682 = vmul.f32 %v2675, %v2680
    %2684 = vrot.lane.b32.xlu0 %v2682, 32
    %v2685 = vpop.permute.xlu0 %2684
    %v2687 = vadd.f32 %v2677, %v2685
    %v2688 = vtanh.pop %v2687
    %2690 = vrot.lane.b32.xlu0 %v2688, 64
    %v2691 = vpop.permute.xlu0 %2690
    %v2693 = vmul.f32 %v2675, %v2691
    %2695 = vrot.lane.b32.xlu0 %v2693, 32
    %v2696 = vpop.permute.xlu0 %2695
    %v2697 = vsel %vm691, %v2696, 0
    %2699 = vmatprep.subr.mxu0 0.0
    %2700 = vmatpush1.msra.mxu0 0.0
    %2701 = vmatprep.subr.mxu0 0.0
    %2702 = vmatpush1.msra.mxu0 0.0
    %2703 = vmatprep.subr.mxu0 0.0
    %2704 = vmatpush1.msra.mxu0 0.0
    %2705 = vmatprep.subr.mxu0 0.0
    %2706 = vmatpush1.msra.mxu0 0.0
    %2707 = vmatprep.subr.mxu0 0.0
    %2708 = vmatpush1.msra.mxu0 0.0
    %2709 = vmatprep.subr.mxu0 0.0
    %2710 = vmatpush1.msra.mxu0 0.0
    %2711 = vmatprep.subr.mxu0 0.0
    %2712 = vmatpush1.msra.mxu0 0.0
    %2713 = vmatprep.subr.mxu0 0.0
    %2714 = vmatpush1.msra.mxu0 0.0
    %2715 = vmatprep.subr.mxu0 0.0
    %2716 = vmatpush1.msra.mxu0 0.0
    %2717 = vmatprep.subr.mxu0 0.0
    %2718 = vmatpush1.msra.mxu0 0.0
    %2719 = vmatprep.subr.mxu0 0.0
    %2720 = vmatpush1.msra.mxu0 0.0
    %2721 = vmatprep.subr.mxu0 0.0
    %2722 = vmatpush1.msra.mxu0 0.0
    %2723 = vmatprep.subr.mxu0 0.0
    %2724 = vmatpush1.msra.mxu0 %v60
    %2725 = vmatprep.subr.mxu0 0.0
    %2726 = vmatpush1.msra.mxu0 %v59
    %2727 = vmatprep.subr.mxu0 0.0
    %2728 = vmatpush1.msra.mxu0 %v58
    %2729 = vmatprep.subr.mxu0 0.0
    %2730 = vmatpush1.msra.mxu0 %v57
    %2731 = vmatprep.subr.mxu0 0.0
    %2732 = vmatpush2.msra.mxu0 0.0
    %2733 = vmatprep.subr.mxu0 0.0
    %2734 = vmatpush2.msra.mxu0 0.0
    %2735 = vmatprep.subr.mxu0 0.0
    %2736 = vmatpush2.msra.mxu0 0.0
    %2737 = vmatprep.subr.mxu0 0.0
    %2738 = vmatpush2.msra.mxu0 0.0
    %2739 = vmatprep.subr.mxu0 0.0
    %2740 = vmatpush2.msra.mxu0 0.0
    %2741 = vmatprep.subr.mxu0 0.0
    %2742 = vmatpush2.msra.mxu0 0.0
    %2743 = vmatprep.subr.mxu0 0.0
    %2744 = vmatpush2.msra.mxu0 0.0
    %2745 = vmatprep.subr.mxu0 0.0
    %2746 = vmatpush2.msra.mxu0 0.0
    %2747 = vmatprep.subr.mxu0 0.0
    %2748 = vmatpush2.msra.mxu0 0.0
    %2749 = vmatprep.subr.mxu0 0.0
    %2750 = vmatpush2.msra.mxu0 0.0
    %2751 = vmatprep.subr.mxu0 0.0
    %2752 = vmatpush2.msra.mxu0 0.0
    %2753 = vmatprep.subr.mxu0 0.0
    %2754 = vmatpush2.msra.mxu0 0.0
    %2755 = vmatprep.subr.mxu0 0.0
    %2756 = vmatpush2.msra.mxu0 0.0
    %2757 = vmatprep.subr.mxu0 0.0
    %2758 = vmatpush2.msra.mxu0 0.0
    %2759 = vmatprep.subr.mxu0 0.0
    %2760 = vmatpush2.msra.mxu0 0.0
    %2761 = vmatprep.subr.mxu0 0.0
    %2762 = vmatpush2.msra.mxu0 0.0
    %2763 = vmatprep.mubr.f32.mxu0 0.0
    %2764 = vmatmul.mubr.f32.gmra.mxu0 %v2697
    %v2765 = vpop.f32.mrf.mxu0
    %v2766 = vadd.f32 %v2591, %v2765
    %v2767 = vpop.f32.mrf.mxu0
    %2768 = vdwg.mxu0
    %v2769 = vxor.u32 %v2766, 2147483648
    %v2770 = vmul.f32 %v2769, 1.442695
    %v2771 = vpow.pop %v2770
    %v2772 = vadd.f32 %v2771, 1.0
    %v2773 = vrcp.pop %v2772
    %v2774 = vmul.f32 1.0, %v2773
    %v2775 = vtanh.pop %v2766
    %v2776 = vmul.f32 %v2774, %v2348
    %2778 = vrot.lane.b32.xlu0 %v2775, 64
    %v2779 = vpop.permute.xlu0 %2778
    %v2781 = vmul.f32 %v2774, %v2779
    %2783 = vrot.lane.b32.xlu0 %v2781, 32
    %v2784 = vpop.permute.xlu0 %2783
    %v2786 = vadd.f32 %v2776, %v2784
    %v2787 = vtanh.pop %v2786
    %2789 = vrot.lane.b32.xlu0 %v2787, 64
    %v2790 = vpop.permute.xlu0 %2789
    %v2792 = vmul.f32 %v2774, %v2790
    %2794 = vrot.lane.b32.xlu0 %v2792, 32
    %v2795 = vpop.permute.xlu0 %2794
    %v2796 = vsel %vm691, %v2795, 0
    %2798 = vmatprep.subr.mxu0 0.0
    %2799 = vmatpush1.msra.mxu0 0.0
    %2800 = vmatprep.subr.mxu0 0.0
    %2801 = vmatpush1.msra.mxu0 0.0
    %2802 = vmatprep.subr.mxu0 0.0
    %2803 = vmatpush1.msra.mxu0 0.0
    %2804 = vmatprep.subr.mxu0 0.0
    %2805 = vmatpush1.msra.mxu0 0.0
    %2806 = vmatprep.subr.mxu0 0.0
    %2807 = vmatpush1.msra.mxu0 0.0
    %2808 = vmatprep.subr.mxu0 0.0
    %2809 = vmatpush1.msra.mxu0 0.0
    %2810 = vmatprep.subr.mxu0 0.0
    %2811 = vmatpush1.msra.mxu0 0.0
    %2812 = vmatprep.subr.mxu0 0.0
    %2813 = vmatpush1.msra.mxu0 0.0
    %2814 = vmatprep.subr.mxu0 0.0
    %2815 = vmatpush1.msra.mxu0 0.0
    %2816 = vmatprep.subr.mxu0 0.0
    %2817 = vmatpush1.msra.mxu0 0.0
    %2818 = vmatprep.subr.mxu0 0.0
    %2819 = vmatpush1.msra.mxu0 0.0
    %2820 = vmatprep.subr.mxu0 0.0
    %2821 = vmatpush1.msra.mxu0 0.0
    %2822 = vmatprep.subr.mxu0 0.0
    %2823 = vmatpush1.msra.mxu0 %v65
    %2824 = vmatprep.subr.mxu0 0.0
    %2825 = vmatpush1.msra.mxu0 %v64
    %2826 = vmatprep.subr.mxu0 0.0
    %2827 = vmatpush1.msra.mxu0 %v63
    %2828 = vmatprep.subr.mxu0 0.0
    %2829 = vmatpush1.msra.mxu0 %v62
    %2830 = vmatprep.subr.mxu0 0.0
    %2831 = vmatpush2.msra.mxu0 0.0
    %2832 = vmatprep.subr.mxu0 0.0
    %2833 = vmatpush2.msra.mxu0 0.0
    %2834 = vmatprep.subr.mxu0 0.0
    %2835 = vmatpush2.msra.mxu0 0.0
    %2836 = vmatprep.subr.mxu0 0.0
    %2837 = vmatpush2.msra.mxu0 0.0
    %2838 = vmatprep.subr.mxu0 0.0
    %2839 = vmatpush2.msra.mxu0 0.0
    %2840 = vmatprep.subr.mxu0 0.0
    %2841 = vmatpush2.msra.mxu0 0.0
    %2842 = vmatprep.subr.mxu0 0.0
    %2843 = vmatpush2.msra.mxu0 0.0
    %2844 = vmatprep.subr.mxu0 0.0
    %2845 = vmatpush2.msra.mxu0 0.0
    %2846 = vmatprep.subr.mxu0 0.0
    %2847 = vmatpush2.msra.mxu0 0.0
    %2848 = vmatprep.subr.mxu0 0.0
    %2849 = vmatpush2.msra.mxu0 0.0
    %2850 = vmatprep.subr.mxu0 0.0
    %2851 = vmatpush2.msra.mxu0 0.0
    %2852 = vmatprep.subr.mxu0 0.0
    %2853 = vmatpush2.msra.mxu0 0.0
    %2854 = vmatprep.subr.mxu0 0.0
    %2855 = vmatpush2.msra.mxu0 0.0
    %2856 = vmatprep.subr.mxu0 0.0
    %2857 = vmatpush2.msra.mxu0 0.0
    %2858 = vmatprep.subr.mxu0 0.0
    %2859 = vmatpush2.msra.mxu0 0.0
    %2860 = vmatprep.subr.mxu0 0.0
    %2861 = vmatpush2.msra.mxu0 0.0
    %2862 = vmatprep.mubr.f32.mxu0 0.0
    %2863 = vmatmul.mubr.f32.gmra.mxu0 %v2796
    %v2864 = vpop.f32.mrf.mxu0
    %v2865 = vadd.f32 %v2666, %v2864
    %v2866 = vpop.f32.mrf.mxu0
    %2867 = vdwg.mxu0
    %v2868 = vxor.u32 %v2865, 2147483648
    %v2869 = vmul.f32 %v2868, 1.442695
    %v2870 = vpow.pop %v2869
    %v2871 = vadd.f32 %v2870, 1.0
    %v2872 = vrcp.pop %v2871
    %v2873 = vmul.f32 1.0, %v2872
    %v2874 = vtanh.pop %v2865
    %v2875 = vmul.f32 %v2873, %v2447
    %2877 = vrot.lane.b32.xlu0 %v2874, 64
    %v2878 = vpop.permute.xlu0 %2877
    %v2880 = vmul.f32 %v2873, %v2878
    %2882 = vrot.lane.b32.xlu0 %v2880, 32
    %v2883 = vpop.permute.xlu0 %2882
    %v2885 = vadd.f32 %v2875, %v2883
    %v2886 = vtanh.pop %v2885
    %2888 = vrot.lane.b32.xlu0 %v2886, 64
    %v2889 = vpop.permute.xlu0 %2888
    %v2891 = vmul.f32 %v2873, %v2889
    %2892 = vmatprep.subr.mxu0 0.0
    %2893 = vmatpush1.msra.mxu0 0.0
    %2894 = vmatprep.subr.mxu0 0.0
    %2895 = vmatpush1.msra.mxu0 0.0
    %2896 = vmatprep.subr.mxu0 0.0
    %2897 = vmatpush1.msra.mxu0 0.0
    %2898 = vmatprep.subr.mxu0 0.0
    %2899 = vmatpush1.msra.mxu0 0.0
    %2900 = vmatprep.subr.mxu0 0.0
    %2901 = vmatpush1.msra.mxu0 0.0
    %2902 = vmatprep.subr.mxu0 0.0
    %2903 = vmatpush1.msra.mxu0 0.0
    %2904 = vmatprep.subr.mxu0 0.0
    %2905 = vmatpush1.msra.mxu0 0.0
    %2906 = vmatprep.subr.mxu0 0.0
    %2907 = vmatpush1.msra.mxu0 0.0
    %2908 = vmatprep.subr.mxu0 0.0
    %2909 = vmatpush1.msra.mxu0 0.0
    %2910 = vmatprep.subr.mxu0 0.0
    %2911 = vmatpush1.msra.mxu0 0.0
    %2912 = vmatprep.subr.mxu0 0.0
    %2913 = vmatpush1.msra.mxu0 0.0
    %2914 = vmatprep.subr.mxu0 0.0
    %2915 = vmatpush1.msra.mxu0 0.0
    %2916 = vmatprep.subr.mxu0 0.0
    %2917 = vmatpush1.msra.mxu0 %v69
    %2918 = vmatprep.subr.mxu0 0.0
    %2919 = vmatpush1.msra.mxu0 %v68
    %2920 = vmatprep.subr.mxu0 0.0
    %2921 = vmatpush1.msra.mxu0 %v67
    %2922 = vmatprep.subr.mxu0 0.0
    %2923 = vmatpush1.msra.mxu0 %v66
    %2924 = vmatprep.subr.mxu0 0.0
    %2925 = vmatpush2.msra.mxu0 0.0
    %2926 = vmatprep.subr.mxu0 0.0
    %2927 = vmatpush2.msra.mxu0 0.0
    %2928 = vmatprep.subr.mxu0 0.0
    %2929 = vmatpush2.msra.mxu0 0.0
    %2930 = vmatprep.subr.mxu0 0.0
    %2931 = vmatpush2.msra.mxu0 0.0
    %2932 = vmatprep.subr.mxu0 0.0
    %2933 = vmatpush2.msra.mxu0 0.0
    %2934 = vmatprep.subr.mxu0 0.0
    %2935 = vmatpush2.msra.mxu0 0.0
    %2936 = vmatprep.subr.mxu0 0.0
    %2937 = vmatpush2.msra.mxu0 0.0
    %2938 = vmatprep.subr.mxu0 0.0
    %2939 = vmatpush2.msra.mxu0 0.0
    %2940 = vmatprep.subr.mxu0 0.0
    %2941 = vmatpush2.msra.mxu0 0.0
    %2942 = vmatprep.subr.mxu0 0.0
    %2943 = vmatpush2.msra.mxu0 0.0
    %2944 = vmatprep.subr.mxu0 0.0
    %2945 = vmatpush2.msra.mxu0 0.0
    %2946 = vmatprep.subr.mxu0 0.0
    %2947 = vmatpush2.msra.mxu0 0.0
    %2948 = vmatprep.subr.mxu0 0.0
    %2949 = vmatpush2.msra.mxu0 0.0
    %2950 = vmatprep.subr.mxu0 0.0
    %2951 = vmatpush2.msra.mxu0 0.0
    %2952 = vmatprep.subr.mxu0 0.0
    %2953 = vmatpush2.msra.mxu0 0.0
    %2954 = vmatprep.subr.mxu0 0.0
    %2955 = vmatpush2.msra.mxu0 0.0
    %2956 = vmatprep.mubr.f32.mxu0 0.0
    %2957 = vmatmul.mubr.f32.gmra.mxu0 %v2697
    %v2958 = vpop.f32.mrf.mxu0
    %v2959 = vadd.f32 0.0, %v2958
    %v2960 = vpop.f32.mrf.mxu0
    %2961 = vdwg.mxu0
    %2962 = vmatprep.subr.mxu0 0.0
    %2963 = vmatpush1.msra.mxu0 0.0
    %2964 = vmatprep.subr.mxu0 0.0
    %2965 = vmatpush1.msra.mxu0 0.0
    %2966 = vmatprep.subr.mxu0 0.0
    %2967 = vmatpush1.msra.mxu0 0.0
    %2968 = vmatprep.subr.mxu0 0.0
    %2969 = vmatpush1.msra.mxu0 0.0
    %2970 = vmatprep.subr.mxu0 0.0
    %2971 = vmatpush1.msra.mxu0 0.0
    %2972 = vmatprep.subr.mxu0 0.0
    %2973 = vmatpush1.msra.mxu0 0.0
    %2974 = vmatprep.subr.mxu0 0.0
    %2975 = vmatpush1.msra.mxu0 0.0
    %2976 = vmatprep.subr.mxu0 0.0
    %2977 = vmatpush1.msra.mxu0 0.0
    %2978 = vmatprep.subr.mxu0 0.0
    %2979 = vmatpush1.msra.mxu0 0.0
    %2980 = vmatprep.subr.mxu0 0.0
    %2981 = vmatpush1.msra.mxu0 0.0
    %2982 = vmatprep.subr.mxu0 0.0
    %2983 = vmatpush1.msra.mxu0 0.0
    %2984 = vmatprep.subr.mxu0 0.0
    %2985 = vmatpush1.msra.mxu0 0.0
    %2986 = vmatprep.subr.mxu0 0.0
    %2987 = vmatpush1.msra.mxu0 %v74
    %2988 = vmatprep.subr.mxu0 0.0
    %2989 = vmatpush1.msra.mxu0 %v73
    %2990 = vmatprep.subr.mxu0 0.0
    %2991 = vmatpush1.msra.mxu0 %v72
    %2992 = vmatprep.subr.mxu0 0.0
    %2993 = vmatpush1.msra.mxu0 %v71
    %2994 = vmatprep.subr.mxu0 0.0
    %2995 = vmatpush2.msra.mxu0 0.0
    %2996 = vmatprep.subr.mxu0 0.0
    %2997 = vmatpush2.msra.mxu0 0.0
    %2998 = vmatprep.subr.mxu0 0.0
    %2999 = vmatpush2.msra.mxu0 0.0
    %3000 = vmatprep.subr.mxu0 0.0
    %3001 = vmatpush2.msra.mxu0 0.0
    %3002 = vmatprep.subr.mxu0 0.0
    %3003 = vmatpush2.msra.mxu0 0.0
    %3004 = vmatprep.subr.mxu0 0.0
    %3005 = vmatpush2.msra.mxu0 0.0
    %3006 = vmatprep.subr.mxu0 0.0
    %3007 = vmatpush2.msra.mxu0 0.0
    %3008 = vmatprep.subr.mxu0 0.0
    %3009 = vmatpush2.msra.mxu0 0.0
    %3010 = vmatprep.subr.mxu0 0.0
    %3011 = vmatpush2.msra.mxu0 0.0
    %3012 = vmatprep.subr.mxu0 0.0
    %3013 = vmatpush2.msra.mxu0 0.0
    %3014 = vmatprep.subr.mxu0 0.0
    %3015 = vmatpush2.msra.mxu0 0.0
    %3016 = vmatprep.subr.mxu0 0.0
    %3017 = vmatpush2.msra.mxu0 0.0
    %3018 = vmatprep.subr.mxu0 0.0
    %3019 = vmatpush2.msra.mxu0 0.0
    %3020 = vmatprep.subr.mxu0 0.0
    %3021 = vmatpush2.msra.mxu0 0.0
    %3022 = vmatprep.subr.mxu0 0.0
    %3023 = vmatpush2.msra.mxu0 0.0
    %3024 = vmatprep.subr.mxu0 0.0
    %3025 = vmatpush2.msra.mxu0 0.0
    %3026 = vmatprep.mubr.f32.mxu0 0.0
    %3027 = vmatmul.mubr.f32.gmra.mxu0 %v2796
    %v3028 = vpop.f32.mrf.mxu0
    %v3029 = vadd.f32 %v769, %v3028
    %v3030 = vpop.f32.mrf.mxu0
    %3031 = vdwg.mxu0
    %3033 = vrot.lane.b32.xlu0 %v2891, 32
    %v3034 = vpop.permute.xlu0 %3033
    %v3035 = vsel %vm691, %v3034, 0
    %3037 = vmatprep.subr.mxu0 0.0
    %3038 = vmatpush1.msra.mxu0 0.0
    %3039 = vmatprep.subr.mxu0 0.0
    %3040 = vmatpush1.msra.mxu0 0.0
    %3041 = vmatprep.subr.mxu0 0.0
    %3042 = vmatpush1.msra.mxu0 0.0
    %3043 = vmatprep.subr.mxu0 0.0
    %3044 = vmatpush1.msra.mxu0 0.0
    %3045 = vmatprep.subr.mxu0 0.0
    %3046 = vmatpush1.msra.mxu0 0.0
    %3047 = vmatprep.subr.mxu0 0.0
    %3048 = vmatpush1.msra.mxu0 0.0
    %3049 = vmatprep.subr.mxu0 0.0
    %3050 = vmatpush1.msra.mxu0 0.0
    %3051 = vmatprep.subr.mxu0 0.0
    %3052 = vmatpush1.msra.mxu0 0.0
    %3053 = vmatprep.subr.mxu0 0.0
    %3054 = vmatpush1.msra.mxu0 0.0
    %3055 = vmatprep.subr.mxu0 0.0
    %3056 = vmatpush1.msra.mxu0 0.0
    %3057 = vmatprep.subr.mxu0 0.0
    %3058 = vmatpush1.msra.mxu0 0.0
    %3059 = vmatprep.subr.mxu0 0.0
    %3060 = vmatpush1.msra.mxu0 0.0
    %3061 = vmatprep.subr.mxu0 0.0
    %3062 = vmatpush1.msra.mxu0 %v79
    %3063 = vmatprep.subr.mxu0 0.0
    %3064 = vmatpush1.msra.mxu0 %v78
    %3065 = vmatprep.subr.mxu0 0.0
    %3066 = vmatpush1.msra.mxu0 %v77
    %3067 = vmatprep.subr.mxu0 0.0
    %3068 = vmatpush1.msra.mxu0 %v76
    %3069 = vmatprep.subr.mxu0 0.0
    %3070 = vmatpush2.msra.mxu0 0.0
    %3071 = vmatprep.subr.mxu0 0.0
    %3072 = vmatpush2.msra.mxu0 0.0
    %3073 = vmatprep.subr.mxu0 0.0
    %3074 = vmatpush2.msra.mxu0 0.0
    %3075 = vmatprep.subr.mxu0 0.0
    %3076 = vmatpush2.msra.mxu0 0.0
    %3077 = vmatprep.subr.mxu0 0.0
    %3078 = vmatpush2.msra.mxu0 0.0
    %3079 = vmatprep.subr.mxu0 0.0
    %3080 = vmatpush2.msra.mxu0 0.0
    %3081 = vmatprep.subr.mxu0 0.0
    %3082 = vmatpush2.msra.mxu0 0.0
    %3083 = vmatprep.subr.mxu0 0.0
    %3084 = vmatpush2.msra.mxu0 0.0
    %3085 = vmatprep.subr.mxu0 0.0
    %3086 = vmatpush2.msra.mxu0 0.0
    %3087 = vmatprep.subr.mxu0 0.0
    %3088 = vmatpush2.msra.mxu0 0.0
    %3089 = vmatprep.subr.mxu0 0.0
    %3090 = vmatpush2.msra.mxu0 0.0
    %3091 = vmatprep.subr.mxu0 0.0
    %3092 = vmatpush2.msra.mxu0 0.0
    %3093 = vmatprep.subr.mxu0 0.0
    %3094 = vmatpush2.msra.mxu0 0.0
    %3095 = vmatprep.subr.mxu0 0.0
    %3096 = vmatpush2.msra.mxu0 0.0
    %3097 = vmatprep.subr.mxu0 0.0
    %3098 = vmatpush2.msra.mxu0 0.0
    %3099 = vmatprep.subr.mxu0 0.0
    %3100 = vmatpush2.msra.mxu0 0.0
    %3101 = vmatprep.mubr.f32.mxu0 0.0
    %3102 = vmatmul.mubr.f32.gmra.mxu0 %v3035
    %v3103 = vpop.f32.mrf.mxu0
    %v3104 = vadd.f32 %v845, %v3103
    %v3105 = vpop.f32.mrf.mxu0
    %3106 = vdwg.mxu0
    %v3107 = vadd.f32 %v538, %v2959
    %v3108 = vxor.u32 %v3107, 2147483648
    %v3109 = vmul.f32 %v3108, 1.442695
    %v3110 = vpow.pop %v3109
    %v3111 = vadd.f32 %v3110, 1.0
    %v3112 = vrcp.pop %v3111
    %v3113 = vmul.f32 1.0, %v3112
    %v3114 = vtanh.pop %v3107
    %v3115 = vmul.f32 %v3113, %v2687
    %3117 = vrot.lane.b32.xlu0 %v3114, 64
    %v3118 = vpop.permute.xlu0 %3117
    %v3120 = vmul.f32 %v3113, %v3118
    %3122 = vrot.lane.b32.xlu0 %v3120, 32
    %v3123 = vpop.permute.xlu0 %3122
    %v3125 = vadd.f32 %v3115, %v3123
    %v3126 = vtanh.pop %v3125
    %3128 = vrot.lane.b32.xlu0 %v3126, 64
    %v3129 = vpop.permute.xlu0 %3128
    %v3131 = vmul.f32 %v3113, %v3129
    %3133 = vrot.lane.b32.xlu0 %v3131, 32
    %v3134 = vpop.permute.xlu0 %3133
    %v3135 = vsel %vm691, %v3134, 0
    %3137 = vmatprep.subr.mxu0 0.0
    %3138 = vmatpush1.msra.mxu0 0.0
    %3139 = vmatprep.subr.mxu0 0.0
    %3140 = vmatpush1.msra.mxu0 0.0
    %3141 = vmatprep.subr.mxu0 0.0
    %3142 = vmatpush1.msra.mxu0 0.0
    %3143 = vmatprep.subr.mxu0 0.0
    %3144 = vmatpush1.msra.mxu0 0.0
    %3145 = vmatprep.subr.mxu0 0.0
    %3146 = vmatpush1.msra.mxu0 0.0
    %3147 = vmatprep.subr.mxu0 0.0
    %3148 = vmatpush1.msra.mxu0 0.0
    %3149 = vmatprep.subr.mxu0 0.0
    %3150 = vmatpush1.msra.mxu0 0.0
    %3151 = vmatprep.subr.mxu0 0.0
    %3152 = vmatpush1.msra.mxu0 0.0
    %3153 = vmatprep.subr.mxu0 0.0
    %3154 = vmatpush1.msra.mxu0 0.0
    %3155 = vmatprep.subr.mxu0 0.0
    %3156 = vmatpush1.msra.mxu0 0.0
    %3157 = vmatprep.subr.mxu0 0.0
    %3158 = vmatpush1.msra.mxu0 0.0
    %3159 = vmatprep.subr.mxu0 0.0
    %3160 = vmatpush1.msra.mxu0 0.0
    %3161 = vmatprep.subr.mxu0 0.0
    %3162 = vmatpush1.msra.mxu0 %v60
    %3163 = vmatprep.subr.mxu0 0.0
    %3164 = vmatpush1.msra.mxu0 %v59
    %3165 = vmatprep.subr.mxu0 0.0
    %3166 = vmatpush1.msra.mxu0 %v58
    %3167 = vmatprep.subr.mxu0 0.0
    %3168 = vmatpush1.msra.mxu0 %v57
    %3169 = vmatprep.subr.mxu0 0.0
    %3170 = vmatpush2.msra.mxu0 0.0
    %3171 = vmatprep.subr.mxu0 0.0
    %3172 = vmatpush2.msra.mxu0 0.0
    %3173 = vmatprep.subr.mxu0 0.0
    %3174 = vmatpush2.msra.mxu0 0.0
    %3175 = vmatprep.subr.mxu0 0.0
    %3176 = vmatpush2.msra.mxu0 0.0
    %3177 = vmatprep.subr.mxu0 0.0
    %3178 = vmatpush2.msra.mxu0 0.0
    %3179 = vmatprep.subr.mxu0 0.0
    %3180 = vmatpush2.msra.mxu0 0.0
    %3181 = vmatprep.subr.mxu0 0.0
    %3182 = vmatpush2.msra.mxu0 0.0
    %3183 = vmatprep.subr.mxu0 0.0
    %3184 = vmatpush2.msra.mxu0 0.0
    %3185 = vmatprep.subr.mxu0 0.0
    %3186 = vmatpush2.msra.mxu0 0.0
    %3187 = vmatprep.subr.mxu0 0.0
    %3188 = vmatpush2.msra.mxu0 0.0
    %3189 = vmatprep.subr.mxu0 0.0
    %3190 = vmatpush2.msra.mxu0 0.0
    %3191 = vmatprep.subr.mxu0 0.0
    %3192 = vmatpush2.msra.mxu0 0.0
    %3193 = vmatprep.subr.mxu0 0.0
    %3194 = vmatpush2.msra.mxu0 0.0
    %3195 = vmatprep.subr.mxu0 0.0
    %3196 = vmatpush2.msra.mxu0 0.0
    %3197 = vmatprep.subr.mxu0 0.0
    %3198 = vmatpush2.msra.mxu0 0.0
    %3199 = vmatprep.subr.mxu0 0.0
    %3200 = vmatpush2.msra.mxu0 0.0
    %3201 = vmatprep.mubr.f32.mxu0 0.0
    %3202 = vmatmul.mubr.f32.gmra.mxu0 %v3135
    %v3203 = vpop.f32.mrf.mxu0
    %v3204 = vadd.f32 %v3029, %v3203
    %v3205 = vpop.f32.mrf.mxu0
    %3206 = vdwg.mxu0
    %v3207 = vxor.u32 %v3204, 2147483648
    %v3208 = vmul.f32 %v3207, 1.442695
    %v3209 = vpow.pop %v3208
    %v3210 = vadd.f32 %v3209, 1.0
    %v3211 = vrcp.pop %v3210
    %v3212 = vmul.f32 1.0, %v3211
    %v3213 = vtanh.pop %v3204
    %v3214 = vmul.f32 %v3212, %v2786
    %3216 = vrot.lane.b32.xlu0 %v3213, 64
    %v3217 = vpop.permute.xlu0 %3216
    %v3219 = vmul.f32 %v3212, %v3217
    %3221 = vrot.lane.b32.xlu0 %v3219, 32
    %v3222 = vpop.permute.xlu0 %3221
    %v3224 = vadd.f32 %v3214, %v3222
    %v3225 = vtanh.pop %v3224
    %3227 = vrot.lane.b32.xlu0 %v3225, 64
    %v3228 = vpop.permute.xlu0 %3227
    %v3230 = vmul.f32 %v3212, %v3228
    %3232 = vrot.lane.b32.xlu0 %v3230, 32
    %v3233 = vpop.permute.xlu0 %3232
    %v3234 = vsel %vm691, %v3233, 0
    %3236 = vmatprep.subr.mxu0 0.0
    %3237 = vmatpush1.msra.mxu0 0.0
    %3238 = vmatprep.subr.mxu0 0.0
    %3239 = vmatpush1.msra.mxu0 0.0
    %3240 = vmatprep.subr.mxu0 0.0
    %3241 = vmatpush1.msra.mxu0 0.0
    %3242 = vmatprep.subr.mxu0 0.0
    %3243 = vmatpush1.msra.mxu0 0.0
    %3244 = vmatprep.subr.mxu0 0.0
    %3245 = vmatpush1.msra.mxu0 0.0
    %3246 = vmatprep.subr.mxu0 0.0
    %3247 = vmatpush1.msra.mxu0 0.0
    %3248 = vmatprep.subr.mxu0 0.0
    %3249 = vmatpush1.msra.mxu0 0.0
    %3250 = vmatprep.subr.mxu0 0.0
    %3251 = vmatpush1.msra.mxu0 0.0
    %3252 = vmatprep.subr.mxu0 0.0
    %3253 = vmatpush1.msra.mxu0 0.0
    %3254 = vmatprep.subr.mxu0 0.0
    %3255 = vmatpush1.msra.mxu0 0.0
    %3256 = vmatprep.subr.mxu0 0.0
    %3257 = vmatpush1.msra.mxu0 0.0
    %3258 = vmatprep.subr.mxu0 0.0
    %3259 = vmatpush1.msra.mxu0 0.0
    %3260 = vmatprep.subr.mxu0 0.0
    %3261 = vmatpush1.msra.mxu0 %v65
    %3262 = vmatprep.subr.mxu0 0.0
    %3263 = vmatpush1.msra.mxu0 %v64
    %3264 = vmatprep.subr.mxu0 0.0
    %3265 = vmatpush1.msra.mxu0 %v63
    %3266 = vmatprep.subr.mxu0 0.0
    %3267 = vmatpush1.msra.mxu0 %v62
    %3268 = vmatprep.subr.mxu0 0.0
    %3269 = vmatpush2.msra.mxu0 0.0
    %3270 = vmatprep.subr.mxu0 0.0
    %3271 = vmatpush2.msra.mxu0 0.0
    %3272 = vmatprep.subr.mxu0 0.0
    %3273 = vmatpush2.msra.mxu0 0.0
    %3274 = vmatprep.subr.mxu0 0.0
    %3275 = vmatpush2.msra.mxu0 0.0
    %3276 = vmatprep.subr.mxu0 0.0
    %3277 = vmatpush2.msra.mxu0 0.0
    %3278 = vmatprep.subr.mxu0 0.0
    %3279 = vmatpush2.msra.mxu0 0.0
    %3280 = vmatprep.subr.mxu0 0.0
    %3281 = vmatpush2.msra.mxu0 0.0
    %3282 = vmatprep.subr.mxu0 0.0
    %3283 = vmatpush2.msra.mxu0 0.0
    %3284 = vmatprep.subr.mxu0 0.0
    %3285 = vmatpush2.msra.mxu0 0.0
    %3286 = vmatprep.subr.mxu0 0.0
    %3287 = vmatpush2.msra.mxu0 0.0
    %3288 = vmatprep.subr.mxu0 0.0
    %3289 = vmatpush2.msra.mxu0 0.0
    %3290 = vmatprep.subr.mxu0 0.0
    %3291 = vmatpush2.msra.mxu0 0.0
    %3292 = vmatprep.subr.mxu0 0.0
    %3293 = vmatpush2.msra.mxu0 0.0
    %3294 = vmatprep.subr.mxu0 0.0
    %3295 = vmatpush2.msra.mxu0 0.0
    %3296 = vmatprep.subr.mxu0 0.0
    %3297 = vmatpush2.msra.mxu0 0.0
    %3298 = vmatprep.subr.mxu0 0.0
    %3299 = vmatpush2.msra.mxu0 0.0
    %3300 = vmatprep.mubr.f32.mxu0 0.0
    %3301 = vmatmul.mubr.f32.gmra.mxu0 %v3234
    %v3302 = vpop.f32.mrf.mxu0
    %v3303 = vadd.f32 %v3104, %v3302
    %v3304 = vpop.f32.mrf.mxu0
    %3305 = vdwg.mxu0
    %v3306 = vxor.u32 %v3303, 2147483648
    %v3307 = vmul.f32 %v3306, 1.442695
    %v3308 = vpow.pop %v3307
    %v3309 = vadd.f32 %v3308, 1.0
    %v3310 = vrcp.pop %v3309
    %v3311 = vmul.f32 1.0, %v3310
    %v3312 = vtanh.pop %v3303
    %v3313 = vmul.f32 %v3311, %v2885
    %3315 = vrot.lane.b32.xlu0 %v3312, 64
    %v3316 = vpop.permute.xlu0 %3315
    %v3318 = vmul.f32 %v3311, %v3316
    %3320 = vrot.lane.b32.xlu0 %v3318, 32
    %v3321 = vpop.permute.xlu0 %3320
    %v3323 = vadd.f32 %v3313, %v3321
    %v3324 = vtanh.pop %v3323
    %3326 = vrot.lane.b32.xlu0 %v3324, 64
    %v3327 = vpop.permute.xlu0 %3326
    %v3329 = vmul.f32 %v3311, %v3327
    %3330 = vmatprep.subr.mxu0 0.0
    %3331 = vmatpush1.msra.mxu0 0.0
    %3332 = vmatprep.subr.mxu0 0.0
    %3333 = vmatpush1.msra.mxu0 0.0
    %3334 = vmatprep.subr.mxu0 0.0
    %3335 = vmatpush1.msra.mxu0 0.0
    %3336 = vmatprep.subr.mxu0 0.0
    %3337 = vmatpush1.msra.mxu0 0.0
    %3338 = vmatprep.subr.mxu0 0.0
    %3339 = vmatpush1.msra.mxu0 0.0
    %3340 = vmatprep.subr.mxu0 0.0
    %3341 = vmatpush1.msra.mxu0 0.0
    %3342 = vmatprep.subr.mxu0 0.0
    %3343 = vmatpush1.msra.mxu0 0.0
    %3344 = vmatprep.subr.mxu0 0.0
    %3345 = vmatpush1.msra.mxu0 0.0
    %3346 = vmatprep.subr.mxu0 0.0
    %3347 = vmatpush1.msra.mxu0 0.0
    %3348 = vmatprep.subr.mxu0 0.0
    %3349 = vmatpush1.msra.mxu0 0.0
    %3350 = vmatprep.subr.mxu0 0.0
    %3351 = vmatpush1.msra.mxu0 0.0
    %3352 = vmatprep.subr.mxu0 0.0
    %3353 = vmatpush1.msra.mxu0 0.0
    %3354 = vmatprep.subr.mxu0 0.0
    %3355 = vmatpush1.msra.mxu0 %v69
    %3356 = vmatprep.subr.mxu0 0.0
    %3357 = vmatpush1.msra.mxu0 %v68
    %3358 = vmatprep.subr.mxu0 0.0
    %3359 = vmatpush1.msra.mxu0 %v67
    %3360 = vmatprep.subr.mxu0 0.0
    %3361 = vmatpush1.msra.mxu0 %v66
    %3362 = vmatprep.subr.mxu0 0.0
    %3363 = vmatpush2.msra.mxu0 0.0
    %3364 = vmatprep.subr.mxu0 0.0
    %3365 = vmatpush2.msra.mxu0 0.0
    %3366 = vmatprep.subr.mxu0 0.0
    %3367 = vmatpush2.msra.mxu0 0.0
    %3368 = vmatprep.subr.mxu0 0.0
    %3369 = vmatpush2.msra.mxu0 0.0
    %3370 = vmatprep.subr.mxu0 0.0
    %3371 = vmatpush2.msra.mxu0 0.0
    %3372 = vmatprep.subr.mxu0 0.0
    %3373 = vmatpush2.msra.mxu0 0.0
    %3374 = vmatprep.subr.mxu0 0.0
    %3375 = vmatpush2.msra.mxu0 0.0
    %3376 = vmatprep.subr.mxu0 0.0
    %3377 = vmatpush2.msra.mxu0 0.0
    %3378 = vmatprep.subr.mxu0 0.0
    %3379 = vmatpush2.msra.mxu0 0.0
    %3380 = vmatprep.subr.mxu0 0.0
    %3381 = vmatpush2.msra.mxu0 0.0
    %3382 = vmatprep.subr.mxu0 0.0
    %3383 = vmatpush2.msra.mxu0 0.0
    %3384 = vmatprep.subr.mxu0 0.0
    %3385 = vmatpush2.msra.mxu0 0.0
    %3386 = vmatprep.subr.mxu0 0.0
    %3387 = vmatpush2.msra.mxu0 0.0
    %3388 = vmatprep.subr.mxu0 0.0
    %3389 = vmatpush2.msra.mxu0 0.0
    %3390 = vmatprep.subr.mxu0 0.0
    %3391 = vmatpush2.msra.mxu0 0.0
    %3392 = vmatprep.subr.mxu0 0.0
    %3393 = vmatpush2.msra.mxu0 0.0
    %3394 = vmatprep.mubr.f32.mxu0 0.0
    %3395 = vmatmul.mubr.f32.gmra.mxu0 %v3135
    %v3396 = vpop.f32.mrf.mxu0
    %v3397 = vadd.f32 0.0, %v3396
    %v3398 = vpop.f32.mrf.mxu0
    %3399 = vdwg.mxu0
    %3400 = vmatprep.subr.mxu0 0.0
    %3401 = vmatpush1.msra.mxu0 0.0
    %3402 = vmatprep.subr.mxu0 0.0
    %3403 = vmatpush1.msra.mxu0 0.0
    %3404 = vmatprep.subr.mxu0 0.0
    %3405 = vmatpush1.msra.mxu0 0.0
    %3406 = vmatprep.subr.mxu0 0.0
    %3407 = vmatpush1.msra.mxu0 0.0
    %3408 = vmatprep.subr.mxu0 0.0
    %3409 = vmatpush1.msra.mxu0 0.0
    %3410 = vmatprep.subr.mxu0 0.0
    %3411 = vmatpush1.msra.mxu0 0.0
    %3412 = vmatprep.subr.mxu0 0.0
    %3413 = vmatpush1.msra.mxu0 0.0
    %3414 = vmatprep.subr.mxu0 0.0
    %3415 = vmatpush1.msra.mxu0 0.0
    %3416 = vmatprep.subr.mxu0 0.0
    %3417 = vmatpush1.msra.mxu0 0.0
    %3418 = vmatprep.subr.mxu0 0.0
    %3419 = vmatpush1.msra.mxu0 0.0
    %3420 = vmatprep.subr.mxu0 0.0
    %3421 = vmatpush1.msra.mxu0 0.0
    %3422 = vmatprep.subr.mxu0 0.0
    %3423 = vmatpush1.msra.mxu0 0.0
    %3424 = vmatprep.subr.mxu0 0.0
    %3425 = vmatpush1.msra.mxu0 %v74
    %3426 = vmatprep.subr.mxu0 0.0
    %3427 = vmatpush1.msra.mxu0 %v73
    %3428 = vmatprep.subr.mxu0 0.0
    %3429 = vmatpush1.msra.mxu0 %v72
    %3430 = vmatprep.subr.mxu0 0.0
    %3431 = vmatpush1.msra.mxu0 %v71
    %3432 = vmatprep.subr.mxu0 0.0
    %3433 = vmatpush2.msra.mxu0 0.0
    %3434 = vmatprep.subr.mxu0 0.0
    %3435 = vmatpush2.msra.mxu0 0.0
    %3436 = vmatprep.subr.mxu0 0.0
    %3437 = vmatpush2.msra.mxu0 0.0
    %3438 = vmatprep.subr.mxu0 0.0
    %3439 = vmatpush2.msra.mxu0 0.0
    %3440 = vmatprep.subr.mxu0 0.0
    %3441 = vmatpush2.msra.mxu0 0.0
    %3442 = vmatprep.subr.mxu0 0.0
    %3443 = vmatpush2.msra.mxu0 0.0
    %3444 = vmatprep.subr.mxu0 0.0
    %3445 = vmatpush2.msra.mxu0 0.0
    %3446 = vmatprep.subr.mxu0 0.0
    %3447 = vmatpush2.msra.mxu0 0.0
    %3448 = vmatprep.subr.mxu0 0.0
    %3449 = vmatpush2.msra.mxu0 0.0
    %3450 = vmatprep.subr.mxu0 0.0
    %3451 = vmatpush2.msra.mxu0 0.0
    %3452 = vmatprep.subr.mxu0 0.0
    %3453 = vmatpush2.msra.mxu0 0.0
    %3454 = vmatprep.subr.mxu0 0.0
    %3455 = vmatpush2.msra.mxu0 0.0
    %3456 = vmatprep.subr.mxu0 0.0
    %3457 = vmatpush2.msra.mxu0 0.0
    %3458 = vmatprep.subr.mxu0 0.0
    %3459 = vmatpush2.msra.mxu0 0.0
    %3460 = vmatprep.subr.mxu0 0.0
    %3461 = vmatpush2.msra.mxu0 0.0
    %3462 = vmatprep.subr.mxu0 0.0
    %3463 = vmatpush2.msra.mxu0 0.0
    %3464 = vmatprep.mubr.f32.mxu0 0.0
    %3465 = vmatmul.mubr.f32.gmra.mxu0 %v3234
    %v3466 = vpop.f32.mrf.mxu0
    %v3467 = vadd.f32 %v769, %v3466
    %v3468 = vpop.f32.mrf.mxu0
    %3469 = vdwg.mxu0
    %3471 = vrot.lane.b32.xlu0 %v3329, 32
    %v3472 = vpop.permute.xlu0 %3471
    %v3473 = vsel %vm691, %v3472, 0
    %3475 = vmatprep.subr.mxu0 0.0
    %3476 = vmatpush1.msra.mxu0 0.0
    %3477 = vmatprep.subr.mxu0 0.0
    %3478 = vmatpush1.msra.mxu0 0.0
    %3479 = vmatprep.subr.mxu0 0.0
    %3480 = vmatpush1.msra.mxu0 0.0
    %3481 = vmatprep.subr.mxu0 0.0
    %3482 = vmatpush1.msra.mxu0 0.0
    %3483 = vmatprep.subr.mxu0 0.0
    %3484 = vmatpush1.msra.mxu0 0.0
    %3485 = vmatprep.subr.mxu0 0.0
    %3486 = vmatpush1.msra.mxu0 0.0
    %3487 = vmatprep.subr.mxu0 0.0
    %3488 = vmatpush1.msra.mxu0 0.0
    %3489 = vmatprep.subr.mxu0 0.0
    %3490 = vmatpush1.msra.mxu0 0.0
    %3491 = vmatprep.subr.mxu0 0.0
    %3492 = vmatpush1.msra.mxu0 0.0
    %3493 = vmatprep.subr.mxu0 0.0
    %3494 = vmatpush1.msra.mxu0 0.0
    %3495 = vmatprep.subr.mxu0 0.0
    %3496 = vmatpush1.msra.mxu0 0.0
    %3497 = vmatprep.subr.mxu0 0.0
    %3498 = vmatpush1.msra.mxu0 0.0
    %3499 = vmatprep.subr.mxu0 0.0
    %3500 = vmatpush1.msra.mxu0 %v79
    %3501 = vmatprep.subr.mxu0 0.0
    %3502 = vmatpush1.msra.mxu0 %v78
    %3503 = vmatprep.subr.mxu0 0.0
    %3504 = vmatpush1.msra.mxu0 %v77
    %3505 = vmatprep.subr.mxu0 0.0
    %3506 = vmatpush1.msra.mxu0 %v76
    %3507 = vmatprep.subr.mxu0 0.0
    %3508 = vmatpush2.msra.mxu0 0.0
    %3509 = vmatprep.subr.mxu0 0.0
    %3510 = vmatpush2.msra.mxu0 0.0
    %3511 = vmatprep.subr.mxu0 0.0
    %3512 = vmatpush2.msra.mxu0 0.0
    %3513 = vmatprep.subr.mxu0 0.0
    %3514 = vmatpush2.msra.mxu0 0.0
    %3515 = vmatprep.subr.mxu0 0.0
    %3516 = vmatpush2.msra.mxu0 0.0
    %3517 = vmatprep.subr.mxu0 0.0
    %3518 = vmatpush2.msra.mxu0 0.0
    %3519 = vmatprep.subr.mxu0 0.0
    %3520 = vmatpush2.msra.mxu0 0.0
    %3521 = vmatprep.subr.mxu0 0.0
    %3522 = vmatpush2.msra.mxu0 0.0
    %3523 = vmatprep.subr.mxu0 0.0
    %3524 = vmatpush2.msra.mxu0 0.0
    %3525 = vmatprep.subr.mxu0 0.0
    %3526 = vmatpush2.msra.mxu0 0.0
    %3527 = vmatprep.subr.mxu0 0.0
    %3528 = vmatpush2.msra.mxu0 0.0
    %3529 = vmatprep.subr.mxu0 0.0
    %3530 = vmatpush2.msra.mxu0 0.0
    %3531 = vmatprep.subr.mxu0 0.0
    %3532 = vmatpush2.msra.mxu0 0.0
    %3533 = vmatprep.subr.mxu0 0.0
    %3534 = vmatpush2.msra.mxu0 0.0
    %3535 = vmatprep.subr.mxu0 0.0
    %3536 = vmatpush2.msra.mxu0 0.0
    %3537 = vmatprep.subr.mxu0 0.0
    %3538 = vmatpush2.msra.mxu0 0.0
    %3539 = vmatprep.mubr.f32.mxu0 0.0
    %3540 = vmatmul.mubr.f32.gmra.mxu0 %v3473
    %v3541 = vpop.f32.mrf.mxu0
    %v3542 = vadd.f32 %v845, %v3541
    %v3543 = vpop.f32.mrf.mxu0
    %3544 = vdwg.mxu0
    %v3545 = vadd.f32 %v613, %v3397
    %v3546 = vxor.u32 %v3545, 2147483648
    %v3547 = vmul.f32 %v3546, 1.442695
    %v3548 = vpow.pop %v3547
    %v3549 = vadd.f32 %v3548, 1.0
    %v3550 = vrcp.pop %v3549
    %v3551 = vmul.f32 1.0, %v3550
    %v3552 = vtanh.pop %v3545
    %v3553 = vmul.f32 %v3551, %v3125
    %3555 = vrot.lane.b32.xlu0 %v3552, 64
    %v3556 = vpop.permute.xlu0 %3555
    %v3558 = vmul.f32 %v3551, %v3556
    %3560 = vrot.lane.b32.xlu0 %v3558, 32
    %v3561 = vpop.permute.xlu0 %3560
    %v3563 = vadd.f32 %v3553, %v3561
    %v3564 = vtanh.pop %v3563
    %3566 = vrot.lane.b32.xlu0 %v3564, 64
    %v3567 = vpop.permute.xlu0 %3566
    %v3569 = vmul.f32 %v3551, %v3567
    %3571 = vrot.lane.b32.xlu0 %v3569, 32
    %v3572 = vpop.permute.xlu0 %3571
    %v3573 = vsel %vm691, %v3572, 0
    %3575 = vmatprep.subr.mxu0 0.0
    %3576 = vmatpush1.msra.mxu0 0.0
    %3577 = vmatprep.subr.mxu0 0.0
    %3578 = vmatpush1.msra.mxu0 0.0
    %3579 = vmatprep.subr.mxu0 0.0
    %3580 = vmatpush1.msra.mxu0 0.0
    %3581 = vmatprep.subr.mxu0 0.0
    %3582 = vmatpush1.msra.mxu0 0.0
    %3583 = vmatprep.subr.mxu0 0.0
    %3584 = vmatpush1.msra.mxu0 0.0
    %3585 = vmatprep.subr.mxu0 0.0
    %3586 = vmatpush1.msra.mxu0 0.0
    %3587 = vmatprep.subr.mxu0 0.0
    %3588 = vmatpush1.msra.mxu0 0.0
    %3589 = vmatprep.subr.mxu0 0.0
    %3590 = vmatpush1.msra.mxu0 0.0
    %3591 = vmatprep.subr.mxu0 0.0
    %3592 = vmatpush1.msra.mxu0 0.0
    %3593 = vmatprep.subr.mxu0 0.0
    %3594 = vmatpush1.msra.mxu0 0.0
    %3595 = vmatprep.subr.mxu0 0.0
    %3596 = vmatpush1.msra.mxu0 0.0
    %3597 = vmatprep.subr.mxu0 0.0
    %3598 = vmatpush1.msra.mxu0 0.0
    %3599 = vmatprep.subr.mxu0 0.0
    %3600 = vmatpush1.msra.mxu0 %v60
    %3601 = vmatprep.subr.mxu0 0.0
    %3602 = vmatpush1.msra.mxu0 %v59
    %3603 = vmatprep.subr.mxu0 0.0
    %3604 = vmatpush1.msra.mxu0 %v58
    %3605 = vmatprep.subr.mxu0 0.0
    %3606 = vmatpush1.msra.mxu0 %v57
    %3607 = vmatprep.subr.mxu0 0.0
    %3608 = vmatpush2.msra.mxu0 0.0
    %3609 = vmatprep.subr.mxu0 0.0
    %3610 = vmatpush2.msra.mxu0 0.0
    %3611 = vmatprep.subr.mxu0 0.0
    %3612 = vmatpush2.msra.mxu0 0.0
    %3613 = vmatprep.subr.mxu0 0.0
    %3614 = vmatpush2.msra.mxu0 0.0
    %3615 = vmatprep.subr.mxu0 0.0
    %3616 = vmatpush2.msra.mxu0 0.0
    %3617 = vmatprep.subr.mxu0 0.0
    %3618 = vmatpush2.msra.mxu0 0.0
    %3619 = vmatprep.subr.mxu0 0.0
    %3620 = vmatpush2.msra.mxu0 0.0
    %3621 = vmatprep.subr.mxu0 0.0
    %3622 = vmatpush2.msra.mxu0 0.0
    %3623 = vmatprep.subr.mxu0 0.0
    %3624 = vmatpush2.msra.mxu0 0.0
    %3625 = vmatprep.subr.mxu0 0.0
    %3626 = vmatpush2.msra.mxu0 0.0
    %3627 = vmatprep.subr.mxu0 0.0
    %3628 = vmatpush2.msra.mxu0 0.0
    %3629 = vmatprep.subr.mxu0 0.0
    %3630 = vmatpush2.msra.mxu0 0.0
    %3631 = vmatprep.subr.mxu0 0.0
    %3632 = vmatpush2.msra.mxu0 0.0
    %3633 = vmatprep.subr.mxu0 0.0
    %3634 = vmatpush2.msra.mxu0 0.0
    %3635 = vmatprep.subr.mxu0 0.0
    %3636 = vmatpush2.msra.mxu0 0.0
    %3637 = vmatprep.subr.mxu0 0.0
    %3638 = vmatpush2.msra.mxu0 0.0
    %3639 = vmatprep.mubr.f32.mxu0 0.0
    %3640 = vmatmul.mubr.f32.gmra.mxu0 %v3573
    %v3641 = vpop.f32.mrf.mxu0
    %v3642 = vadd.f32 %v3467, %v3641
    %v3643 = vpop.f32.mrf.mxu0
    %3644 = vdwg.mxu0
    %v3645 = vxor.u32 %v3642, 2147483648
    %v3646 = vmul.f32 %v3645, 1.442695
    %v3647 = vpow.pop %v3646
    %v3648 = vadd.f32 %v3647, 1.0
    %v3649 = vrcp.pop %v3648
    %v3650 = vmul.f32 1.0, %v3649
    %v3651 = vtanh.pop %v3642
    %v3652 = vmul.f32 %v3650, %v3224
    %3654 = vrot.lane.b32.xlu0 %v3651, 64
    %v3655 = vpop.permute.xlu0 %3654
    %v3657 = vmul.f32 %v3650, %v3655
    %3659 = vrot.lane.b32.xlu0 %v3657, 32
    %v3660 = vpop.permute.xlu0 %3659
    %v3662 = vadd.f32 %v3652, %v3660
    %v3663 = vtanh.pop %v3662
    %3665 = vrot.lane.b32.xlu0 %v3663, 64
    %v3666 = vpop.permute.xlu0 %3665
    %v3668 = vmul.f32 %v3650, %v3666
    %3670 = vrot.lane.b32.xlu0 %v3668, 32
    %v3671 = vpop.permute.xlu0 %3670
    %v3672 = vsel %vm691, %v3671, 0
    %3674 = vmatprep.subr.mxu0 0.0
    %3675 = vmatpush1.msra.mxu0 0.0
    %3676 = vmatprep.subr.mxu0 0.0
    %3677 = vmatpush1.msra.mxu0 0.0
    %3678 = vmatprep.subr.mxu0 0.0
    %3679 = vmatpush1.msra.mxu0 0.0
    %3680 = vmatprep.subr.mxu0 0.0
    %3681 = vmatpush1.msra.mxu0 0.0
    %3682 = vmatprep.subr.mxu0 0.0
    %3683 = vmatpush1.msra.mxu0 0.0
    %3684 = vmatprep.subr.mxu0 0.0
    %3685 = vmatpush1.msra.mxu0 0.0
    %3686 = vmatprep.subr.mxu0 0.0
    %3687 = vmatpush1.msra.mxu0 0.0
    %3688 = vmatprep.subr.mxu0 0.0
    %3689 = vmatpush1.msra.mxu0 0.0
    %3690 = vmatprep.subr.mxu0 0.0
    %3691 = vmatpush1.msra.mxu0 0.0
    %3692 = vmatprep.subr.mxu0 0.0
    %3693 = vmatpush1.msra.mxu0 0.0
    %3694 = vmatprep.subr.mxu0 0.0
    %3695 = vmatpush1.msra.mxu0 0.0
    %3696 = vmatprep.subr.mxu0 0.0
    %3697 = vmatpush1.msra.mxu0 0.0
    %3698 = vmatprep.subr.mxu0 0.0
    %3699 = vmatpush1.msra.mxu0 %v65
    %3700 = vmatprep.subr.mxu0 0.0
    %3701 = vmatpush1.msra.mxu0 %v64
    %3702 = vmatprep.subr.mxu0 0.0
    %3703 = vmatpush1.msra.mxu0 %v63
    %3704 = vmatprep.subr.mxu0 0.0
    %3705 = vmatpush1.msra.mxu0 %v62
    %3706 = vmatprep.subr.mxu0 0.0
    %3707 = vmatpush2.msra.mxu0 0.0
    %3708 = vmatprep.subr.mxu0 0.0
    %3709 = vmatpush2.msra.mxu0 0.0
    %3710 = vmatprep.subr.mxu0 0.0
    %3711 = vmatpush2.msra.mxu0 0.0
    %3712 = vmatprep.subr.mxu0 0.0
    %3713 = vmatpush2.msra.mxu0 0.0
    %3714 = vmatprep.subr.mxu0 0.0
    %3715 = vmatpush2.msra.mxu0 0.0
    %3716 = vmatprep.subr.mxu0 0.0
    %3717 = vmatpush2.msra.mxu0 0.0
    %3718 = vmatprep.subr.mxu0 0.0
    %3719 = vmatpush2.msra.mxu0 0.0
    %3720 = vmatprep.subr.mxu0 0.0
    %3721 = vmatpush2.msra.mxu0 0.0
    %3722 = vmatprep.subr.mxu0 0.0
    %3723 = vmatpush2.msra.mxu0 0.0
    %3724 = vmatprep.subr.mxu0 0.0
    %3725 = vmatpush2.msra.mxu0 0.0
    %3726 = vmatprep.subr.mxu0 0.0
    %3727 = vmatpush2.msra.mxu0 0.0
    %3728 = vmatprep.subr.mxu0 0.0
    %3729 = vmatpush2.msra.mxu0 0.0
    %3730 = vmatprep.subr.mxu0 0.0
    %3731 = vmatpush2.msra.mxu0 0.0
    %3732 = vmatprep.subr.mxu0 0.0
    %3733 = vmatpush2.msra.mxu0 0.0
    %3734 = vmatprep.subr.mxu0 0.0
    %3735 = vmatpush2.msra.mxu0 0.0
    %3736 = vmatprep.subr.mxu0 0.0
    %3737 = vmatpush2.msra.mxu0 0.0
    %3738 = vmatprep.mubr.f32.mxu0 0.0
    %3739 = vmatmul.mubr.f32.gmra.mxu0 %v3672
    %v3740 = vpop.f32.mrf.mxu0
    %v3741 = vadd.f32 %v3542, %v3740
    %v3742 = vpop.f32.mrf.mxu0
    %3743 = vdwg.mxu0
    %v3744 = vxor.u32 %v3741, 2147483648
    %v3745 = vmul.f32 %v3744, 1.442695
    %v3746 = vpow.pop %v3745
    %v3747 = vadd.f32 %v3746, 1.0
    %v3748 = vrcp.pop %v3747
    %v3749 = vmul.f32 1.0, %v3748
    %v3750 = vtanh.pop %v3741
    %v3751 = vmul.f32 %v3749, %v3323
    %3753 = vrot.lane.b32.xlu0 %v3750, 64
    %v3754 = vpop.permute.xlu0 %3753
    %v3756 = vmul.f32 %v3749, %v3754
    %3758 = vrot.lane.b32.xlu0 %v3756, 32
    %v3759 = vpop.permute.xlu0 %3758
    %v3761 = vadd.f32 %v3751, %v3759
    %v3762 = vtanh.pop %v3761
    %3764 = vrot.lane.b32.xlu0 %v3762, 64
    %v3765 = vpop.permute.xlu0 %3764
    %v3767 = vmul.f32 %v3749, %v3765
    %3768 = vmatprep.subr.mxu0 0.0
    %3769 = vmatpush1.msra.mxu0 0.0
    %3770 = vmatprep.subr.mxu0 0.0
    %3771 = vmatpush1.msra.mxu0 0.0
    %3772 = vmatprep.subr.mxu0 0.0
    %3773 = vmatpush1.msra.mxu0 0.0
    %3774 = vmatprep.subr.mxu0 0.0
    %3775 = vmatpush1.msra.mxu0 0.0
    %3776 = vmatprep.subr.mxu0 0.0
    %3777 = vmatpush1.msra.mxu0 0.0
    %3778 = vmatprep.subr.mxu0 0.0
    %3779 = vmatpush1.msra.mxu0 0.0
    %3780 = vmatprep.subr.mxu0 0.0
    %3781 = vmatpush1.msra.mxu0 0.0
    %3782 = vmatprep.subr.mxu0 0.0
    %3783 = vmatpush1.msra.mxu0 0.0
    %3784 = vmatprep.subr.mxu0 0.0
    %3785 = vmatpush1.msra.mxu0 0.0
    %3786 = vmatprep.subr.mxu0 0.0
    %3787 = vmatpush1.msra.mxu0 0.0
    %3788 = vmatprep.subr.mxu0 0.0
    %3789 = vmatpush1.msra.mxu0 0.0
    %3790 = vmatprep.subr.mxu0 0.0
    %3791 = vmatpush1.msra.mxu0 0.0
    %3792 = vmatprep.subr.mxu0 0.0
    %3793 = vmatpush1.msra.mxu0 %v69
    %3794 = vmatprep.subr.mxu0 0.0
    %3795 = vmatpush1.msra.mxu0 %v68
    %3796 = vmatprep.subr.mxu0 0.0
    %3797 = vmatpush1.msra.mxu0 %v67
    %3798 = vmatprep.subr.mxu0 0.0
    %3799 = vmatpush1.msra.mxu0 %v66
    %3800 = vmatprep.subr.mxu0 0.0
    %3801 = vmatpush2.msra.mxu0 0.0
    %3802 = vmatprep.subr.mxu0 0.0
    %3803 = vmatpush2.msra.mxu0 0.0
    %3804 = vmatprep.subr.mxu0 0.0
    %3805 = vmatpush2.msra.mxu0 0.0
    %3806 = vmatprep.subr.mxu0 0.0
    %3807 = vmatpush2.msra.mxu0 0.0
    %3808 = vmatprep.subr.mxu0 0.0
    %3809 = vmatpush2.msra.mxu0 0.0
    %3810 = vmatprep.subr.mxu0 0.0
    %3811 = vmatpush2.msra.mxu0 0.0
    %3812 = vmatprep.subr.mxu0 0.0
    %3813 = vmatpush2.msra.mxu0 0.0
    %3814 = vmatprep.subr.mxu0 0.0
    %3815 = vmatpush2.msra.mxu0 0.0
    %3816 = vmatprep.subr.mxu0 0.0
    %3817 = vmatpush2.msra.mxu0 0.0
    %3818 = vmatprep.subr.mxu0 0.0
    %3819 = vmatpush2.msra.mxu0 0.0
    %3820 = vmatprep.subr.mxu0 0.0
    %3821 = vmatpush2.msra.mxu0 0.0
    %3822 = vmatprep.subr.mxu0 0.0
    %3823 = vmatpush2.msra.mxu0 0.0
    %3824 = vmatprep.subr.mxu0 0.0
    %3825 = vmatpush2.msra.mxu0 0.0
    %3826 = vmatprep.subr.mxu0 0.0
    %3827 = vmatpush2.msra.mxu0 0.0
    %3828 = vmatprep.subr.mxu0 0.0
    %3829 = vmatpush2.msra.mxu0 0.0
    %3830 = vmatprep.subr.mxu0 0.0
    %3831 = vmatpush2.msra.mxu0 0.0
    %3832 = vmatprep.mubr.f32.mxu0 0.0
    %3833 = vmatmul.mubr.f32.gmra.mxu0 %v3573
    %v3834 = vpop.f32.mrf.mxu0
    %v3835 = vadd.f32 0.0, %v3834
    %v3836 = vpop.f32.mrf.mxu0
    %3837 = vdwg.mxu0
    %3838 = vmatprep.subr.mxu0 0.0
    %3839 = vmatpush1.msra.mxu0 0.0
    %3840 = vmatprep.subr.mxu0 0.0
    %3841 = vmatpush1.msra.mxu0 0.0
    %3842 = vmatprep.subr.mxu0 0.0
    %3843 = vmatpush1.msra.mxu0 0.0
    %3844 = vmatprep.subr.mxu0 0.0
    %3845 = vmatpush1.msra.mxu0 0.0
    %3846 = vmatprep.subr.mxu0 0.0
    %3847 = vmatpush1.msra.mxu0 0.0
    %3848 = vmatprep.subr.mxu0 0.0
    %3849 = vmatpush1.msra.mxu0 0.0
    %3850 = vmatprep.subr.mxu0 0.0
    %3851 = vmatpush1.msra.mxu0 0.0
    %3852 = vmatprep.subr.mxu0 0.0
    %3853 = vmatpush1.msra.mxu0 0.0
    %3854 = vmatprep.subr.mxu0 0.0
    %3855 = vmatpush1.msra.mxu0 0.0
    %3856 = vmatprep.subr.mxu0 0.0
    %3857 = vmatpush1.msra.mxu0 0.0
    %3858 = vmatprep.subr.mxu0 0.0
    %3859 = vmatpush1.msra.mxu0 0.0
    %3860 = vmatprep.subr.mxu0 0.0
    %3861 = vmatpush1.msra.mxu0 0.0
    %3862 = vmatprep.subr.mxu0 0.0
    %3863 = vmatpush1.msra.mxu0 %v74
    %3864 = vmatprep.subr.mxu0 0.0
    %3865 = vmatpush1.msra.mxu0 %v73
    %3866 = vmatprep.subr.mxu0 0.0
    %3867 = vmatpush1.msra.mxu0 %v72
    %3868 = vmatprep.subr.mxu0 0.0
    %3869 = vmatpush1.msra.mxu0 %v71
    %3870 = vmatprep.subr.mxu0 0.0
    %3871 = vmatpush2.msra.mxu0 0.0
    %3872 = vmatprep.subr.mxu0 0.0
    %3873 = vmatpush2.msra.mxu0 0.0
    %3874 = vmatprep.subr.mxu0 0.0
    %3875 = vmatpush2.msra.mxu0 0.0
    %3876 = vmatprep.subr.mxu0 0.0
    %3877 = vmatpush2.msra.mxu0 0.0
    %3878 = vmatprep.subr.mxu0 0.0
    %3879 = vmatpush2.msra.mxu0 0.0
    %3880 = vmatprep.subr.mxu0 0.0
    %3881 = vmatpush2.msra.mxu0 0.0
    %3882 = vmatprep.subr.mxu0 0.0
    %3883 = vmatpush2.msra.mxu0 0.0
    %3884 = vmatprep.subr.mxu0 0.0
    %3885 = vmatpush2.msra.mxu0 0.0
    %3886 = vmatprep.subr.mxu0 0.0
    %3887 = vmatpush2.msra.mxu0 0.0
    %3888 = vmatprep.subr.mxu0 0.0
    %3889 = vmatpush2.msra.mxu0 0.0
    %3890 = vmatprep.subr.mxu0 0.0
    %3891 = vmatpush2.msra.mxu0 0.0
    %3892 = vmatprep.subr.mxu0 0.0
    %3893 = vmatpush2.msra.mxu0 0.0
    %3894 = vmatprep.subr.mxu0 0.0
    %3895 = vmatpush2.msra.mxu0 0.0
    %3896 = vmatprep.subr.mxu0 0.0
    %3897 = vmatpush2.msra.mxu0 0.0
    %3898 = vmatprep.subr.mxu0 0.0
    %3899 = vmatpush2.msra.mxu0 0.0
    %3900 = vmatprep.subr.mxu0 0.0
    %3901 = vmatpush2.msra.mxu0 0.0
    %3902 = vmatprep.mubr.f32.mxu0 0.0
    %3903 = vmatmul.mubr.f32.gmra.mxu0 %v3672
    %v3904 = vpop.f32.mrf.mxu0
    %v3905 = vadd.f32 %v769, %v3904
    %v3906 = vpop.f32.mrf.mxu0
    %3907 = vdwg.mxu0
    %3909 = vrot.lane.b32.xlu0 %v3767, 32
    %v3910 = vpop.permute.xlu0 %3909
    %v3911 = vsel %vm691, %v3910, 0
    %3913 = vmatprep.subr.mxu0 0.0
    %3914 = vmatpush1.msra.mxu0 0.0
    %3915 = vmatprep.subr.mxu0 0.0
    %3916 = vmatpush1.msra.mxu0 0.0
    %3917 = vmatprep.subr.mxu0 0.0
    %3918 = vmatpush1.msra.mxu0 0.0
    %3919 = vmatprep.subr.mxu0 0.0
    %3920 = vmatpush1.msra.mxu0 0.0
    %3921 = vmatprep.subr.mxu0 0.0
    %3922 = vmatpush1.msra.mxu0 0.0
    %3923 = vmatprep.subr.mxu0 0.0
    %3924 = vmatpush1.msra.mxu0 0.0
    %3925 = vmatprep.subr.mxu0 0.0
    %3926 = vmatpush1.msra.mxu0 0.0
    %3927 = vmatprep.subr.mxu0 0.0
    %3928 = vmatpush1.msra.mxu0 0.0
    %3929 = vmatprep.subr.mxu0 0.0
    %3930 = vmatpush1.msra.mxu0 0.0
    %3931 = vmatprep.subr.mxu0 0.0
    %3932 = vmatpush1.msra.mxu0 0.0
    %3933 = vmatprep.subr.mxu0 0.0
    %3934 = vmatpush1.msra.mxu0 0.0
    %3935 = vmatprep.subr.mxu0 0.0
    %3936 = vmatpush1.msra.mxu0 0.0
    %3937 = vmatprep.subr.mxu0 0.0
    %3938 = vmatpush1.msra.mxu0 %v79
    %3939 = vmatprep.subr.mxu0 0.0
    %3940 = vmatpush1.msra.mxu0 %v78
    %3941 = vmatprep.subr.mxu0 0.0
    %3942 = vmatpush1.msra.mxu0 %v77
    %3943 = vmatprep.subr.mxu0 0.0
    %3944 = vmatpush1.msra.mxu0 %v76
    %3945 = vmatprep.subr.mxu0 0.0
    %3946 = vmatpush2.msra.mxu0 0.0
    %3947 = vmatprep.subr.mxu0 0.0
    %3948 = vmatpush2.msra.mxu0 0.0
    %3949 = vmatprep.subr.mxu0 0.0
    %3950 = vmatpush2.msra.mxu0 0.0
    %3951 = vmatprep.subr.mxu0 0.0
    %3952 = vmatpush2.msra.mxu0 0.0
    %3953 = vmatprep.subr.mxu0 0.0
    %3954 = vmatpush2.msra.mxu0 0.0
    %3955 = vmatprep.subr.mxu0 0.0
    %3956 = vmatpush2.msra.mxu0 0.0
    %3957 = vmatprep.subr.mxu0 0.0
    %3958 = vmatpush2.msra.mxu0 0.0
    %3959 = vmatprep.subr.mxu0 0.0
    %3960 = vmatpush2.msra.mxu0 0.0
    %3961 = vmatprep.subr.mxu0 0.0
    %3962 = vmatpush2.msra.mxu0 0.0
    %3963 = vmatprep.subr.mxu0 0.0
    %3964 = vmatpush2.msra.mxu0 0.0
    %3965 = vmatprep.subr.mxu0 0.0
    %3966 = vmatpush2.msra.mxu0 0.0
    %3967 = vmatprep.subr.mxu0 0.0
    %3968 = vmatpush2.msra.mxu0 0.0
    %3969 = vmatprep.subr.mxu0 0.0
    %3970 = vmatpush2.msra.mxu0 0.0
    %3971 = vmatprep.subr.mxu0 0.0
    %3972 = vmatpush2.msra.mxu0 0.0
    %3973 = vmatprep.subr.mxu0 0.0
    %3974 = vmatpush2.msra.mxu0 0.0
    %3975 = vmatprep.subr.mxu0 0.0
    %3976 = vmatpush2.msra.mxu0 0.0
    %3977 = vmatprep.mubr.f32.mxu0 0.0
    %3978 = vmatmul.mubr.f32.gmra.mxu0 %v3911
    %v3979 = vpop.f32.mrf.mxu0
    %v3980 = vadd.f32 %v845, %v3979
    %v3981 = vpop.f32.mrf.mxu0
    %3982 = vdwg.mxu0
    %v3983 = vadd.f32 %v688, %v3835
    %v3984 = vxor.u32 %v3983, 2147483648
    %v3985 = vmul.f32 %v3984, 1.442695
    %v3986 = vpow.pop %v3985
    %v3987 = vadd.f32 %v3986, 1.0
    %v3988 = vrcp.pop %v3987
    %v3989 = vmul.f32 1.0, %v3988
    %v3990 = vtanh.pop %v3983
    %v3991 = vmul.f32 %v3989, %v3563
    %3993 = vrot.lane.b32.xlu0 %v3990, 64
    %v3994 = vpop.permute.xlu0 %3993
    %v3996 = vmul.f32 %v3989, %v3994
    %3998 = vrot.lane.b32.xlu0 %v3996, 32
    %v3999 = vpop.permute.xlu0 %3998
    %v4001 = vadd.f32 %v3991, %v3999
    %v4002 = vtanh.pop %v4001
    %4004 = vrot.lane.b32.xlu0 %v4002, 64
    %v4005 = vpop.permute.xlu0 %4004
    %v4007 = vmul.f32 %v3989, %v4005
    %4009 = vrot.lane.b32.xlu0 %v4007, 32
    %v4010 = vpop.permute.xlu0 %4009
    %v4011 = vsel %vm691, %v4010, 0
    %4013 = vmatprep.subr.mxu0 0.0
    %4014 = vmatpush1.msra.mxu0 0.0
    %4015 = vmatprep.subr.mxu0 0.0
    %4016 = vmatpush1.msra.mxu0 0.0
    %4017 = vmatprep.subr.mxu0 0.0
    %4018 = vmatpush1.msra.mxu0 0.0
    %4019 = vmatprep.subr.mxu0 0.0
    %4020 = vmatpush1.msra.mxu0 0.0
    %4021 = vmatprep.subr.mxu0 0.0
    %4022 = vmatpush1.msra.mxu0 0.0
    %4023 = vmatprep.subr.mxu0 0.0
    %4024 = vmatpush1.msra.mxu0 0.0
    %4025 = vmatprep.subr.mxu0 0.0
    %4026 = vmatpush1.msra.mxu0 0.0
    %4027 = vmatprep.subr.mxu0 0.0
    %4028 = vmatpush1.msra.mxu0 0.0
    %4029 = vmatprep.subr.mxu0 0.0
    %4030 = vmatpush1.msra.mxu0 0.0
    %4031 = vmatprep.subr.mxu0 0.0
    %4032 = vmatpush1.msra.mxu0 0.0
    %4033 = vmatprep.subr.mxu0 0.0
    %4034 = vmatpush1.msra.mxu0 0.0
    %4035 = vmatprep.subr.mxu0 0.0
    %4036 = vmatpush1.msra.mxu0 0.0
    %4037 = vmatprep.subr.mxu0 0.0
    %4038 = vmatpush1.msra.mxu0 %v60
    %4039 = vmatprep.subr.mxu0 0.0
    %4040 = vmatpush1.msra.mxu0 %v59
    %4041 = vmatprep.subr.mxu0 0.0
    %4042 = vmatpush1.msra.mxu0 %v58
    %4043 = vmatprep.subr.mxu0 0.0
    %4044 = vmatpush1.msra.mxu0 %v57
    %4045 = vmatprep.subr.mxu0 0.0
    %4046 = vmatpush2.msra.mxu0 0.0
    %4047 = vmatprep.subr.mxu0 0.0
    %4048 = vmatpush2.msra.mxu0 0.0
    %4049 = vmatprep.subr.mxu0 0.0
    %4050 = vmatpush2.msra.mxu0 0.0
    %4051 = vmatprep.subr.mxu0 0.0
    %4052 = vmatpush2.msra.mxu0 0.0
    %4053 = vmatprep.subr.mxu0 0.0
    %4054 = vmatpush2.msra.mxu0 0.0
    %4055 = vmatprep.subr.mxu0 0.0
    %4056 = vmatpush2.msra.mxu0 0.0
    %4057 = vmatprep.subr.mxu0 0.0
    %4058 = vmatpush2.msra.mxu0 0.0
    %4059 = vmatprep.subr.mxu0 0.0
    %4060 = vmatpush2.msra.mxu0 0.0
    %4061 = vmatprep.subr.mxu0 0.0
    %4062 = vmatpush2.msra.mxu0 0.0
    %4063 = vmatprep.subr.mxu0 0.0
    %4064 = vmatpush2.msra.mxu0 0.0
    %4065 = vmatprep.subr.mxu0 0.0
    %4066 = vmatpush2.msra.mxu0 0.0
    %4067 = vmatprep.subr.mxu0 0.0
    %4068 = vmatpush2.msra.mxu0 0.0
    %4069 = vmatprep.subr.mxu0 0.0
    %4070 = vmatpush2.msra.mxu0 0.0
    %4071 = vmatprep.subr.mxu0 0.0
    %4072 = vmatpush2.msra.mxu0 0.0
    %4073 = vmatprep.subr.mxu0 0.0
    %4074 = vmatpush2.msra.mxu0 0.0
    %4075 = vmatprep.subr.mxu0 0.0
    %4076 = vmatpush2.msra.mxu0 0.0
    %4077 = vmatprep.mubr.f32.mxu0 0.0
    %4078 = vmatmul.mubr.f32.gmra.mxu0 %v4011
    %v4079 = vpop.f32.mrf.mxu0
    %v4080 = vadd.f32 %v3905, %v4079
    %v4081 = vpop.f32.mrf.mxu0
    %4082 = vdwg.mxu0
    %v4083 = vxor.u32 %v4080, 2147483648
    %v4084 = vmul.f32 %v4083, 1.442695
    %v4085 = vpow.pop %v4084
    %v4086 = vadd.f32 %v4085, 1.0
    %v4087 = vrcp.pop %v4086
    %v4088 = vmul.f32 1.0, %v4087
    %v4089 = vtanh.pop %v4080
    %v4090 = vmul.f32 %v4088, %v3662
    %4092 = vrot.lane.b32.xlu0 %v4089, 64
    %v4093 = vpop.permute.xlu0 %4092
    %v4095 = vmul.f32 %v4088, %v4093
    %4097 = vrot.lane.b32.xlu0 %v4095, 32
    %v4098 = vpop.permute.xlu0 %4097
    %v4100 = vadd.f32 %v4090, %v4098
    %v4101 = vtanh.pop %v4100
    %4103 = vrot.lane.b32.xlu0 %v4101, 64
    %v4104 = vpop.permute.xlu0 %4103
    %v4106 = vmul.f32 %v4088, %v4104
    %4108 = vrot.lane.b32.xlu0 %v4106, 32
    %v4109 = vpop.permute.xlu0 %4108
    %v4110 = vsel %vm691, %v4109, 0
    %4112 = vmatprep.subr.mxu0 0.0
    %4113 = vmatpush1.msra.mxu0 0.0
    %4114 = vmatprep.subr.mxu0 0.0
    %4115 = vmatpush1.msra.mxu0 0.0
    %4116 = vmatprep.subr.mxu0 0.0
    %4117 = vmatpush1.msra.mxu0 0.0
    %4118 = vmatprep.subr.mxu0 0.0
    %4119 = vmatpush1.msra.mxu0 0.0
    %4120 = vmatprep.subr.mxu0 0.0
    %4121 = vmatpush1.msra.mxu0 0.0
    %4122 = vmatprep.subr.mxu0 0.0
    %4123 = vmatpush1.msra.mxu0 0.0
    %4124 = vmatprep.subr.mxu0 0.0
    %4125 = vmatpush1.msra.mxu0 0.0
    %4126 = vmatprep.subr.mxu0 0.0
    %4127 = vmatpush1.msra.mxu0 0.0
    %4128 = vmatprep.subr.mxu0 0.0
    %4129 = vmatpush1.msra.mxu0 0.0
    %4130 = vmatprep.subr.mxu0 0.0
    %4131 = vmatpush1.msra.mxu0 0.0
    %4132 = vmatprep.subr.mxu0 0.0
    %4133 = vmatpush1.msra.mxu0 0.0
    %4134 = vmatprep.subr.mxu0 0.0
    %4135 = vmatpush1.msra.mxu0 0.0
    %4136 = vmatprep.subr.mxu0 0.0
    %4137 = vmatpush1.msra.mxu0 %v65
    %4138 = vmatprep.subr.mxu0 0.0
    %4139 = vmatpush1.msra.mxu0 %v64
    %4140 = vmatprep.subr.mxu0 0.0
    %4141 = vmatpush1.msra.mxu0 %v63
    %4142 = vmatprep.subr.mxu0 0.0
    %4143 = vmatpush1.msra.mxu0 %v62
    %4144 = vmatprep.subr.mxu0 0.0
    %4145 = vmatpush2.msra.mxu0 0.0
    %4146 = vmatprep.subr.mxu0 0.0
    %4147 = vmatpush2.msra.mxu0 0.0
    %4148 = vmatprep.subr.mxu0 0.0
    %4149 = vmatpush2.msra.mxu0 0.0
    %4150 = vmatprep.subr.mxu0 0.0
    %4151 = vmatpush2.msra.mxu0 0.0
    %4152 = vmatprep.subr.mxu0 0.0
    %4153 = vmatpush2.msra.mxu0 0.0
    %4154 = vmatprep.subr.mxu0 0.0
    %4155 = vmatpush2.msra.mxu0 0.0
    %4156 = vmatprep.subr.mxu0 0.0
    %4157 = vmatpush2.msra.mxu0 0.0
    %4158 = vmatprep.subr.mxu0 0.0
    %4159 = vmatpush2.msra.mxu0 0.0
    %4160 = vmatprep.subr.mxu0 0.0
    %4161 = vmatpush2.msra.mxu0 0.0
    %4162 = vmatprep.subr.mxu0 0.0
    %4163 = vmatpush2.msra.mxu0 0.0
    %4164 = vmatprep.subr.mxu0 0.0
    %4165 = vmatpush2.msra.mxu0 0.0
    %4166 = vmatprep.subr.mxu0 0.0
    %4167 = vmatpush2.msra.mxu0 0.0
    %4168 = vmatprep.subr.mxu0 0.0
    %4169 = vmatpush2.msra.mxu0 0.0
    %4170 = vmatprep.subr.mxu0 0.0
    %4171 = vmatpush2.msra.mxu0 0.0
    %4172 = vmatprep.subr.mxu0 0.0
    %4173 = vmatpush2.msra.mxu0 0.0
    %4174 = vmatprep.subr.mxu0 0.0
    %4175 = vmatpush2.msra.mxu0 0.0
    %4176 = vmatprep.mubr.f32.mxu0 0.0
    %4177 = vmatmul.mubr.f32.gmra.mxu0 %v4110
    %v4178 = vpop.f32.mrf.mxu0
    %v4179 = vadd.f32 %v3980, %v4178
    %v4180 = vpop.f32.mrf.mxu0
    %4181 = vdwg.mxu0
    %v4182 = vxor.u32 %v4179, 2147483648
    %v4183 = vmul.f32 %v4182, 1.442695
    %v4184 = vpow.pop %v4183
    %v4185 = vadd.f32 %v4184, 1.0
    %v4186 = vrcp.pop %v4185
    %v4187 = vmul.f32 1.0, %v4186
    %v4188 = vtanh.pop %v4179
    %v4189 = vmul.f32 %v4187, %v3761
    %4191 = vrot.lane.b32.xlu0 %v4188, 64
    %v4192 = vpop.permute.xlu0 %4191
    %v4194 = vmul.f32 %v4187, %v4192
    %4196 = vrot.lane.b32.xlu0 %v4194, 32
    %v4197 = vpop.permute.xlu0 %4196
    %v4199 = vadd.f32 %v4189, %v4197
    %v4200 = vtanh.pop %v4199
    %4202 = vrot.lane.b32.xlu0 %v4200, 64
    %v4203 = vpop.permute.xlu0 %4202
    %v4205 = vmul.f32 %v4187, %v4203
    %v4206 = vld [vmem:[%s5] sm:$0x1]
    %v4208 = vlaneseq
    %v4209 = vshrl.u32 %v4208, 7
    %v4210 = vsub.s32 0, %v4209
    %v4211 = vrot.slane %v4206, %v4210
    %4212 = vrot.lane.b32.xlu0 %v4211, 96
    %v4213 = vpop.permute.xlu0 %4212
    %v4215 = vmul.f32 %v4205, %v4213
    %4217 = vrot.lane.b32.xlu0 %v4215, 32
    %v4218 = vpop.permute.xlu0 %4217
    %vm4220 = vcmask 254976
    %v4221 = vsel %vm4220, %v4218, 0.0
    %4222 = vadd.xlane.f32.xlu0 %v4221
    %v4223 = vpop.xlane.xlu0 %4222
    %v4224 = vld [vmem:[#allocation2] sm:$0x1]
    %v4226 = vlaneseq
    %v4227 = vshrl.u32 %v4226, 7
    %v4228 = vsub.s32 0, %v4227
    %v4229 = vrot.slane %v4224, %v4228
    %v4231 = vadd.f32 %v4223, %v4229
    %vm4232 = vcmask 1024
    %4233 = vst.msk [vmem:[%s7] sm:$0x3] %vm4232, %v4231
    // Predicated region
    $region38: #{my_model_forward.1} parent=1 // pred_check
      _
    $region39: #{my_model_forward.1} parent=1 // pred_check_branch
      %4235 = sbr.rel (0) target = $region41
    $region40: #{my_model_forward.1} parent=1 // pred_region
      _
    $region41: #{my_model_forward.1} parent=1 // pred_fallthru
      _
    // Predicated region
    $region42: #{my_model_forward.1} parent=1 // pred_check
      _
    $region43: #{my_model_forward.1} parent=1 // pred_check_branch
      %4237 = sbr.rel (0) target = $region45
    $region44: #{my_model_forward.1} parent=1 // pred_region
      _
    $region45: #{my_model_forward.1} parent=1 // pred_fallthru
      _
    %4238 = vsyncpa [#allocation4], 1
    %4239 = vsyncpa [#allocation6], 1

</llo_original>
